<compile_context>
chip_gen: v6e
topology: v6e:2x2x1
jax: 0.10.0
libtpu: 0.0.40
codegen_flags: <defaults>
</compile_context>

<pallas_src>
import functools

import numpy as np
import jax
import jax.numpy as jnp
from jax import lax
from jax.experimental import pallas as pl
from jax.experimental.pallas import tpu as pltpu


# ----------------------------------------------------------------------------
# Sin-cos 3D positional embedding (exact port of the reference numpy code).
# ----------------------------------------------------------------------------
def get_1d_sincos_pos_embed_from_grid(embed_dim, pos):
    assert embed_dim % 2 == 0
    omega = np.arange(embed_dim // 2, dtype=np.float64)
    omega /= embed_dim / 2.0
    omega = 1.0 / 10000 ** omega
    pos = pos.reshape(-1)
    out = np.einsum('m,d->md', pos, omega)
    emb_sin = np.sin(out)
    emb_cos = np.cos(out)
    return np.concatenate([emb_sin, emb_cos], axis=1)


def get_3d_sincos_pos_embed_from_grid(embed_dim, grid):
    assert embed_dim % 3 == 0
    emb_d = get_1d_sincos_pos_embed_from_grid(embed_dim // 3, grid[0])
    emb_h = get_1d_sincos_pos_embed_from_grid(embed_dim // 3, grid[1])
    emb_w = get_1d_sincos_pos_embed_from_grid(embed_dim // 3, grid[2])
    return np.concatenate([emb_d, emb_h, emb_w], axis=1)


def get_3d_sincos_pos_embed(embed_dim, grid_size):
    grid_size = (grid_size, grid_size, grid_size) if type(grid_size) != tuple else grid_size
    grid_d = np.arange(grid_size[0], dtype=np.float32)
    grid_h = np.arange(grid_size[1], dtype=np.float32)
    grid_w = np.arange(grid_size[2], dtype=np.float32)
    grid = np.meshgrid(grid_w, grid_h, grid_d)
    grid = np.stack(grid, axis=0)
    grid = grid.reshape([3, 1, grid_size[0], grid_size[1], grid_size[2]])
    return get_3d_sincos_pos_embed_from_grid(embed_dim, grid)


# ----------------------------------------------------------------------------
# Fused Pallas kernel
# ----------------------------------------------------------------------------
_EPS = 1e-5  # PyTorch nn.LayerNorm default


def fused_decoder_kernel(x0_ref,
                         aln_w_ref, aln_b_ref, wqkv_ref, wo_ref, bo_ref,
                         fln_w_ref, fln_b_ref, w1_ref, b1_ref, w2_ref, b2_ref,
                         nrm_w_ref, nrm_b_ref, wdec_ref, bdec_ref,
                         out_ref,
                         *, batch, tokens, heads, dim_head, logical_dim):
    B, N, H, dh = batch, tokens, heads, dim_head
    BN = B * N
    inner = H * dh
    depth = wqkv_ref.shape[0]
    Dp = x0_ref.shape[-1]                       # lane-padded model dim
    bf16 = jnp.bfloat16
    scale = dh ** -0.5
    inv_d = 1.0 / logical_dim

    # Lane-validity mask (hoisted once): LN statistics over the logical dim
    # only.  Padded lanes of the residual stream are exact zeros by
    # construction (zero-padded weights/biases), so the mean needs no mask.
    lane = lax.broadcasted_iota(jnp.int32, (1, Dp), 1)
    mask = (lane < logical_dim).astype(jnp.float32)

    def layer_norm(x, w, b):
        mu = jnp.sum(x, axis=-1, keepdims=True) * inv_d
        d = (x - mu) * mask
        var = jnp.sum(d * d, axis=-1, keepdims=True) * inv_d
        return d * lax.rsqrt(var + _EPS) * w + b

    # Residual stream lives as a value (vregs / compiler-managed VMEM);
    # no HBM round-trips between layers, single kernel launch total.
    x = x0_ref[...]                                               # (BN, Dp) f32

    # depth is a small static constant here -> full unroll (static ref indices).
    for l in range(depth):
        # ---- PreNorm -> multi-head self-attention -> out proj -> residual ----
        xn = layer_norm(x, aln_w_ref[l], aln_b_ref[l])
        qkv = jnp.dot(xn.astype(bf16), wqkv_ref[l],
                      preferred_element_type=jnp.float32)         # (BN, 3*inner)
        wo_l = wo_ref[l]                                          # (inner, Dp) bf16

        # Per-head lane slices + leading-batch einsums: heads stay on the lane
        # axis, so there is no sublane<->lane transpose.  The head merge is
        # folded into a per-head slice of the output projection.
        attn = None
        for h in range(H):
            off = h * dh
            q = qkv[:, off:off + dh].reshape(B, N, dh)
            k = qkv[:, inner + off:inner + off + dh].reshape(B, N, dh)
            v = qkv[:, 2 * inner + off:2 * inner + off + dh].reshape(B, N, dh)

            s = jnp.einsum('bnd,bmd->bnm', q.astype(bf16), k.astype(bf16),
                           preferred_element_type=jnp.float32) * scale
            s = s - jnp.max(s, axis=-1, keepdims=True)
            p = jnp.exp(s)
            p = p * pl.reciprocal(jnp.sum(p, axis=-1, keepdims=True), approx=True)
            o = jnp.einsum('bnm,bmd->bnd', p.astype(bf16), v.astype(bf16),
                           preferred_element_type=jnp.float32)    # (B, N, dh)

            contrib = jnp.dot(o.reshape(BN, dh).astype(bf16),
                              wo_l[off:off + dh, :],
                              preferred_element_type=jnp.float32)  # (BN, Dp)
            attn = contrib if attn is None else attn + contrib

        x = x + attn + bo_ref[l]

        # ---- PreNorm -> Linear -> Tanh -> Linear -> residual ----
        xn = layer_norm(x, fln_w_ref[l], fln_b_ref[l])
        hdn = jnp.tanh(jnp.dot(xn.astype(bf16), w1_ref[l],
                               preferred_element_type=jnp.float32) + b1_ref[l])
        ff = jnp.dot(hdn.astype(bf16), w2_ref[l],
                     preferred_element_type=jnp.float32) + b2_ref[l]
        x = x + ff

    # Final LayerNorm + ConvTranspose3d-as-matmul; lane-dense (BN, 512) store.
    xf = layer_norm(x, nrm_w_ref[...], nrm_b_ref[...])
    out_ref[...] = jnp.dot(xf.astype(bf16), wdec_ref[...],
                           preferred_element_type=jnp.float32) + bdec_ref[...]


# ----------------------------------------------------------------------------
# pallas_call wrapper
# ----------------------------------------------------------------------------
_PARAM_ORDER = ("aln_w", "aln_b", "wqkv", "wo", "bo",
                "fln_w", "fln_b", "w1", "b1", "w2", "b2",
                "nrm_w", "nrm_b", "w_dec", "b_dec")


def _full_spec(shape):
    n = len(shape)
    return pl.BlockSpec(tuple(shape), lambda i, _n=n: (0,) * _n)


def vit_decoder_tokens_to_patches(params, meta, token):
    """Pos-add (XLA) + all transformer layers + final LN + de-patchify matmul
    in ONE pallas_call with a single grid step."""
    B, N, D = token.shape
    Dp = meta["dim_pad"]
    heads, dim_head = meta["heads"], meta["dim_head"]
    P = meta["patch_dim"]

    # Pos-add, flatten and lane padding are free XLA layout glue -> kernel
    # starts directly from the (BN, Dp) residual stream.
    x0 = (token + params["pos"]).reshape(B * N, D)
    if Dp > D:
        x0 = jnp.pad(x0, ((0, 0), (0, Dp - D)))

    kern = functools.partial(fused_decoder_kernel, batch=B, tokens=N,
                             heads=heads, dim_head=dim_head, logical_dim=D)
    patches = pl.pallas_call(
        kern,
        out_shape=jax.ShapeDtypeStruct((B * N, P), jnp.float32),
        grid=(1,),
        in_specs=[_full_spec(x0.shape)] +
                 [_full_spec(params[k].shape) for k in _PARAM_ORDER],
        out_specs=pl.BlockSpec((B * N, P), lambda i: (0, 0)),
        compiler_params=pltpu.CompilerParams(
            dimension_semantics=("arbitrary",),
            # Raises v5e's 16 MiB scoped default; well under v7x's 64 MiB
            # physical.  Re-budget (and tile K/V + weights) when scaling dims.
            vmem_limit_bytes=32 * 1024 * 1024),
    )(x0, *[params[k] for k in _PARAM_ORDER])
    return patches.reshape(B, N, P)


def patches_to_voxel(patches, grid_size, patch_size, channels):
    # Pure layout glue: 'b (d h w) (c pd ph pw) -> b c (d pd) (h ph) (w pw)'.
    B, N, P = patches.shape
    gd, gh, gw = grid_size
    pd, ph, pw = patch_size
    x = patches.reshape(B, gd, gh, gw, channels, pd, ph, pw)
    x = x.transpose(0, 4, 1, 5, 2, 6, 3, 7)
    return x.reshape(B, channels, gd * pd, gh * ph, gw * pw)


def vit_decoder_3d_forward(params, meta, token):
    patches = vit_decoder_tokens_to_patches(params, meta, token)
    return patches_to_voxel(patches, meta["grid_size"], meta["patch_size"],
                            meta["channels"])


# ----------------------------------------------------------------------------
# Parameter init (mirrors init_weights: xavier Linear/ConvT weights, zero
# Linear bias, LN weight=1 / bias=0).  MXU-facing weights stored in bf16,
# zero-padded so the model dim / mlp dim are lane-dense multiples of 128.
# ----------------------------------------------------------------------------
def _round_up(x, m):
    return ((x + m - 1) // m) * m


def _pad_to(a, shape):
    return jnp.pad(a, [(0, t - s) for s, t in zip(a.shape, shape)])


def _xavier(key, fan_in, fan_out, shape):
    limit = float(np.sqrt(6.0 / (fan_in + fan_out)))
    return jax.random.uniform(key, shape, jnp.float32, -limit, limit)


def init_vit_decoder_3d(key, volume_size, patch_size, dim, depth, heads, mlp_dim,
                        channels=1, dim_head=64):
    vd, vh, vw = volume_size
    pd, ph, pw = patch_size
    assert vd % pd == 0 and vh % ph == 0 and vw % pw == 0
    grid_size = (vd // pd, vh // ph, vw // pw)
    num_patches = grid_size[0] * grid_size[1] * grid_size[2]
    patch_dim = channels * pd * ph * pw
    inner = heads * dim_head
    Dp = _round_up(dim, 128)        # lane-dense model dim
    Mp = _round_up(mlp_dim, 128)    # lane-dense mlp dim

    pos = jnp.asarray(get_3d_sincos_pos_embed(dim, grid_size), jnp.float32)[None]

    def k(i):  # fold_in per named parameter -> deterministic, no iterator risk
        return jax.random.fold_in(key, i)

    wqkv, wo, w1, w2 = [], [], [], []
    for d in range(depth):
        wqkv.append(_pad_to(_xavier(k(4 * d + 0), dim, 3 * inner, (dim, 3 * inner)),
                            (Dp, 3 * inner)))
        wo.append(_pad_to(_xavier(k(4 * d + 1), inner, dim, (inner, dim)),
                          (inner, Dp)))
        w1.append(_pad_to(_xavier(k(4 * d + 2), dim, mlp_dim, (dim, mlp_dim)),
                          (Dp, Mp)))
        w2.append(_pad_to(_xavier(k(4 * d + 3), mlp_dim, dim, (mlp_dim, dim)),
                          (Mp, Dp)))

    bf16 = jnp.bfloat16
    # ConvTranspose3d(dim, C, kernel=stride=patch) flattened to (dim, C*pd*ph*pw)
    # in (c, kd, kh, kw) column order.
    # TODO(synk): when porting real PyTorch weights, use
    #   w_dec = torch_weight.reshape(dim, -1)   # (in, out, kd, kh, kw) -> c-major
    # which matches patches_to_voxel's '(c pd ph pw)' ordering.
    w_dec = _pad_to(_xavier(k(4 * depth + 0), patch_dim, dim, (dim, patch_dim)),
                    (Dp, patch_dim))
    bdec_bound = 1.0 / float(np.sqrt(channels * pd * ph * pw))
    bias_c = jax.random.uniform(k(4 * depth + 1), (channels,), jnp.float32,
                                -bdec_bound, bdec_bound)
    b_dec = jnp.repeat(bias_c, pd * ph * pw)[None]       # per-channel bias, tiled

    params = {
        "pos": pos,                                        # (1, N, dim) unpadded
        # per-layer stacks (leading layer axis, indexed statically in-kernel)
        "aln_w": jnp.ones((depth, 1, Dp), jnp.float32),
        "aln_b": jnp.zeros((depth, 1, Dp), jnp.float32),
        "wqkv": jnp.stack(wqkv).astype(bf16),
        "wo": jnp.stack(wo).astype(bf16),
        "bo": jnp.zeros((depth, 1, Dp), jnp.float32),
        "fln_w": jnp.ones((depth, 1, Dp), jnp.float32),
        "fln_b": jnp.zeros((depth, 1, Dp), jnp.float32),
        "w1": jnp.stack(w1).astype(bf16),
        "b1": jnp.zeros((depth, 1, Mp), jnp.float32),
        "w2": jnp.stack(w2).astype(bf16),
        "b2": jnp.zeros((depth, 1, Dp), jnp.float32),
        # transformer final LayerNorm
        "nrm_w": jnp.ones((1, Dp), jnp.float32),
        "nrm_b": jnp.zeros((1, Dp), jnp.float32),
        # decoder head
        "w_dec": w_dec.astype(bf16),
        "b_dec": b_dec,
    }
    meta = dict(grid_size=grid_size, patch_size=(pd, ph, pw), channels=channels,
                heads=heads, dim_head=dim_head, num_patches=num_patches,
                patch_dim=patch_dim, dim=dim, dim_pad=Dp,
                mlp_dim=mlp_dim, mlp_pad=Mp)
    return params, meta


# ----------------------------------------------------------------------------
# Pure-JAX reference (PyTorch semantics, f32) for a tolerance check.
# Note: the kernel uses bf16 MXU operands and an approx softmax reciprocal, so
# ~1e-2-level absolute differences are expected and accepted.
# ----------------------------------------------------------------------------
def reference_forward(params, meta, token):
    D, Mlp = meta["dim"], meta["mlp_dim"]
    H, dh = meta["heads"], meta["dim_head"]
    inner = H * dh
    B, N, _ = token.shape
    depth = params["wqkv"].shape[0]
    f32 = jnp.float32

    def ln(x, w, b):
        mu = jnp.mean(x, -1, keepdims=True)
        var = jnp.mean((x - mu) ** 2, -1, keepdims=True)
        return (x - mu) / jnp.sqrt(var + _EPS) * w + b

    x = token + params["pos"]
    for l in range(depth):
        xn = ln(x, params["aln_w"][l, 0, :D], params["aln_b"][l, 0, :D])
        qkv = xn @ params["wqkv"][l, :D, :].astype(f32)
        q, kk, v = jnp.split(qkv, 3, axis=-1)

        def sh(t):
            return t.reshape(B, N, H, dh).transpose(0, 2, 1, 3)

        q, kk, v = sh(q), sh(kk), sh(v)
        attn = jax.nn.softmax((q @ jnp.swapaxes(kk, -1, -2)) * dh ** -0.5, axis=-1)
        o = (attn @ v).transpose(0, 2, 1, 3).reshape(B, N, inner)
        x = x + o @ params["wo"][l, :, :D].astype(f32) + params["bo"][l, 0, :D]

        xn = ln(x, params["fln_w"][l, 0, :D], params["fln_b"][l, 0, :D])
        h = jnp.tanh(xn @ params["w1"][l, :D, :Mlp].astype(f32) + params["b1"][l, 0, :Mlp])
        x = x + h @ params["w2"][l, :Mlp, :D].astype(f32) + params["b2"][l, 0, :D]

    x = ln(x, params["nrm_w"][0, :D], params["nrm_b"][0, :D])
    patches = x @ params["w_dec"][:D, :].astype(f32) + params["b_dec"][0]
    return patches_to_voxel(patches, meta["grid_size"], meta["patch_size"],
                            meta["channels"])


# ----------------------------------------------------------------------------
# Demo
# ----------------------------------------------------------------------------
if __name__ == "__main__":
    # Small config: 2x2x2 = 8 tokens, dim divisible by 6 (3-D sincos),
    # heads*dim_head = 128 so q/k/v thirds are 128-lane aligned.
    B, C = 2, 1
    volume_size = (16, 16, 16)
    patch_size = (8, 8, 8)
    dim, depth, heads, dim_head, mlp_dim = 96, 2, 4, 32, 192

    key = jax.random.PRNGKey(0)
    k_param, k_tok = jax.random.split(key)
    params, meta = init_vit_decoder_3d(k_param, volume_size, patch_size, dim,
                                       depth, heads, mlp_dim, channels=C,
                                       dim_head=dim_head)
    token = jax.random.normal(k_tok, (B, meta["num_patches"], dim), jnp.float32)

    out = vit_decoder_3d_forward(params, meta, token)
    out = jax.block_until_ready(out)
    assert out.shape == (B, C) + volume_size
    assert bool(jnp.all(jnp.isfinite(out)))

    ref = jax.block_until_ready(reference_forward(params, meta, token))
    max_err = float(jnp.max(jnp.abs(out - ref)))
    assert max_err < 1e-1, f"kernel vs reference max abs err {max_err}"

    print("KERNEL_OK")
</pallas_src>

<mosaic_0001>
module attributes {stable_mosaic.version = 11 : i64} {
  func.func @fused_decoder_kernel(%arg0: i32, %arg1: memref<16x128xf32, #tpu.memory_space<vmem>>, %arg2: memref<2x1x128xf32, #tpu.memory_space<vmem>>, %arg3: memref<2x1x128xf32, #tpu.memory_space<vmem>>, %arg4: memref<2x128x384xbf16, #tpu.memory_space<vmem>>, %arg5: memref<2x128x128xbf16, #tpu.memory_space<vmem>>, %arg6: memref<2x1x128xf32, #tpu.memory_space<vmem>>, %arg7: memref<2x1x128xf32, #tpu.memory_space<vmem>>, %arg8: memref<2x1x128xf32, #tpu.memory_space<vmem>>, %arg9: memref<2x128x256xbf16, #tpu.memory_space<vmem>>, %arg10: memref<2x1x256xf32, #tpu.memory_space<vmem>>, %arg11: memref<2x256x128xbf16, #tpu.memory_space<vmem>>, %arg12: memref<2x1x128xf32, #tpu.memory_space<vmem>>, %arg13: memref<1x128xf32, #tpu.memory_space<vmem>>, %arg14: memref<1x128xf32, #tpu.memory_space<vmem>>, %arg15: memref<128x512xbf16, #tpu.memory_space<vmem>>, %arg16: memref<1x512xf32, #tpu.memory_space<vmem>>, %arg17: memref<16x512xf32, #tpu.memory_space<vmem>>) attributes {dimension_semantics = [#tpu.dimension_semantics<arbitrary>], iteration_bounds = array<i64: 1>, scalar_prefetch = 0 : i64, scratch_operands = 0 : i64, tpu.core_type = #tpu.core_type<tc>, window_params = [{pipeline_mode = #tpu.pipeline_mode<synchronous>, transform_indices = @transform_0, window_bounds = array<i64: 16, 128>}, {pipeline_mode = #tpu.pipeline_mode<synchronous>, transform_indices = @transform_1, window_bounds = array<i64: 2, 1, 128>}, {pipeline_mode = #tpu.pipeline_mode<synchronous>, transform_indices = @transform_2, window_bounds = array<i64: 2, 1, 128>}, {pipeline_mode = #tpu.pipeline_mode<synchronous>, transform_indices = @transform_3, window_bounds = array<i64: 2, 128, 384>}, {pipeline_mode = #tpu.pipeline_mode<synchronous>, transform_indices = @transform_4, window_bounds = array<i64: 2, 128, 128>}, {pipeline_mode = #tpu.pipeline_mode<synchronous>, transform_indices = @transform_5, window_bounds = array<i64: 2, 1, 128>}, {pipeline_mode = #tpu.pipeline_mode<synchronous>, transform_indices = @transform_6, window_bounds = array<i64: 2, 1, 128>}, {pipeline_mode = #tpu.pipeline_mode<synchronous>, transform_indices = @transform_7, window_bounds = array<i64: 2, 1, 128>}, {pipeline_mode = #tpu.pipeline_mode<synchronous>, transform_indices = @transform_8, window_bounds = array<i64: 2, 128, 256>}, {pipeline_mode = #tpu.pipeline_mode<synchronous>, transform_indices = @transform_9, window_bounds = array<i64: 2, 1, 256>}, {pipeline_mode = #tpu.pipeline_mode<synchronous>, transform_indices = @transform_10, window_bounds = array<i64: 2, 256, 128>}, {pipeline_mode = #tpu.pipeline_mode<synchronous>, transform_indices = @transform_11, window_bounds = array<i64: 2, 1, 128>}, {pipeline_mode = #tpu.pipeline_mode<synchronous>, transform_indices = @transform_12, window_bounds = array<i64: 1, 128>}, {pipeline_mode = #tpu.pipeline_mode<synchronous>, transform_indices = @transform_13, window_bounds = array<i64: 1, 128>}, {pipeline_mode = #tpu.pipeline_mode<synchronous>, transform_indices = @transform_14, window_bounds = array<i64: 128, 512>}, {pipeline_mode = #tpu.pipeline_mode<synchronous>, transform_indices = @transform_15, window_bounds = array<i64: 1, 512>}, {pipeline_mode = #tpu.pipeline_mode<synchronous>, transform_indices = @transform_16, window_bounds = array<i64: 16, 512>}]} {
    %0 = tpu.iota {dimensions = array<i32: 1>} : vector<1x128xi32>
    %c96_i32 = arith.constant 96 : i32
    %1 = vector.broadcast %c96_i32 : i32 to vector<1x128xi32>
    %2 = arith.cmpi slt, %0, %1 : vector<1x128xi32>
    %3 = arith.extui %2 : vector<1x128xi1> to vector<1x128xi32>
    %4 = arith.sitofp %3 : vector<1x128xi32> to vector<1x128xf32>
    %c0 = arith.constant 0 : index
    %c0_0 = arith.constant 0 : index
    %5 = vector.load %arg1[%c0, %c0_0] : memref<16x128xf32, #tpu.memory_space<vmem>>, vector<16x128xf32>
    %c0_1 = arith.constant 0 : index
    %c0_2 = arith.constant 0 : index
    %c0_3 = arith.constant 0 : index
    %6 = vector.load %arg2[%c0_1, %c0_2, %c0_3] : memref<2x1x128xf32, #tpu.memory_space<vmem>>, vector<1x1x128xf32>
    %7 = vector.shape_cast %6 : vector<1x1x128xf32> to vector<1x128xf32>
    %c0_4 = arith.constant 0 : index
    %c0_5 = arith.constant 0 : index
    %c0_6 = arith.constant 0 : index
    %8 = vector.load %arg3[%c0_4, %c0_5, %c0_6] : memref<2x1x128xf32, #tpu.memory_space<vmem>>, vector<1x1x128xf32>
    %9 = vector.shape_cast %8 : vector<1x1x128xf32> to vector<1x128xf32>
    %cst = arith.constant dense<0.000000e+00> : vector<16xf32>
    %10 = vector.multi_reduction <add>, %5, %cst [1] : vector<16x128xf32> to vector<16xf32>
    %11 = vector.shape_cast %10 : vector<16xf32> to vector<16x1xf32>
    %cst_7 = arith.constant 0.010416667 : f32
    %12 = vector.broadcast %cst_7 : f32 to vector<16x1xf32>
    %13 = arith.mulf %11, %12 : vector<16x1xf32>
    %14 = vector.broadcast %13 : vector<16x1xf32> to vector<16x128xf32>
    %15 = arith.subf %5, %14 : vector<16x128xf32>
    %16 = vector.broadcast %4 : vector<1x128xf32> to vector<16x128xf32>
    %17 = arith.mulf %15, %16 : vector<16x128xf32>
    %18 = arith.mulf %17, %17 : vector<16x128xf32>
    %cst_8 = arith.constant dense<0.000000e+00> : vector<16xf32>
    %19 = vector.multi_reduction <add>, %18, %cst_8 [1] : vector<16x128xf32> to vector<16xf32>
    %20 = vector.shape_cast %19 : vector<16xf32> to vector<16x1xf32>
    %cst_9 = arith.constant 0.010416667 : f32
    %21 = vector.broadcast %cst_9 : f32 to vector<16x1xf32>
    %22 = arith.mulf %20, %21 : vector<16x1xf32>
    %cst_10 = arith.constant 9.99999974E-6 : f32
    %23 = vector.broadcast %cst_10 : f32 to vector<16x1xf32>
    %24 = arith.addf %22, %23 : vector<16x1xf32>
    %25 = math.rsqrt %24 : vector<16x1xf32>
    %26 = vector.broadcast %25 : vector<16x1xf32> to vector<16x128xf32>
    %27 = arith.mulf %17, %26 : vector<16x128xf32>
    %28 = vector.broadcast %7 : vector<1x128xf32> to vector<16x128xf32>
    %29 = arith.mulf %27, %28 : vector<16x128xf32>
    %30 = vector.broadcast %9 : vector<1x128xf32> to vector<16x128xf32>
    %31 = arith.addf %29, %30 : vector<16x128xf32>
    %32 = arith.truncf %31 : vector<16x128xf32> to vector<16x128xbf16>
    %c0_11 = arith.constant 0 : index
    %c0_12 = arith.constant 0 : index
    %c0_13 = arith.constant 0 : index
    %33 = vector.load %arg4[%c0_11, %c0_12, %c0_13] : memref<2x128x384xbf16, #tpu.memory_space<vmem>>, vector<1x128x384xbf16>
    %34 = vector.shape_cast %33 : vector<1x128x384xbf16> to vector<128x384xbf16>
    %cst_14 = arith.constant dense<0.000000e+00> : vector<16x384xf32>
    %35 = tpu.matmul %32, %34, %cst_14 {dimension_numbers = #tpu.dot_dimension_numbers<[1], [0], [0], [1], [0, 0, 1, 1], [], []>} : vector<16x128xbf16>, vector<128x384xbf16>, vector<16x384xf32> -> vector<16x384xf32>
    %c0_15 = arith.constant 0 : index
    %c0_16 = arith.constant 0 : index
    %c0_17 = arith.constant 0 : index
    %36 = vector.load %arg5[%c0_15, %c0_16, %c0_17] : memref<2x128x128xbf16, #tpu.memory_space<vmem>>, vector<1x128x128xbf16>
    %37 = vector.shape_cast %36 : vector<1x128x128xbf16> to vector<128x128xbf16>
    %38 = vector.extract_strided_slice %35 {offsets = [0, 0], sizes = [16, 32], strides = [1, 1]} : vector<16x384xf32> to vector<16x32xf32>
    %39 = vector.shape_cast %38 : vector<16x32xf32> to vector<2x8x32xf32>
    %40 = vector.extract_strided_slice %35 {offsets = [0, 128], sizes = [16, 32], strides = [1, 1]} : vector<16x384xf32> to vector<16x32xf32>
    %41 = vector.shape_cast %40 : vector<16x32xf32> to vector<2x8x32xf32>
    %42 = vector.extract_strided_slice %35 {offsets = [0, 256], sizes = [16, 32], strides = [1, 1]} : vector<16x384xf32> to vector<16x32xf32>
    %43 = vector.shape_cast %42 : vector<16x32xf32> to vector<2x8x32xf32>
    %44 = arith.truncf %39 : vector<2x8x32xf32> to vector<2x8x32xbf16>
    %45 = arith.truncf %41 : vector<2x8x32xf32> to vector<2x8x32xbf16>
    "tpu.trace_start"() <{level = 10 : i32, message = "bnd,bmd->bnm"}> : () -> ()
    %cst_18 = arith.constant dense<0.000000e+00> : vector<2x8x8xf32>
    %46 = tpu.matmul %44, %45, %cst_18 {dimension_numbers = #tpu.dot_dimension_numbers<[2], [2], [1], [1], [0, 0, 0, 1, 1, 1], [0], [0]>} : vector<2x8x32xbf16>, vector<2x8x32xbf16>, vector<2x8x8xf32> -> vector<2x8x8xf32>
    "tpu.trace_stop"() : () -> ()
    %cst_19 = arith.constant 0.176776692 : f32
    %47 = vector.broadcast %cst_19 : f32 to vector<2x8x8xf32>
    %48 = arith.mulf %46, %47 : vector<2x8x8xf32>
    %cst_20 = arith.constant dense<0xFF800000> : vector<2x8xf32>
    %49 = vector.multi_reduction <maximumf>, %48, %cst_20 [2] : vector<2x8x8xf32> to vector<2x8xf32>
    %50 = vector.shape_cast %49 : vector<2x8xf32> to vector<2x8x1xf32>
    %51 = vector.broadcast %50 : vector<2x8x1xf32> to vector<2x8x8xf32>
    %52 = arith.subf %48, %51 : vector<2x8x8xf32>
    %53 = math.exp %52 : vector<2x8x8xf32>
    %cst_21 = arith.constant dense<0.000000e+00> : vector<2x8xf32>
    %54 = vector.multi_reduction <add>, %53, %cst_21 [2] : vector<2x8x8xf32> to vector<2x8xf32>
    %55 = vector.shape_cast %54 : vector<2x8xf32> to vector<2x8x1xf32>
    %56 = tpu.reciprocal %55 {approx = true} : vector<2x8x1xf32> -> vector<2x8x1xf32>
    %57 = vector.broadcast %56 : vector<2x8x1xf32> to vector<2x8x8xf32>
    %58 = arith.mulf %53, %57 : vector<2x8x8xf32>
    %59 = arith.truncf %58 : vector<2x8x8xf32> to vector<2x8x8xbf16>
    %60 = arith.truncf %43 : vector<2x8x32xf32> to vector<2x8x32xbf16>
    "tpu.trace_start"() <{level = 10 : i32, message = "bnm,bmd->bnd"}> : () -> ()
    %cst_22 = arith.constant dense<0.000000e+00> : vector<2x8x32xf32>
    %61 = tpu.matmul %59, %60, %cst_22 {dimension_numbers = #tpu.dot_dimension_numbers<[2], [1], [1], [2], [0, 0, 0, 1, 1, 2], [0], [0]>} : vector<2x8x8xbf16>, vector<2x8x32xbf16>, vector<2x8x32xf32> -> vector<2x8x32xf32>
    "tpu.trace_stop"() : () -> ()
    %62 = vector.shape_cast %61 : vector<2x8x32xf32> to vector<16x32xf32>
    %63 = arith.truncf %62 : vector<16x32xf32> to vector<16x32xbf16>
    %64 = vector.extract_strided_slice %37 {offsets = [0, 0], sizes = [32, 128], strides = [1, 1]} : vector<128x128xbf16> to vector<32x128xbf16>
    %cst_23 = arith.constant dense<0.000000e+00> : vector<16x128xf32>
    %65 = tpu.matmul %63, %64, %cst_23 {dimension_numbers = #tpu.dot_dimension_numbers<[1], [0], [0], [1], [0, 0, 1, 1], [], []>} : vector<16x32xbf16>, vector<32x128xbf16>, vector<16x128xf32> -> vector<16x128xf32>
    %66 = vector.extract_strided_slice %35 {offsets = [0, 32], sizes = [16, 32], strides = [1, 1]} : vector<16x384xf32> to vector<16x32xf32>
    %67 = vector.shape_cast %66 : vector<16x32xf32> to vector<2x8x32xf32>
    %68 = vector.extract_strided_slice %35 {offsets = [0, 160], sizes = [16, 32], strides = [1, 1]} : vector<16x384xf32> to vector<16x32xf32>
    %69 = vector.shape_cast %68 : vector<16x32xf32> to vector<2x8x32xf32>
    %70 = vector.extract_strided_slice %35 {offsets = [0, 288], sizes = [16, 32], strides = [1, 1]} : vector<16x384xf32> to vector<16x32xf32>
    %71 = vector.shape_cast %70 : vector<16x32xf32> to vector<2x8x32xf32>
    %72 = arith.truncf %67 : vector<2x8x32xf32> to vector<2x8x32xbf16>
    %73 = arith.truncf %69 : vector<2x8x32xf32> to vector<2x8x32xbf16>
    "tpu.trace_start"() <{level = 10 : i32, message = "bnd,bmd->bnm"}> : () -> ()
    %cst_24 = arith.constant dense<0.000000e+00> : vector<2x8x8xf32>
    %74 = tpu.matmul %72, %73, %cst_24 {dimension_numbers = #tpu.dot_dimension_numbers<[2], [2], [1], [1], [0, 0, 0, 1, 1, 1], [0], [0]>} : vector<2x8x32xbf16>, vector<2x8x32xbf16>, vector<2x8x8xf32> -> vector<2x8x8xf32>
    "tpu.trace_stop"() : () -> ()
    %cst_25 = arith.constant 0.176776692 : f32
    %75 = vector.broadcast %cst_25 : f32 to vector<2x8x8xf32>
    %76 = arith.mulf %74, %75 : vector<2x8x8xf32>
    %cst_26 = arith.constant dense<0xFF800000> : vector<2x8xf32>
    %77 = vector.multi_reduction <maximumf>, %76, %cst_26 [2] : vector<2x8x8xf32> to vector<2x8xf32>
    %78 = vector.shape_cast %77 : vector<2x8xf32> to vector<2x8x1xf32>
    %79 = vector.broadcast %78 : vector<2x8x1xf32> to vector<2x8x8xf32>
    %80 = arith.subf %76, %79 : vector<2x8x8xf32>
    %81 = math.exp %80 : vector<2x8x8xf32>
    %cst_27 = arith.constant dense<0.000000e+00> : vector<2x8xf32>
    %82 = vector.multi_reduction <add>, %81, %cst_27 [2] : vector<2x8x8xf32> to vector<2x8xf32>
    %83 = vector.shape_cast %82 : vector<2x8xf32> to vector<2x8x1xf32>
    %84 = tpu.reciprocal %83 {approx = true} : vector<2x8x1xf32> -> vector<2x8x1xf32>
    %85 = vector.broadcast %84 : vector<2x8x1xf32> to vector<2x8x8xf32>
    %86 = arith.mulf %81, %85 : vector<2x8x8xf32>
    %87 = arith.truncf %86 : vector<2x8x8xf32> to vector<2x8x8xbf16>
    %88 = arith.truncf %71 : vector<2x8x32xf32> to vector<2x8x32xbf16>
    "tpu.trace_start"() <{level = 10 : i32, message = "bnm,bmd->bnd"}> : () -> ()
    %cst_28 = arith.constant dense<0.000000e+00> : vector<2x8x32xf32>
    %89 = tpu.matmul %87, %88, %cst_28 {dimension_numbers = #tpu.dot_dimension_numbers<[2], [1], [1], [2], [0, 0, 0, 1, 1, 2], [0], [0]>} : vector<2x8x8xbf16>, vector<2x8x32xbf16>, vector<2x8x32xf32> -> vector<2x8x32xf32>
    "tpu.trace_stop"() : () -> ()
    %90 = vector.shape_cast %89 : vector<2x8x32xf32> to vector<16x32xf32>
    %91 = arith.truncf %90 : vector<16x32xf32> to vector<16x32xbf16>
    %92 = vector.extract_strided_slice %37 {offsets = [32, 0], sizes = [32, 128], strides = [1, 1]} : vector<128x128xbf16> to vector<32x128xbf16>
    %cst_29 = arith.constant dense<0.000000e+00> : vector<16x128xf32>
    %93 = tpu.matmul %91, %92, %cst_29 {dimension_numbers = #tpu.dot_dimension_numbers<[1], [0], [0], [1], [0, 0, 1, 1], [], []>} : vector<16x32xbf16>, vector<32x128xbf16>, vector<16x128xf32> -> vector<16x128xf32>
    %94 = arith.addf %65, %93 : vector<16x128xf32>
    %95 = vector.extract_strided_slice %35 {offsets = [0, 64], sizes = [16, 32], strides = [1, 1]} : vector<16x384xf32> to vector<16x32xf32>
    %96 = vector.shape_cast %95 : vector<16x32xf32> to vector<2x8x32xf32>
    %97 = vector.extract_strided_slice %35 {offsets = [0, 192], sizes = [16, 32], strides = [1, 1]} : vector<16x384xf32> to vector<16x32xf32>
    %98 = vector.shape_cast %97 : vector<16x32xf32> to vector<2x8x32xf32>
    %99 = vector.extract_strided_slice %35 {offsets = [0, 320], sizes = [16, 32], strides = [1, 1]} : vector<16x384xf32> to vector<16x32xf32>
    %100 = vector.shape_cast %99 : vector<16x32xf32> to vector<2x8x32xf32>
    %101 = arith.truncf %96 : vector<2x8x32xf32> to vector<2x8x32xbf16>
    %102 = arith.truncf %98 : vector<2x8x32xf32> to vector<2x8x32xbf16>
    "tpu.trace_start"() <{level = 10 : i32, message = "bnd,bmd->bnm"}> : () -> ()
    %cst_30 = arith.constant dense<0.000000e+00> : vector<2x8x8xf32>
    %103 = tpu.matmul %101, %102, %cst_30 {dimension_numbers = #tpu.dot_dimension_numbers<[2], [2], [1], [1], [0, 0, 0, 1, 1, 1], [0], [0]>} : vector<2x8x32xbf16>, vector<2x8x32xbf16>, vector<2x8x8xf32> -> vector<2x8x8xf32>
    "tpu.trace_stop"() : () -> ()
    %cst_31 = arith.constant 0.176776692 : f32
    %104 = vector.broadcast %cst_31 : f32 to vector<2x8x8xf32>
    %105 = arith.mulf %103, %104 : vector<2x8x8xf32>
    %cst_32 = arith.constant dense<0xFF800000> : vector<2x8xf32>
    %106 = vector.multi_reduction <maximumf>, %105, %cst_32 [2] : vector<2x8x8xf32> to vector<2x8xf32>
    %107 = vector.shape_cast %106 : vector<2x8xf32> to vector<2x8x1xf32>
    %108 = vector.broadcast %107 : vector<2x8x1xf32> to vector<2x8x8xf32>
    %109 = arith.subf %105, %108 : vector<2x8x8xf32>
    %110 = math.exp %109 : vector<2x8x8xf32>
    %cst_33 = arith.constant dense<0.000000e+00> : vector<2x8xf32>
    %111 = vector.multi_reduction <add>, %110, %cst_33 [2] : vector<2x8x8xf32> to vector<2x8xf32>
    %112 = vector.shape_cast %111 : vector<2x8xf32> to vector<2x8x1xf32>
    %113 = tpu.reciprocal %112 {approx = true} : vector<2x8x1xf32> -> vector<2x8x1xf32>
    %114 = vector.broadcast %113 : vector<2x8x1xf32> to vector<2x8x8xf32>
    %115 = arith.mulf %110, %114 : vector<2x8x8xf32>
    %116 = arith.truncf %115 : vector<2x8x8xf32> to vector<2x8x8xbf16>
    %117 = arith.truncf %100 : vector<2x8x32xf32> to vector<2x8x32xbf16>
    "tpu.trace_start"() <{level = 10 : i32, message = "bnm,bmd->bnd"}> : () -> ()
    %cst_34 = arith.constant dense<0.000000e+00> : vector<2x8x32xf32>
    %118 = tpu.matmul %116, %117, %cst_34 {dimension_numbers = #tpu.dot_dimension_numbers<[2], [1], [1], [2], [0, 0, 0, 1, 1, 2], [0], [0]>} : vector<2x8x8xbf16>, vector<2x8x32xbf16>, vector<2x8x32xf32> -> vector<2x8x32xf32>
    "tpu.trace_stop"() : () -> ()
    %119 = vector.shape_cast %118 : vector<2x8x32xf32> to vector<16x32xf32>
    %120 = arith.truncf %119 : vector<16x32xf32> to vector<16x32xbf16>
    %121 = vector.extract_strided_slice %37 {offsets = [64, 0], sizes = [32, 128], strides = [1, 1]} : vector<128x128xbf16> to vector<32x128xbf16>
    %cst_35 = arith.constant dense<0.000000e+00> : vector<16x128xf32>
    %122 = tpu.matmul %120, %121, %cst_35 {dimension_numbers = #tpu.dot_dimension_numbers<[1], [0], [0], [1], [0, 0, 1, 1], [], []>} : vector<16x32xbf16>, vector<32x128xbf16>, vector<16x128xf32> -> vector<16x128xf32>
    %123 = arith.addf %94, %122 : vector<16x128xf32>
    %124 = vector.extract_strided_slice %35 {offsets = [0, 96], sizes = [16, 32], strides = [1, 1]} : vector<16x384xf32> to vector<16x32xf32>
    %125 = vector.shape_cast %124 : vector<16x32xf32> to vector<2x8x32xf32>
    %126 = vector.extract_strided_slice %35 {offsets = [0, 224], sizes = [16, 32], strides = [1, 1]} : vector<16x384xf32> to vector<16x32xf32>
    %127 = vector.shape_cast %126 : vector<16x32xf32> to vector<2x8x32xf32>
    %128 = vector.extract_strided_slice %35 {offsets = [0, 352], sizes = [16, 32], strides = [1, 1]} : vector<16x384xf32> to vector<16x32xf32>
    %129 = vector.shape_cast %128 : vector<16x32xf32> to vector<2x8x32xf32>
    %130 = arith.truncf %125 : vector<2x8x32xf32> to vector<2x8x32xbf16>
    %131 = arith.truncf %127 : vector<2x8x32xf32> to vector<2x8x32xbf16>
    "tpu.trace_start"() <{level = 10 : i32, message = "bnd,bmd->bnm"}> : () -> ()
    %cst_36 = arith.constant dense<0.000000e+00> : vector<2x8x8xf32>
    %132 = tpu.matmul %130, %131, %cst_36 {dimension_numbers = #tpu.dot_dimension_numbers<[2], [2], [1], [1], [0, 0, 0, 1, 1, 1], [0], [0]>} : vector<2x8x32xbf16>, vector<2x8x32xbf16>, vector<2x8x8xf32> -> vector<2x8x8xf32>
    "tpu.trace_stop"() : () -> ()
    %cst_37 = arith.constant 0.176776692 : f32
    %133 = vector.broadcast %cst_37 : f32 to vector<2x8x8xf32>
    %134 = arith.mulf %132, %133 : vector<2x8x8xf32>
    %cst_38 = arith.constant dense<0xFF800000> : vector<2x8xf32>
    %135 = vector.multi_reduction <maximumf>, %134, %cst_38 [2] : vector<2x8x8xf32> to vector<2x8xf32>
    %136 = vector.shape_cast %135 : vector<2x8xf32> to vector<2x8x1xf32>
    %137 = vector.broadcast %136 : vector<2x8x1xf32> to vector<2x8x8xf32>
    %138 = arith.subf %134, %137 : vector<2x8x8xf32>
    %139 = math.exp %138 : vector<2x8x8xf32>
    %cst_39 = arith.constant dense<0.000000e+00> : vector<2x8xf32>
    %140 = vector.multi_reduction <add>, %139, %cst_39 [2] : vector<2x8x8xf32> to vector<2x8xf32>
    %141 = vector.shape_cast %140 : vector<2x8xf32> to vector<2x8x1xf32>
    %142 = tpu.reciprocal %141 {approx = true} : vector<2x8x1xf32> -> vector<2x8x1xf32>
    %143 = vector.broadcast %142 : vector<2x8x1xf32> to vector<2x8x8xf32>
    %144 = arith.mulf %139, %143 : vector<2x8x8xf32>
    %145 = arith.truncf %144 : vector<2x8x8xf32> to vector<2x8x8xbf16>
    %146 = arith.truncf %129 : vector<2x8x32xf32> to vector<2x8x32xbf16>
    "tpu.trace_start"() <{level = 10 : i32, message = "bnm,bmd->bnd"}> : () -> ()
    %cst_40 = arith.constant dense<0.000000e+00> : vector<2x8x32xf32>
    %147 = tpu.matmul %145, %146, %cst_40 {dimension_numbers = #tpu.dot_dimension_numbers<[2], [1], [1], [2], [0, 0, 0, 1, 1, 2], [0], [0]>} : vector<2x8x8xbf16>, vector<2x8x32xbf16>, vector<2x8x32xf32> -> vector<2x8x32xf32>
    "tpu.trace_stop"() : () -> ()
    %148 = vector.shape_cast %147 : vector<2x8x32xf32> to vector<16x32xf32>
    %149 = arith.truncf %148 : vector<16x32xf32> to vector<16x32xbf16>
    %150 = vector.extract_strided_slice %37 {offsets = [96, 0], sizes = [32, 128], strides = [1, 1]} : vector<128x128xbf16> to vector<32x128xbf16>
    %cst_41 = arith.constant dense<0.000000e+00> : vector<16x128xf32>
    %151 = tpu.matmul %149, %150, %cst_41 {dimension_numbers = #tpu.dot_dimension_numbers<[1], [0], [0], [1], [0, 0, 1, 1], [], []>} : vector<16x32xbf16>, vector<32x128xbf16>, vector<16x128xf32> -> vector<16x128xf32>
    %152 = arith.addf %123, %151 : vector<16x128xf32>
    %153 = arith.addf %5, %152 : vector<16x128xf32>
    %c0_42 = arith.constant 0 : index
    %c0_43 = arith.constant 0 : index
    %c0_44 = arith.constant 0 : index
    %154 = vector.load %arg6[%c0_42, %c0_43, %c0_44] : memref<2x1x128xf32, #tpu.memory_space<vmem>>, vector<1x1x128xf32>
    %155 = vector.shape_cast %154 : vector<1x1x128xf32> to vector<1x128xf32>
    %156 = vector.broadcast %155 : vector<1x128xf32> to vector<16x128xf32>
    %157 = arith.addf %153, %156 : vector<16x128xf32>
    %c0_45 = arith.constant 0 : index
    %c0_46 = arith.constant 0 : index
    %c0_47 = arith.constant 0 : index
    %158 = vector.load %arg7[%c0_45, %c0_46, %c0_47] : memref<2x1x128xf32, #tpu.memory_space<vmem>>, vector<1x1x128xf32>
    %159 = vector.shape_cast %158 : vector<1x1x128xf32> to vector<1x128xf32>
    %c0_48 = arith.constant 0 : index
    %c0_49 = arith.constant 0 : index
    %c0_50 = arith.constant 0 : index
    %160 = vector.load %arg8[%c0_48, %c0_49, %c0_50] : memref<2x1x128xf32, #tpu.memory_space<vmem>>, vector<1x1x128xf32>
    %161 = vector.shape_cast %160 : vector<1x1x128xf32> to vector<1x128xf32>
    %cst_51 = arith.constant dense<0.000000e+00> : vector<16xf32>
    %162 = vector.multi_reduction <add>, %157, %cst_51 [1] : vector<16x128xf32> to vector<16xf32>
    %163 = vector.shape_cast %162 : vector<16xf32> to vector<16x1xf32>
    %cst_52 = arith.constant 0.010416667 : f32
    %164 = vector.broadcast %cst_52 : f32 to vector<16x1xf32>
    %165 = arith.mulf %163, %164 : vector<16x1xf32>
    %166 = vector.broadcast %165 : vector<16x1xf32> to vector<16x128xf32>
    %167 = arith.subf %157, %166 : vector<16x128xf32>
    %168 = vector.broadcast %4 : vector<1x128xf32> to vector<16x128xf32>
    %169 = arith.mulf %167, %168 : vector<16x128xf32>
    %170 = arith.mulf %169, %169 : vector<16x128xf32>
    %cst_53 = arith.constant dense<0.000000e+00> : vector<16xf32>
    %171 = vector.multi_reduction <add>, %170, %cst_53 [1] : vector<16x128xf32> to vector<16xf32>
    %172 = vector.shape_cast %171 : vector<16xf32> to vector<16x1xf32>
    %cst_54 = arith.constant 0.010416667 : f32
    %173 = vector.broadcast %cst_54 : f32 to vector<16x1xf32>
    %174 = arith.mulf %172, %173 : vector<16x1xf32>
    %cst_55 = arith.constant 9.99999974E-6 : f32
    %175 = vector.broadcast %cst_55 : f32 to vector<16x1xf32>
    %176 = arith.addf %174, %175 : vector<16x1xf32>
    %177 = math.rsqrt %176 : vector<16x1xf32>
    %178 = vector.broadcast %177 : vector<16x1xf32> to vector<16x128xf32>
    %179 = arith.mulf %169, %178 : vector<16x128xf32>
    %180 = vector.broadcast %159 : vector<1x128xf32> to vector<16x128xf32>
    %181 = arith.mulf %179, %180 : vector<16x128xf32>
    %182 = vector.broadcast %161 : vector<1x128xf32> to vector<16x128xf32>
    %183 = arith.addf %181, %182 : vector<16x128xf32>
    %184 = arith.truncf %183 : vector<16x128xf32> to vector<16x128xbf16>
    %c0_56 = arith.constant 0 : index
    %c0_57 = arith.constant 0 : index
    %c0_58 = arith.constant 0 : index
    %185 = vector.load %arg9[%c0_56, %c0_57, %c0_58] : memref<2x128x256xbf16, #tpu.memory_space<vmem>>, vector<1x128x256xbf16>
    %186 = vector.shape_cast %185 : vector<1x128x256xbf16> to vector<128x256xbf16>
    %cst_59 = arith.constant dense<0.000000e+00> : vector<16x256xf32>
    %187 = tpu.matmul %184, %186, %cst_59 {dimension_numbers = #tpu.dot_dimension_numbers<[1], [0], [0], [1], [0, 0, 1, 1], [], []>} : vector<16x128xbf16>, vector<128x256xbf16>, vector<16x256xf32> -> vector<16x256xf32>
    %c0_60 = arith.constant 0 : index
    %c0_61 = arith.constant 0 : index
    %c0_62 = arith.constant 0 : index
    %188 = vector.load %arg10[%c0_60, %c0_61, %c0_62] : memref<2x1x256xf32, #tpu.memory_space<vmem>>, vector<1x1x256xf32>
    %189 = vector.shape_cast %188 : vector<1x1x256xf32> to vector<1x256xf32>
    %190 = vector.broadcast %189 : vector<1x256xf32> to vector<16x256xf32>
    %191 = arith.addf %187, %190 : vector<16x256xf32>
    %192 = math.tanh %191 : vector<16x256xf32>
    %193 = arith.truncf %192 : vector<16x256xf32> to vector<16x256xbf16>
    %c0_63 = arith.constant 0 : index
    %c0_64 = arith.constant 0 : index
    %c0_65 = arith.constant 0 : index
    %194 = vector.load %arg11[%c0_63, %c0_64, %c0_65] : memref<2x256x128xbf16, #tpu.memory_space<vmem>>, vector<1x256x128xbf16>
    %195 = vector.shape_cast %194 : vector<1x256x128xbf16> to vector<256x128xbf16>
    %cst_66 = arith.constant dense<0.000000e+00> : vector<16x128xf32>
    %196 = tpu.matmul %193, %195, %cst_66 {dimension_numbers = #tpu.dot_dimension_numbers<[1], [0], [0], [1], [0, 0, 1, 1], [], []>} : vector<16x256xbf16>, vector<256x128xbf16>, vector<16x128xf32> -> vector<16x128xf32>
    %c0_67 = arith.constant 0 : index
    %c0_68 = arith.constant 0 : index
    %c0_69 = arith.constant 0 : index
    %197 = vector.load %arg12[%c0_67, %c0_68, %c0_69] : memref<2x1x128xf32, #tpu.memory_space<vmem>>, vector<1x1x128xf32>
    %198 = vector.shape_cast %197 : vector<1x1x128xf32> to vector<1x128xf32>
    %199 = vector.broadcast %198 : vector<1x128xf32> to vector<16x128xf32>
    %200 = arith.addf %196, %199 : vector<16x128xf32>
    %201 = arith.addf %157, %200 : vector<16x128xf32>
    %c1 = arith.constant 1 : index
    %c0_70 = arith.constant 0 : index
    %c0_71 = arith.constant 0 : index
    %202 = vector.load %arg2[%c1, %c0_70, %c0_71] : memref<2x1x128xf32, #tpu.memory_space<vmem>>, vector<1x1x128xf32>
    %203 = vector.shape_cast %202 : vector<1x1x128xf32> to vector<1x128xf32>
    %c1_72 = arith.constant 1 : index
    %c0_73 = arith.constant 0 : index
    %c0_74 = arith.constant 0 : index
    %204 = vector.load %arg3[%c1_72, %c0_73, %c0_74] : memref<2x1x128xf32, #tpu.memory_space<vmem>>, vector<1x1x128xf32>
    %205 = vector.shape_cast %204 : vector<1x1x128xf32> to vector<1x128xf32>
    %cst_75 = arith.constant dense<0.000000e+00> : vector<16xf32>
    %206 = vector.multi_reduction <add>, %201, %cst_75 [1] : vector<16x128xf32> to vector<16xf32>
    %207 = vector.shape_cast %206 : vector<16xf32> to vector<16x1xf32>
    %cst_76 = arith.constant 0.010416667 : f32
    %208 = vector.broadcast %cst_76 : f32 to vector<16x1xf32>
    %209 = arith.mulf %207, %208 : vector<16x1xf32>
    %210 = vector.broadcast %209 : vector<16x1xf32> to vector<16x128xf32>
    %211 = arith.subf %201, %210 : vector<16x128xf32>
    %212 = vector.broadcast %4 : vector<1x128xf32> to vector<16x128xf32>
    %213 = arith.mulf %211, %212 : vector<16x128xf32>
    %214 = arith.mulf %213, %213 : vector<16x128xf32>
    %cst_77 = arith.constant dense<0.000000e+00> : vector<16xf32>
    %215 = vector.multi_reduction <add>, %214, %cst_77 [1] : vector<16x128xf32> to vector<16xf32>
    %216 = vector.shape_cast %215 : vector<16xf32> to vector<16x1xf32>
    %cst_78 = arith.constant 0.010416667 : f32
    %217 = vector.broadcast %cst_78 : f32 to vector<16x1xf32>
    %218 = arith.mulf %216, %217 : vector<16x1xf32>
    %cst_79 = arith.constant 9.99999974E-6 : f32
    %219 = vector.broadcast %cst_79 : f32 to vector<16x1xf32>
    %220 = arith.addf %218, %219 : vector<16x1xf32>
    %221 = math.rsqrt %220 : vector<16x1xf32>
    %222 = vector.broadcast %221 : vector<16x1xf32> to vector<16x128xf32>
    %223 = arith.mulf %213, %222 : vector<16x128xf32>
    %224 = vector.broadcast %203 : vector<1x128xf32> to vector<16x128xf32>
    %225 = arith.mulf %223, %224 : vector<16x128xf32>
    %226 = vector.broadcast %205 : vector<1x128xf32> to vector<16x128xf32>
    %227 = arith.addf %225, %226 : vector<16x128xf32>
    %228 = arith.truncf %227 : vector<16x128xf32> to vector<16x128xbf16>
    %c1_80 = arith.constant 1 : index
    %c0_81 = arith.constant 0 : index
    %c0_82 = arith.constant 0 : index
    %229 = vector.load %arg4[%c1_80, %c0_81, %c0_82] : memref<2x128x384xbf16, #tpu.memory_space<vmem>>, vector<1x128x384xbf16>
    %230 = vector.shape_cast %229 : vector<1x128x384xbf16> to vector<128x384xbf16>
    %cst_83 = arith.constant dense<0.000000e+00> : vector<16x384xf32>
    %231 = tpu.matmul %228, %230, %cst_83 {dimension_numbers = #tpu.dot_dimension_numbers<[1], [0], [0], [1], [0, 0, 1, 1], [], []>} : vector<16x128xbf16>, vector<128x384xbf16>, vector<16x384xf32> -> vector<16x384xf32>
    %c1_84 = arith.constant 1 : index
    %c0_85 = arith.constant 0 : index
    %c0_86 = arith.constant 0 : index
    %232 = vector.load %arg5[%c1_84, %c0_85, %c0_86] : memref<2x128x128xbf16, #tpu.memory_space<vmem>>, vector<1x128x128xbf16>
    %233 = vector.shape_cast %232 : vector<1x128x128xbf16> to vector<128x128xbf16>
    %234 = vector.extract_strided_slice %231 {offsets = [0, 0], sizes = [16, 32], strides = [1, 1]} : vector<16x384xf32> to vector<16x32xf32>
    %235 = vector.shape_cast %234 : vector<16x32xf32> to vector<2x8x32xf32>
    %236 = vector.extract_strided_slice %231 {offsets = [0, 128], sizes = [16, 32], strides = [1, 1]} : vector<16x384xf32> to vector<16x32xf32>
    %237 = vector.shape_cast %236 : vector<16x32xf32> to vector<2x8x32xf32>
    %238 = vector.extract_strided_slice %231 {offsets = [0, 256], sizes = [16, 32], strides = [1, 1]} : vector<16x384xf32> to vector<16x32xf32>
    %239 = vector.shape_cast %238 : vector<16x32xf32> to vector<2x8x32xf32>
    %240 = arith.truncf %235 : vector<2x8x32xf32> to vector<2x8x32xbf16>
    %241 = arith.truncf %237 : vector<2x8x32xf32> to vector<2x8x32xbf16>
    "tpu.trace_start"() <{level = 10 : i32, message = "bnd,bmd->bnm"}> : () -> ()
    %cst_87 = arith.constant dense<0.000000e+00> : vector<2x8x8xf32>
    %242 = tpu.matmul %240, %241, %cst_87 {dimension_numbers = #tpu.dot_dimension_numbers<[2], [2], [1], [1], [0, 0, 0, 1, 1, 1], [0], [0]>} : vector<2x8x32xbf16>, vector<2x8x32xbf16>, vector<2x8x8xf32> -> vector<2x8x8xf32>
    "tpu.trace_stop"() : () -> ()
    %cst_88 = arith.constant 0.176776692 : f32
    %243 = vector.broadcast %cst_88 : f32 to vector<2x8x8xf32>
    %244 = arith.mulf %242, %243 : vector<2x8x8xf32>
    %cst_89 = arith.constant dense<0xFF800000> : vector<2x8xf32>
    %245 = vector.multi_reduction <maximumf>, %244, %cst_89 [2] : vector<2x8x8xf32> to vector<2x8xf32>
    %246 = vector.shape_cast %245 : vector<2x8xf32> to vector<2x8x1xf32>
    %247 = vector.broadcast %246 : vector<2x8x1xf32> to vector<2x8x8xf32>
    %248 = arith.subf %244, %247 : vector<2x8x8xf32>
    %249 = math.exp %248 : vector<2x8x8xf32>
    %cst_90 = arith.constant dense<0.000000e+00> : vector<2x8xf32>
    %250 = vector.multi_reduction <add>, %249, %cst_90 [2] : vector<2x8x8xf32> to vector<2x8xf32>
    %251 = vector.shape_cast %250 : vector<2x8xf32> to vector<2x8x1xf32>
    %252 = tpu.reciprocal %251 {approx = true} : vector<2x8x1xf32> -> vector<2x8x1xf32>
    %253 = vector.broadcast %252 : vector<2x8x1xf32> to vector<2x8x8xf32>
    %254 = arith.mulf %249, %253 : vector<2x8x8xf32>
    %255 = arith.truncf %254 : vector<2x8x8xf32> to vector<2x8x8xbf16>
    %256 = arith.truncf %239 : vector<2x8x32xf32> to vector<2x8x32xbf16>
    "tpu.trace_start"() <{level = 10 : i32, message = "bnm,bmd->bnd"}> : () -> ()
    %cst_91 = arith.constant dense<0.000000e+00> : vector<2x8x32xf32>
    %257 = tpu.matmul %255, %256, %cst_91 {dimension_numbers = #tpu.dot_dimension_numbers<[2], [1], [1], [2], [0, 0, 0, 1, 1, 2], [0], [0]>} : vector<2x8x8xbf16>, vector<2x8x32xbf16>, vector<2x8x32xf32> -> vector<2x8x32xf32>
    "tpu.trace_stop"() : () -> ()
    %258 = vector.shape_cast %257 : vector<2x8x32xf32> to vector<16x32xf32>
    %259 = arith.truncf %258 : vector<16x32xf32> to vector<16x32xbf16>
    %260 = vector.extract_strided_slice %233 {offsets = [0, 0], sizes = [32, 128], strides = [1, 1]} : vector<128x128xbf16> to vector<32x128xbf16>
    %cst_92 = arith.constant dense<0.000000e+00> : vector<16x128xf32>
    %261 = tpu.matmul %259, %260, %cst_92 {dimension_numbers = #tpu.dot_dimension_numbers<[1], [0], [0], [1], [0, 0, 1, 1], [], []>} : vector<16x32xbf16>, vector<32x128xbf16>, vector<16x128xf32> -> vector<16x128xf32>
    %262 = vector.extract_strided_slice %231 {offsets = [0, 32], sizes = [16, 32], strides = [1, 1]} : vector<16x384xf32> to vector<16x32xf32>
    %263 = vector.shape_cast %262 : vector<16x32xf32> to vector<2x8x32xf32>
    %264 = vector.extract_strided_slice %231 {offsets = [0, 160], sizes = [16, 32], strides = [1, 1]} : vector<16x384xf32> to vector<16x32xf32>
    %265 = vector.shape_cast %264 : vector<16x32xf32> to vector<2x8x32xf32>
    %266 = vector.extract_strided_slice %231 {offsets = [0, 288], sizes = [16, 32], strides = [1, 1]} : vector<16x384xf32> to vector<16x32xf32>
    %267 = vector.shape_cast %266 : vector<16x32xf32> to vector<2x8x32xf32>
    %268 = arith.truncf %263 : vector<2x8x32xf32> to vector<2x8x32xbf16>
    %269 = arith.truncf %265 : vector<2x8x32xf32> to vector<2x8x32xbf16>
    "tpu.trace_start"() <{level = 10 : i32, message = "bnd,bmd->bnm"}> : () -> ()
    %cst_93 = arith.constant dense<0.000000e+00> : vector<2x8x8xf32>
    %270 = tpu.matmul %268, %269, %cst_93 {dimension_numbers = #tpu.dot_dimension_numbers<[2], [2], [1], [1], [0, 0, 0, 1, 1, 1], [0], [0]>} : vector<2x8x32xbf16>, vector<2x8x32xbf16>, vector<2x8x8xf32> -> vector<2x8x8xf32>
    "tpu.trace_stop"() : () -> ()
    %cst_94 = arith.constant 0.176776692 : f32
    %271 = vector.broadcast %cst_94 : f32 to vector<2x8x8xf32>
    %272 = arith.mulf %270, %271 : vector<2x8x8xf32>
    %cst_95 = arith.constant dense<0xFF800000> : vector<2x8xf32>
    %273 = vector.multi_reduction <maximumf>, %272, %cst_95 [2] : vector<2x8x8xf32> to vector<2x8xf32>
    %274 = vector.shape_cast %273 : vector<2x8xf32> to vector<2x8x1xf32>
    %275 = vector.broadcast %274 : vector<2x8x1xf32> to vector<2x8x8xf32>
    %276 = arith.subf %272, %275 : vector<2x8x8xf32>
    %277 = math.exp %276 : vector<2x8x8xf32>
    %cst_96 = arith.constant dense<0.000000e+00> : vector<2x8xf32>
    %278 = vector.multi_reduction <add>, %277, %cst_96 [2] : vector<2x8x8xf32> to vector<2x8xf32>
    %279 = vector.shape_cast %278 : vector<2x8xf32> to vector<2x8x1xf32>
    %280 = tpu.reciprocal %279 {approx = true} : vector<2x8x1xf32> -> vector<2x8x1xf32>
    %281 = vector.broadcast %280 : vector<2x8x1xf32> to vector<2x8x8xf32>
    %282 = arith.mulf %277, %281 : vector<2x8x8xf32>
    %283 = arith.truncf %282 : vector<2x8x8xf32> to vector<2x8x8xbf16>
    %284 = arith.truncf %267 : vector<2x8x32xf32> to vector<2x8x32xbf16>
    "tpu.trace_start"() <{level = 10 : i32, message = "bnm,bmd->bnd"}> : () -> ()
    %cst_97 = arith.constant dense<0.000000e+00> : vector<2x8x32xf32>
    %285 = tpu.matmul %283, %284, %cst_97 {dimension_numbers = #tpu.dot_dimension_numbers<[2], [1], [1], [2], [0, 0, 0, 1, 1, 2], [0], [0]>} : vector<2x8x8xbf16>, vector<2x8x32xbf16>, vector<2x8x32xf32> -> vector<2x8x32xf32>
    "tpu.trace_stop"() : () -> ()
    %286 = vector.shape_cast %285 : vector<2x8x32xf32> to vector<16x32xf32>
    %287 = arith.truncf %286 : vector<16x32xf32> to vector<16x32xbf16>
    %288 = vector.extract_strided_slice %233 {offsets = [32, 0], sizes = [32, 128], strides = [1, 1]} : vector<128x128xbf16> to vector<32x128xbf16>
    %cst_98 = arith.constant dense<0.000000e+00> : vector<16x128xf32>
    %289 = tpu.matmul %287, %288, %cst_98 {dimension_numbers = #tpu.dot_dimension_numbers<[1], [0], [0], [1], [0, 0, 1, 1], [], []>} : vector<16x32xbf16>, vector<32x128xbf16>, vector<16x128xf32> -> vector<16x128xf32>
    %290 = arith.addf %261, %289 : vector<16x128xf32>
    %291 = vector.extract_strided_slice %231 {offsets = [0, 64], sizes = [16, 32], strides = [1, 1]} : vector<16x384xf32> to vector<16x32xf32>
    %292 = vector.shape_cast %291 : vector<16x32xf32> to vector<2x8x32xf32>
    %293 = vector.extract_strided_slice %231 {offsets = [0, 192], sizes = [16, 32], strides = [1, 1]} : vector<16x384xf32> to vector<16x32xf32>
    %294 = vector.shape_cast %293 : vector<16x32xf32> to vector<2x8x32xf32>
    %295 = vector.extract_strided_slice %231 {offsets = [0, 320], sizes = [16, 32], strides = [1, 1]} : vector<16x384xf32> to vector<16x32xf32>
    %296 = vector.shape_cast %295 : vector<16x32xf32> to vector<2x8x32xf32>
    %297 = arith.truncf %292 : vector<2x8x32xf32> to vector<2x8x32xbf16>
    %298 = arith.truncf %294 : vector<2x8x32xf32> to vector<2x8x32xbf16>
    "tpu.trace_start"() <{level = 10 : i32, message = "bnd,bmd->bnm"}> : () -> ()
    %cst_99 = arith.constant dense<0.000000e+00> : vector<2x8x8xf32>
    %299 = tpu.matmul %297, %298, %cst_99 {dimension_numbers = #tpu.dot_dimension_numbers<[2], [2], [1], [1], [0, 0, 0, 1, 1, 1], [0], [0]>} : vector<2x8x32xbf16>, vector<2x8x32xbf16>, vector<2x8x8xf32> -> vector<2x8x8xf32>
    "tpu.trace_stop"() : () -> ()
    %cst_100 = arith.constant 0.176776692 : f32
    %300 = vector.broadcast %cst_100 : f32 to vector<2x8x8xf32>
    %301 = arith.mulf %299, %300 : vector<2x8x8xf32>
    %cst_101 = arith.constant dense<0xFF800000> : vector<2x8xf32>
    %302 = vector.multi_reduction <maximumf>, %301, %cst_101 [2] : vector<2x8x8xf32> to vector<2x8xf32>
    %303 = vector.shape_cast %302 : vector<2x8xf32> to vector<2x8x1xf32>
    %304 = vector.broadcast %303 : vector<2x8x1xf32> to vector<2x8x8xf32>
    %305 = arith.subf %301, %304 : vector<2x8x8xf32>
    %306 = math.exp %305 : vector<2x8x8xf32>
    %cst_102 = arith.constant dense<0.000000e+00> : vector<2x8xf32>
    %307 = vector.multi_reduction <add>, %306, %cst_102 [2] : vector<2x8x8xf32> to vector<2x8xf32>
    %308 = vector.shape_cast %307 : vector<2x8xf32> to vector<2x8x1xf32>
    %309 = tpu.reciprocal %308 {approx = true} : vector<2x8x1xf32> -> vector<2x8x1xf32>
    %310 = vector.broadcast %309 : vector<2x8x1xf32> to vector<2x8x8xf32>
    %311 = arith.mulf %306, %310 : vector<2x8x8xf32>
    %312 = arith.truncf %311 : vector<2x8x8xf32> to vector<2x8x8xbf16>
    %313 = arith.truncf %296 : vector<2x8x32xf32> to vector<2x8x32xbf16>
    "tpu.trace_start"() <{level = 10 : i32, message = "bnm,bmd->bnd"}> : () -> ()
    %cst_103 = arith.constant dense<0.000000e+00> : vector<2x8x32xf32>
    %314 = tpu.matmul %312, %313, %cst_103 {dimension_numbers = #tpu.dot_dimension_numbers<[2], [1], [1], [2], [0, 0, 0, 1, 1, 2], [0], [0]>} : vector<2x8x8xbf16>, vector<2x8x32xbf16>, vector<2x8x32xf32> -> vector<2x8x32xf32>
    "tpu.trace_stop"() : () -> ()
    %315 = vector.shape_cast %314 : vector<2x8x32xf32> to vector<16x32xf32>
    %316 = arith.truncf %315 : vector<16x32xf32> to vector<16x32xbf16>
    %317 = vector.extract_strided_slice %233 {offsets = [64, 0], sizes = [32, 128], strides = [1, 1]} : vector<128x128xbf16> to vector<32x128xbf16>
    %cst_104 = arith.constant dense<0.000000e+00> : vector<16x128xf32>
    %318 = tpu.matmul %316, %317, %cst_104 {dimension_numbers = #tpu.dot_dimension_numbers<[1], [0], [0], [1], [0, 0, 1, 1], [], []>} : vector<16x32xbf16>, vector<32x128xbf16>, vector<16x128xf32> -> vector<16x128xf32>
    %319 = arith.addf %290, %318 : vector<16x128xf32>
    %320 = vector.extract_strided_slice %231 {offsets = [0, 96], sizes = [16, 32], strides = [1, 1]} : vector<16x384xf32> to vector<16x32xf32>
    %321 = vector.shape_cast %320 : vector<16x32xf32> to vector<2x8x32xf32>
    %322 = vector.extract_strided_slice %231 {offsets = [0, 224], sizes = [16, 32], strides = [1, 1]} : vector<16x384xf32> to vector<16x32xf32>
    %323 = vector.shape_cast %322 : vector<16x32xf32> to vector<2x8x32xf32>
    %324 = vector.extract_strided_slice %231 {offsets = [0, 352], sizes = [16, 32], strides = [1, 1]} : vector<16x384xf32> to vector<16x32xf32>
    %325 = vector.shape_cast %324 : vector<16x32xf32> to vector<2x8x32xf32>
    %326 = arith.truncf %321 : vector<2x8x32xf32> to vector<2x8x32xbf16>
    %327 = arith.truncf %323 : vector<2x8x32xf32> to vector<2x8x32xbf16>
    "tpu.trace_start"() <{level = 10 : i32, message = "bnd,bmd->bnm"}> : () -> ()
    %cst_105 = arith.constant dense<0.000000e+00> : vector<2x8x8xf32>
    %328 = tpu.matmul %326, %327, %cst_105 {dimension_numbers = #tpu.dot_dimension_numbers<[2], [2], [1], [1], [0, 0, 0, 1, 1, 1], [0], [0]>} : vector<2x8x32xbf16>, vector<2x8x32xbf16>, vector<2x8x8xf32> -> vector<2x8x8xf32>
    "tpu.trace_stop"() : () -> ()
    %cst_106 = arith.constant 0.176776692 : f32
    %329 = vector.broadcast %cst_106 : f32 to vector<2x8x8xf32>
    %330 = arith.mulf %328, %329 : vector<2x8x8xf32>
    %cst_107 = arith.constant dense<0xFF800000> : vector<2x8xf32>
    %331 = vector.multi_reduction <maximumf>, %330, %cst_107 [2] : vector<2x8x8xf32> to vector<2x8xf32>
    %332 = vector.shape_cast %331 : vector<2x8xf32> to vector<2x8x1xf32>
    %333 = vector.broadcast %332 : vector<2x8x1xf32> to vector<2x8x8xf32>
    %334 = arith.subf %330, %333 : vector<2x8x8xf32>
    %335 = math.exp %334 : vector<2x8x8xf32>
    %cst_108 = arith.constant dense<0.000000e+00> : vector<2x8xf32>
    %336 = vector.multi_reduction <add>, %335, %cst_108 [2] : vector<2x8x8xf32> to vector<2x8xf32>
    %337 = vector.shape_cast %336 : vector<2x8xf32> to vector<2x8x1xf32>
    %338 = tpu.reciprocal %337 {approx = true} : vector<2x8x1xf32> -> vector<2x8x1xf32>
    %339 = vector.broadcast %338 : vector<2x8x1xf32> to vector<2x8x8xf32>
    %340 = arith.mulf %335, %339 : vector<2x8x8xf32>
    %341 = arith.truncf %340 : vector<2x8x8xf32> to vector<2x8x8xbf16>
    %342 = arith.truncf %325 : vector<2x8x32xf32> to vector<2x8x32xbf16>
    "tpu.trace_start"() <{level = 10 : i32, message = "bnm,bmd->bnd"}> : () -> ()
    %cst_109 = arith.constant dense<0.000000e+00> : vector<2x8x32xf32>
    %343 = tpu.matmul %341, %342, %cst_109 {dimension_numbers = #tpu.dot_dimension_numbers<[2], [1], [1], [2], [0, 0, 0, 1, 1, 2], [0], [0]>} : vector<2x8x8xbf16>, vector<2x8x32xbf16>, vector<2x8x32xf32> -> vector<2x8x32xf32>
    "tpu.trace_stop"() : () -> ()
    %344 = vector.shape_cast %343 : vector<2x8x32xf32> to vector<16x32xf32>
    %345 = arith.truncf %344 : vector<16x32xf32> to vector<16x32xbf16>
    %346 = vector.extract_strided_slice %233 {offsets = [96, 0], sizes = [32, 128], strides = [1, 1]} : vector<128x128xbf16> to vector<32x128xbf16>
    %cst_110 = arith.constant dense<0.000000e+00> : vector<16x128xf32>
    %347 = tpu.matmul %345, %346, %cst_110 {dimension_numbers = #tpu.dot_dimension_numbers<[1], [0], [0], [1], [0, 0, 1, 1], [], []>} : vector<16x32xbf16>, vector<32x128xbf16>, vector<16x128xf32> -> vector<16x128xf32>
    %348 = arith.addf %319, %347 : vector<16x128xf32>
    %349 = arith.addf %201, %348 : vector<16x128xf32>
    %c1_111 = arith.constant 1 : index
    %c0_112 = arith.constant 0 : index
    %c0_113 = arith.constant 0 : index
    %350 = vector.load %arg6[%c1_111, %c0_112, %c0_113] : memref<2x1x128xf32, #tpu.memory_space<vmem>>, vector<1x1x128xf32>
    %351 = vector.shape_cast %350 : vector<1x1x128xf32> to vector<1x128xf32>
    %352 = vector.broadcast %351 : vector<1x128xf32> to vector<16x128xf32>
    %353 = arith.addf %349, %352 : vector<16x128xf32>
    %c1_114 = arith.constant 1 : index
    %c0_115 = arith.constant 0 : index
    %c0_116 = arith.constant 0 : index
    %354 = vector.load %arg7[%c1_114, %c0_115, %c0_116] : memref<2x1x128xf32, #tpu.memory_space<vmem>>, vector<1x1x128xf32>
    %355 = vector.shape_cast %354 : vector<1x1x128xf32> to vector<1x128xf32>
    %c1_117 = arith.constant 1 : index
    %c0_118 = arith.constant 0 : index
    %c0_119 = arith.constant 0 : index
    %356 = vector.load %arg8[%c1_117, %c0_118, %c0_119] : memref<2x1x128xf32, #tpu.memory_space<vmem>>, vector<1x1x128xf32>
    %357 = vector.shape_cast %356 : vector<1x1x128xf32> to vector<1x128xf32>
    %cst_120 = arith.constant dense<0.000000e+00> : vector<16xf32>
    %358 = vector.multi_reduction <add>, %353, %cst_120 [1] : vector<16x128xf32> to vector<16xf32>
    %359 = vector.shape_cast %358 : vector<16xf32> to vector<16x1xf32>
    %cst_121 = arith.constant 0.010416667 : f32
    %360 = vector.broadcast %cst_121 : f32 to vector<16x1xf32>
    %361 = arith.mulf %359, %360 : vector<16x1xf32>
    %362 = vector.broadcast %361 : vector<16x1xf32> to vector<16x128xf32>
    %363 = arith.subf %353, %362 : vector<16x128xf32>
    %364 = vector.broadcast %4 : vector<1x128xf32> to vector<16x128xf32>
    %365 = arith.mulf %363, %364 : vector<16x128xf32>
    %366 = arith.mulf %365, %365 : vector<16x128xf32>
    %cst_122 = arith.constant dense<0.000000e+00> : vector<16xf32>
    %367 = vector.multi_reduction <add>, %366, %cst_122 [1] : vector<16x128xf32> to vector<16xf32>
    %368 = vector.shape_cast %367 : vector<16xf32> to vector<16x1xf32>
    %cst_123 = arith.constant 0.010416667 : f32
    %369 = vector.broadcast %cst_123 : f32 to vector<16x1xf32>
    %370 = arith.mulf %368, %369 : vector<16x1xf32>
    %cst_124 = arith.constant 9.99999974E-6 : f32
    %371 = vector.broadcast %cst_124 : f32 to vector<16x1xf32>
    %372 = arith.addf %370, %371 : vector<16x1xf32>
    %373 = math.rsqrt %372 : vector<16x1xf32>
    %374 = vector.broadcast %373 : vector<16x1xf32> to vector<16x128xf32>
    %375 = arith.mulf %365, %374 : vector<16x128xf32>
    %376 = vector.broadcast %355 : vector<1x128xf32> to vector<16x128xf32>
    %377 = arith.mulf %375, %376 : vector<16x128xf32>
    %378 = vector.broadcast %357 : vector<1x128xf32> to vector<16x128xf32>
    %379 = arith.addf %377, %378 : vector<16x128xf32>
    %380 = arith.truncf %379 : vector<16x128xf32> to vector<16x128xbf16>
    %c1_125 = arith.constant 1 : index
    %c0_126 = arith.constant 0 : index
    %c0_127 = arith.constant 0 : index
    %381 = vector.load %arg9[%c1_125, %c0_126, %c0_127] : memref<2x128x256xbf16, #tpu.memory_space<vmem>>, vector<1x128x256xbf16>
    %382 = vector.shape_cast %381 : vector<1x128x256xbf16> to vector<128x256xbf16>
    %cst_128 = arith.constant dense<0.000000e+00> : vector<16x256xf32>
    %383 = tpu.matmul %380, %382, %cst_128 {dimension_numbers = #tpu.dot_dimension_numbers<[1], [0], [0], [1], [0, 0, 1, 1], [], []>} : vector<16x128xbf16>, vector<128x256xbf16>, vector<16x256xf32> -> vector<16x256xf32>
    %c1_129 = arith.constant 1 : index
    %c0_130 = arith.constant 0 : index
    %c0_131 = arith.constant 0 : index
    %384 = vector.load %arg10[%c1_129, %c0_130, %c0_131] : memref<2x1x256xf32, #tpu.memory_space<vmem>>, vector<1x1x256xf32>
    %385 = vector.shape_cast %384 : vector<1x1x256xf32> to vector<1x256xf32>
    %386 = vector.broadcast %385 : vector<1x256xf32> to vector<16x256xf32>
    %387 = arith.addf %383, %386 : vector<16x256xf32>
    %388 = math.tanh %387 : vector<16x256xf32>
    %389 = arith.truncf %388 : vector<16x256xf32> to vector<16x256xbf16>
    %c1_132 = arith.constant 1 : index
    %c0_133 = arith.constant 0 : index
    %c0_134 = arith.constant 0 : index
    %390 = vector.load %arg11[%c1_132, %c0_133, %c0_134] : memref<2x256x128xbf16, #tpu.memory_space<vmem>>, vector<1x256x128xbf16>
    %391 = vector.shape_cast %390 : vector<1x256x128xbf16> to vector<256x128xbf16>
    %cst_135 = arith.constant dense<0.000000e+00> : vector<16x128xf32>
    %392 = tpu.matmul %389, %391, %cst_135 {dimension_numbers = #tpu.dot_dimension_numbers<[1], [0], [0], [1], [0, 0, 1, 1], [], []>} : vector<16x256xbf16>, vector<256x128xbf16>, vector<16x128xf32> -> vector<16x128xf32>
    %c1_136 = arith.constant 1 : index
    %c0_137 = arith.constant 0 : index
    %c0_138 = arith.constant 0 : index
    %393 = vector.load %arg12[%c1_136, %c0_137, %c0_138] : memref<2x1x128xf32, #tpu.memory_space<vmem>>, vector<1x1x128xf32>
    %394 = vector.shape_cast %393 : vector<1x1x128xf32> to vector<1x128xf32>
    %395 = vector.broadcast %394 : vector<1x128xf32> to vector<16x128xf32>
    %396 = arith.addf %392, %395 : vector<16x128xf32>
    %397 = arith.addf %353, %396 : vector<16x128xf32>
    %c0_139 = arith.constant 0 : index
    %c0_140 = arith.constant 0 : index
    %398 = vector.load %arg13[%c0_139, %c0_140] : memref<1x128xf32, #tpu.memory_space<vmem>>, vector<1x128xf32>
    %c0_141 = arith.constant 0 : index
    %c0_142 = arith.constant 0 : index
    %399 = vector.load %arg14[%c0_141, %c0_142] : memref<1x128xf32, #tpu.memory_space<vmem>>, vector<1x128xf32>
    %cst_143 = arith.constant dense<0.000000e+00> : vector<16xf32>
    %400 = vector.multi_reduction <add>, %397, %cst_143 [1] : vector<16x128xf32> to vector<16xf32>
    %401 = vector.shape_cast %400 : vector<16xf32> to vector<16x1xf32>
    %cst_144 = arith.constant 0.010416667 : f32
    %402 = vector.broadcast %cst_144 : f32 to vector<16x1xf32>
    %403 = arith.mulf %401, %402 : vector<16x1xf32>
    %404 = vector.broadcast %403 : vector<16x1xf32> to vector<16x128xf32>
    %405 = arith.subf %397, %404 : vector<16x128xf32>
    %406 = vector.broadcast %4 : vector<1x128xf32> to vector<16x128xf32>
    %407 = arith.mulf %405, %406 : vector<16x128xf32>
    %408 = arith.mulf %407, %407 : vector<16x128xf32>
    %cst_145 = arith.constant dense<0.000000e+00> : vector<16xf32>
    %409 = vector.multi_reduction <add>, %408, %cst_145 [1] : vector<16x128xf32> to vector<16xf32>
    %410 = vector.shape_cast %409 : vector<16xf32> to vector<16x1xf32>
    %cst_146 = arith.constant 0.010416667 : f32
    %411 = vector.broadcast %cst_146 : f32 to vector<16x1xf32>
    %412 = arith.mulf %410, %411 : vector<16x1xf32>
    %cst_147 = arith.constant 9.99999974E-6 : f32
    %413 = vector.broadcast %cst_147 : f32 to vector<16x1xf32>
    %414 = arith.addf %412, %413 : vector<16x1xf32>
    %415 = math.rsqrt %414 : vector<16x1xf32>
    %416 = vector.broadcast %415 : vector<16x1xf32> to vector<16x128xf32>
    %417 = arith.mulf %407, %416 : vector<16x128xf32>
    %418 = vector.broadcast %398 : vector<1x128xf32> to vector<16x128xf32>
    %419 = arith.mulf %417, %418 : vector<16x128xf32>
    %420 = vector.broadcast %399 : vector<1x128xf32> to vector<16x128xf32>
    %421 = arith.addf %419, %420 : vector<16x128xf32>
    %422 = arith.truncf %421 : vector<16x128xf32> to vector<16x128xbf16>
    %c0_148 = arith.constant 0 : index
    %c0_149 = arith.constant 0 : index
    %423 = vector.load %arg15[%c0_148, %c0_149] : memref<128x512xbf16, #tpu.memory_space<vmem>>, vector<128x512xbf16>
    %cst_150 = arith.constant dense<0.000000e+00> : vector<16x512xf32>
    %424 = tpu.matmul %422, %423, %cst_150 {dimension_numbers = #tpu.dot_dimension_numbers<[1], [0], [0], [1], [0, 0, 1, 1], [], []>} : vector<16x128xbf16>, vector<128x512xbf16>, vector<16x512xf32> -> vector<16x512xf32>
    %c0_151 = arith.constant 0 : index
    %c0_152 = arith.constant 0 : index
    %425 = vector.load %arg16[%c0_151, %c0_152] : memref<1x512xf32, #tpu.memory_space<vmem>>, vector<1x512xf32>
    %426 = vector.broadcast %425 : vector<1x512xf32> to vector<16x512xf32>
    %427 = arith.addf %424, %426 : vector<16x512xf32>
    %c0_153 = arith.constant 0 : index
    %c0_154 = arith.constant 0 : index
    %428 = vector.load %arg17[%c0_153, %c0_154] : memref<16x512xf32, #tpu.memory_space<vmem>>, vector<16x512xf32>
    tpu.vector_store %arg17[%c0_153, %c0_154], %427 {strides = array<i32>} : memref<16x512xf32, #tpu.memory_space<vmem>>, vector<16x512xf32>,
    return
  }
  func.func @transform_0(%arg0: i32) -> (i32, i32) {
    %c0_i32 = arith.constant 0 : i32
    %c0_i32_0 = arith.constant 0 : i32
    %c0_i32_1 = arith.constant 0 : i32
    return %c0_i32, %c0_i32_0 : i32, i32
  }
  func.func @transform_1(%arg0: i32) -> (i32, i32, i32) {
    %c0_i32 = arith.constant 0 : i32
    %c0_i32_0 = arith.constant 0 : i32
    %c0_i32_1 = arith.constant 0 : i32
    %c0_i32_2 = arith.constant 0 : i32
    return %c0_i32, %c0_i32_0, %c0_i32_1 : i32, i32, i32
  }
  func.func @transform_2(%arg0: i32) -> (i32, i32, i32) {
    %c0_i32 = arith.constant 0 : i32
    %c0_i32_0 = arith.constant 0 : i32
    %c0_i32_1 = arith.constant 0 : i32
    %c0_i32_2 = arith.constant 0 : i32
    return %c0_i32, %c0_i32_0, %c0_i32_1 : i32, i32, i32
  }
  func.func @transform_3(%arg0: i32) -> (i32, i32, i32) {
    %c0_i32 = arith.constant 0 : i32
    %c0_i32_0 = arith.constant 0 : i32
    %c0_i32_1 = arith.constant 0 : i32
    %c0_i32_2 = arith.constant 0 : i32
    return %c0_i32, %c0_i32_0, %c0_i32_1 : i32, i32, i32
  }
  func.func @transform_4(%arg0: i32) -> (i32, i32, i32) {
    %c0_i32 = arith.constant 0 : i32
    %c0_i32_0 = arith.constant 0 : i32
    %c0_i32_1 = arith.constant 0 : i32
    %c0_i32_2 = arith.constant 0 : i32
    return %c0_i32, %c0_i32_0, %c0_i32_1 : i32, i32, i32
  }
  func.func @transform_5(%arg0: i32) -> (i32, i32, i32) {
    %c0_i32 = arith.constant 0 : i32
    %c0_i32_0 = arith.constant 0 : i32
    %c0_i32_1 = arith.constant 0 : i32
    %c0_i32_2 = arith.constant 0 : i32
    return %c0_i32, %c0_i32_0, %c0_i32_1 : i32, i32, i32
  }
  func.func @transform_6(%arg0: i32) -> (i32, i32, i32) {
    %c0_i32 = arith.constant 0 : i32
    %c0_i32_0 = arith.constant 0 : i32
    %c0_i32_1 = arith.constant 0 : i32
    %c0_i32_2 = arith.constant 0 : i32
    return %c0_i32, %c0_i32_0, %c0_i32_1 : i32, i32, i32
  }
  func.func @transform_7(%arg0: i32) -> (i32, i32, i32) {
    %c0_i32 = arith.constant 0 : i32
    %c0_i32_0 = arith.constant 0 : i32
    %c0_i32_1 = arith.constant 0 : i32
    %c0_i32_2 = arith.constant 0 : i32
    return %c0_i32, %c0_i32_0, %c0_i32_1 : i32, i32, i32
  }
  func.func @transform_8(%arg0: i32) -> (i32, i32, i32) {
    %c0_i32 = arith.constant 0 : i32
    %c0_i32_0 = arith.constant 0 : i32
    %c0_i32_1 = arith.constant 0 : i32
    %c0_i32_2 = arith.constant 0 : i32
    return %c0_i32, %c0_i32_0, %c0_i32_1 : i32, i32, i32
  }
  func.func @transform_9(%arg0: i32) -> (i32, i32, i32) {
    %c0_i32 = arith.constant 0 : i32
    %c0_i32_0 = arith.constant 0 : i32
    %c0_i32_1 = arith.constant 0 : i32
    %c0_i32_2 = arith.constant 0 : i32
    return %c0_i32, %c0_i32_0, %c0_i32_1 : i32, i32, i32
  }
  func.func @transform_10(%arg0: i32) -> (i32, i32, i32) {
    %c0_i32 = arith.constant 0 : i32
    %c0_i32_0 = arith.constant 0 : i32
    %c0_i32_1 = arith.constant 0 : i32
    %c0_i32_2 = arith.constant 0 : i32
    return %c0_i32, %c0_i32_0, %c0_i32_1 : i32, i32, i32
  }
  func.func @transform_11(%arg0: i32) -> (i32, i32, i32) {
    %c0_i32 = arith.constant 0 : i32
    %c0_i32_0 = arith.constant 0 : i32
    %c0_i32_1 = arith.constant 0 : i32
    %c0_i32_2 = arith.constant 0 : i32
    return %c0_i32, %c0_i32_0, %c0_i32_1 : i32, i32, i32
  }
  func.func @transform_12(%arg0: i32) -> (i32, i32) {
    %c0_i32 = arith.constant 0 : i32
    %c0_i32_0 = arith.constant 0 : i32
    %c0_i32_1 = arith.constant 0 : i32
    return %c0_i32, %c0_i32_0 : i32, i32
  }
  func.func @transform_13(%arg0: i32) -> (i32, i32) {
    %c0_i32 = arith.constant 0 : i32
    %c0_i32_0 = arith.constant 0 : i32
    %c0_i32_1 = arith.constant 0 : i32
    return %c0_i32, %c0_i32_0 : i32, i32
  }
  func.func @transform_14(%arg0: i32) -> (i32, i32) {
    %c0_i32 = arith.constant 0 : i32
    %c0_i32_0 = arith.constant 0 : i32
    %c0_i32_1 = arith.constant 0 : i32
    return %c0_i32, %c0_i32_0 : i32, i32
  }
  func.func @transform_15(%arg0: i32) -> (i32, i32) {
    %c0_i32 = arith.constant 0 : i32
    %c0_i32_0 = arith.constant 0 : i32
    %c0_i32_1 = arith.constant 0 : i32
    return %c0_i32, %c0_i32_0 : i32, i32
  }
  func.func @transform_16(%arg0: i32) -> (i32, i32) {
    %c0_i32 = arith.constant 0 : i32
    %c0_i32_0 = arith.constant 0 : i32
    %c0_i32_1 = arith.constant 0 : i32
    return %c0_i32, %c0_i32_0 : i32, i32
  }
}

</mosaic_0001>

<llo_original>
// kernel: tpu_custom_call.1
$region0: #{tpu_custom_call.1}
  #allocation0 [shape = 'u32[]', space=smem, size = 0x4, offset = 0x4, fixed_abs, tag = 'smem constant byte address 0x4 - core index']
  #allocation1 [shape = 'u32[144,128]{1,0:T(1,128)}', space=vmem, size = 0x12000, scoped, tag = 'internal scratch']
  %s0 = inlined_call_operand.hbm [shape: f32[16,128], index: 0, kind: input, shape index: {}]
  %s1 = inlined_call_operand.hbm [shape: f32[2,1,128], index: 1, kind: input, shape index: {}]
  %s2 = inlined_call_operand.hbm [shape: f32[2,1,128], index: 2, kind: input, shape index: {}]
  %s3 = inlined_call_operand.hbm [shape: bf16[2,128,384], index: 3, kind: input, shape index: {}]
  %s4 = inlined_call_operand.hbm [shape: bf16[2,128,128], index: 4, kind: input, shape index: {}]
  %s5 = inlined_call_operand.hbm [shape: f32[2,1,128], index: 5, kind: input, shape index: {}]
  %s6 = inlined_call_operand.vmem [shape: f32[2,1,128], index: 6, kind: input, shape index: {}]
  %s7 = inlined_call_operand.vmem [shape: f32[2,1,128], index: 7, kind: input, shape index: {}]
  %s8 = inlined_call_operand.hbm [shape: bf16[2,128,256], index: 8, kind: input, shape index: {}]
  %s9 = inlined_call_operand.vmem [shape: f32[2,1,256], index: 9, kind: input, shape index: {}]
  %s10 = inlined_call_operand.hbm [shape: bf16[2,256,128], index: 10, kind: input, shape index: {}]
  %s11 = inlined_call_operand.vmem [shape: f32[2,1,128], index: 11, kind: input, shape index: {}]
  %s12 = inlined_call_operand.vmem [shape: f32[1,128], index: 12, kind: input, shape index: {}]
  %s13 = inlined_call_operand.vmem [shape: f32[1,128], index: 13, kind: input, shape index: {}]
  %s14 = inlined_call_operand.hbm [shape: bf16[128,512], index: 14, kind: input, shape index: {}]
  %s15 = inlined_call_operand.vmem [shape: f32[1,512], index: 15, kind: input, shape index: {}]
  %s16 = inlined_call_operand.hbm [shape: f32[16,512], index: 16, kind: output, shape index: {}]
  %s17 = sld [smem:[#allocation0]]
  $region110: #{tpu_custom_call.1} parent=0
    _
  %s19 = ssub.s32 1, %s17
  %s20 = scalar_select 0, %s19, %s17
  $region1: #{tpu_custom_call.1} parent=0
    #allocation2 [shape = 'u8[8192]{0}', space=vmem, size = 0x2000, scoped, tag = 'input window, operand 0, single buffered']
    #allocation3 [shape = 's32[1]{0}', space=sflag, size = 0x4, scoped, tag = 'scoped memory for tpu_custom_call.1']
    #allocation4 [shape = 's32[1]{0}', space=sflag, size = 0x4, scoped, tag = 'scoped memory for tpu_custom_call.1']
    #allocation5 [shape = 'u8[1024]{0}', space=vmem, size = 0x400, scoped, tag = 'input window, operand 1, single buffered']
    #allocation6 [shape = 's32[1]{0}', space=sflag, size = 0x4, scoped, tag = 'scoped memory for tpu_custom_call.1']
    #allocation7 [shape = 'u8[1024]{0}', space=vmem, size = 0x400, scoped, tag = 'input window, operand 2, single buffered']
    #allocation8 [shape = 'u8[196608]{0}', space=vmem, size = 0x30000, scoped, tag = 'input window, operand 3, single buffered']
    #allocation9 [shape = 's32[1]{0}', space=sflag, size = 0x4, scoped, tag = 'scoped memory for tpu_custom_call.1']
    #allocation10 [shape = 'u8[65536]{0}', space=vmem, size = 0x10000, scoped, tag = 'input window, operand 4, single buffered']
    #allocation11 [shape = 'u8[1024]{0}', space=vmem, size = 0x400, scoped, tag = 'input window, operand 5, single buffered']
    #allocation12 [shape = 's32[1]{0}', space=sflag, size = 0x4, scoped, tag = 'scoped memory for tpu_custom_call.1']
    #allocation13 [shape = 'u8[131072]{0}', space=vmem, size = 0x20000, scoped, tag = 'input window, operand 8, single buffered']
    #allocation14 [shape = 'u8[131072]{0}', space=vmem, size = 0x20000, scoped, tag = 'input window, operand 10, single buffered']
    #allocation15 [shape = 's32[1]{0}', space=sflag, size = 0x4, scoped, tag = 'scoped memory for tpu_custom_call.1']
    #allocation16 [shape = 'u8[131072]{0}', space=vmem, size = 0x20000, scoped, tag = 'input window, operand 14, single buffered']
    #allocation17 [shape = 'u8[32768]{0}', space=vmem, size = 0x8000, scoped, tag = 'output window, operand 0, single buffered']
    %21 = vsyncpa [#allocation3], 0
    %22 = vsyncpa [#allocation6], 0
    %23 = vsyncpa [#allocation9], 0
    %24 = vsyncpa [#allocation12], 0
    %25 = vsyncpa [#allocation15], 0
    %26 = vsyncpa [#allocation4], 0
    // Predicated region
    $region2: #{tpu_custom_call.1} parent=1 // pred_check
      _
    $region3: #{tpu_custom_call.1} parent=1 // pred_check_branch
      %28 = sbr.rel (0) target = $region5
    $region4: #{tpu_custom_call.1} parent=1 // pred_region
      %s30 = ssub.s32 256, 256
      %31 = vsyncadd [#allocation3], %s30
      %s32 = sshll.u32 [#allocation2], 4
      %s33 = int_to_ptr.vmem [resolvable:$true] %s32
      %38 = dma.hbm_to_vmem [thread:$0]  %s0, 256, %s33, [#allocation3], 128, 128, 8
    $region5: #{tpu_custom_call.1} parent=1 // pred_fallthru
      _
    // Predicated region
    $region6: #{tpu_custom_call.1} parent=1 // pred_check
      _
    $region7: #{tpu_custom_call.1} parent=1 // pred_check_branch
      %40 = sbr.rel (0) target = $region9
    $region8: #{tpu_custom_call.1} parent=1 // pred_region
      %s42 = ssub.s32 32, 32
      %43 = vsyncadd [#allocation6], %s42
      %s44 = sshll.u32 [#allocation5], 4
      %s45 = int_to_ptr.vmem [resolvable:$true] %s44
      %50 = dma.hbm_to_vmem [thread:$0]  %s1, 32, %s45, [#allocation6], 16, 16, 1
    $region9: #{tpu_custom_call.1} parent=1 // pred_fallthru
      _
    // Predicated region
    $region10: #{tpu_custom_call.1} parent=1 // pred_check
      _
    $region11: #{tpu_custom_call.1} parent=1 // pred_check_branch
      %52 = sbr.rel (0) target = $region13
    $region12: #{tpu_custom_call.1} parent=1 // pred_region
      %s54 = ssub.s32 32, 32
      %55 = vsyncadd [#allocation6], %s54
      %s56 = sshll.u32 [#allocation7], 4
      %s57 = int_to_ptr.vmem [resolvable:$true] %s56
      %62 = dma.hbm_to_vmem [thread:$0]  %s2, 32, %s57, [#allocation6], 16, 16, 1
    $region13: #{tpu_custom_call.1} parent=1 // pred_fallthru
      _
    // Predicated region
    $region14: #{tpu_custom_call.1} parent=1 // pred_check
      _
    $region15: #{tpu_custom_call.1} parent=1 // pred_check_branch
      %64 = sbr.rel (0) target = $region17
    $region16: #{tpu_custom_call.1} parent=1 // pred_region
      %s66 = ssub.s32 6144, 6144
      %67 = vsyncadd [#allocation9], %s66
      %s68 = sshll.u32 [#allocation8], 4
      %s69 = int_to_ptr.vmem [resolvable:$true] %s68
      %74 = dma.hbm_to_vmem [thread:$0]  %s3, 6144, %s69, [#allocation9], 192, 192, 12
    $region17: #{tpu_custom_call.1} parent=1 // pred_fallthru
      _
    // Predicated region
    $region18: #{tpu_custom_call.1} parent=1 // pred_check
      _
    $region19: #{tpu_custom_call.1} parent=1 // pred_check_branch
      %76 = sbr.rel (0) target = $region21
    $region20: #{tpu_custom_call.1} parent=1 // pred_region
      %s78 = ssub.s32 2048, 2048
      %79 = vsyncadd [#allocation9], %s78
      %s80 = sshll.u32 [#allocation10], 4
      %s81 = int_to_ptr.vmem [resolvable:$true] %s80
      %86 = dma.hbm_to_vmem [thread:$0]  %s4, 2048, %s81, [#allocation9], 64, 64, 4
    $region21: #{tpu_custom_call.1} parent=1 // pred_fallthru
      _
    // Predicated region
    $region22: #{tpu_custom_call.1} parent=1 // pred_check
      _
    $region23: #{tpu_custom_call.1} parent=1 // pred_check_branch
      %88 = sbr.rel (0) target = $region25
    $region24: #{tpu_custom_call.1} parent=1 // pred_region
      %s90 = ssub.s32 32, 32
      %91 = vsyncadd [#allocation12], %s90
      %s92 = sshll.u32 [#allocation11], 4
      %s93 = int_to_ptr.vmem [resolvable:$true] %s92
      %98 = dma.hbm_to_vmem [thread:$0]  %s5, 32, %s93, [#allocation12], 16, 16, 1
    $region25: #{tpu_custom_call.1} parent=1 // pred_fallthru
      _
    // Predicated region
    $region26: #{tpu_custom_call.1} parent=1 // pred_check
      _
    $region27: #{tpu_custom_call.1} parent=1 // pred_check_branch
      %100 = sbr.rel (0) target = $region29
    $region28: #{tpu_custom_call.1} parent=1 // pred_region
      _
    $region29: #{tpu_custom_call.1} parent=1 // pred_fallthru
      _
    // Predicated region
    $region30: #{tpu_custom_call.1} parent=1 // pred_check
      _
    $region31: #{tpu_custom_call.1} parent=1 // pred_check_branch
      %102 = sbr.rel (0) target = $region33
    $region32: #{tpu_custom_call.1} parent=1 // pred_region
      _
    $region33: #{tpu_custom_call.1} parent=1 // pred_fallthru
      _
    // Predicated region
    $region34: #{tpu_custom_call.1} parent=1 // pred_check
      _
    $region35: #{tpu_custom_call.1} parent=1 // pred_check_branch
      %104 = sbr.rel (0) target = $region37
    $region36: #{tpu_custom_call.1} parent=1 // pred_region
      %s106 = ssub.s32 4096, 4096
      %107 = vsyncadd [#allocation12], %s106
      %s108 = sshll.u32 [#allocation13], 4
      %s109 = int_to_ptr.vmem [resolvable:$true] %s108
      %114 = dma.hbm_to_vmem [thread:$0]  %s8, 4096, %s109, [#allocation12], 128, 128, 8
    $region37: #{tpu_custom_call.1} parent=1 // pred_fallthru
      _
    // Predicated region
    $region38: #{tpu_custom_call.1} parent=1 // pred_check
      _
    $region39: #{tpu_custom_call.1} parent=1 // pred_check_branch
      %116 = sbr.rel (0) target = $region41
    $region40: #{tpu_custom_call.1} parent=1 // pred_region
      _
    $region41: #{tpu_custom_call.1} parent=1 // pred_fallthru
      _
    // Predicated region
    $region42: #{tpu_custom_call.1} parent=1 // pred_check
      _
    $region43: #{tpu_custom_call.1} parent=1 // pred_check_branch
      %118 = sbr.rel (0) target = $region45
    $region44: #{tpu_custom_call.1} parent=1 // pred_region
      %s120 = ssub.s32 4096, 4096
      %121 = vsyncadd [#allocation15], %s120
      %s122 = sshll.u32 [#allocation14], 4
      %s123 = int_to_ptr.vmem [resolvable:$true] %s122
      %128 = dma.hbm_to_vmem [thread:$0]  %s10, 4096, %s123, [#allocation15], 64, 64, 4
    $region45: #{tpu_custom_call.1} parent=1 // pred_fallthru
      _
    // Predicated region
    $region46: #{tpu_custom_call.1} parent=1 // pred_check
      _
    $region47: #{tpu_custom_call.1} parent=1 // pred_check_branch
      %130 = sbr.rel (0) target = $region49
    $region48: #{tpu_custom_call.1} parent=1 // pred_region
      _
    $region49: #{tpu_custom_call.1} parent=1 // pred_fallthru
      _
    // Predicated region
    $region50: #{tpu_custom_call.1} parent=1 // pred_check
      _
    $region51: #{tpu_custom_call.1} parent=1 // pred_check_branch
      %132 = sbr.rel (0) target = $region53
    $region52: #{tpu_custom_call.1} parent=1 // pred_region
      _
    $region53: #{tpu_custom_call.1} parent=1 // pred_fallthru
      _
    // Predicated region
    $region54: #{tpu_custom_call.1} parent=1 // pred_check
      _
    $region55: #{tpu_custom_call.1} parent=1 // pred_check_branch
      %134 = sbr.rel (0) target = $region57
    $region56: #{tpu_custom_call.1} parent=1 // pred_region
      _
    $region57: #{tpu_custom_call.1} parent=1 // pred_fallthru
      _
    // Predicated region
    $region58: #{tpu_custom_call.1} parent=1 // pred_check
      _
    $region59: #{tpu_custom_call.1} parent=1 // pred_check_branch
      %136 = sbr.rel (0) target = $region61
    $region60: #{tpu_custom_call.1} parent=1 // pred_region
      %s138 = ssub.s32 4096, 4096
      %139 = vsyncadd [#allocation15], %s138
      %s140 = sshll.u32 [#allocation16], 4
      %s141 = int_to_ptr.vmem [resolvable:$true] %s140
      %146 = dma.hbm_to_vmem [thread:$0]  %s14, 4096, %s141, [#allocation15], 256, 256, 16
    $region61: #{tpu_custom_call.1} parent=1 // pred_fallthru
      _
    // Predicated region
    $region62: #{tpu_custom_call.1} parent=1 // pred_check
      _
    $region63: #{tpu_custom_call.1} parent=1 // pred_check_branch
      %148 = sbr.rel (0) target = $region65
    $region64: #{tpu_custom_call.1} parent=1 // pred_region
      _
    $region65: #{tpu_custom_call.1} parent=1 // pred_fallthru
      _
    // Predicated region
    $region66: #{tpu_custom_call.1} parent=1 // pred_check
      _
    $region67: #{tpu_custom_call.1} parent=1 // pred_check_branch
      %150 = sbr.rel (0) target = $region69
    $region68: #{tpu_custom_call.1} parent=1 // pred_region
      %151 = dma.done [#allocation3], 256
    $region69: #{tpu_custom_call.1} parent=1 // pred_fallthru
      _
    // Predicated region
    $region70: #{tpu_custom_call.1} parent=1 // pred_check
      _
    $region71: #{tpu_custom_call.1} parent=1 // pred_check_branch
      %153 = sbr.rel (0) target = $region73
    $region72: #{tpu_custom_call.1} parent=1 // pred_region
      %154 = dma.done [#allocation6], 32
    $region73: #{tpu_custom_call.1} parent=1 // pred_fallthru
      _
    // Predicated region
    $region74: #{tpu_custom_call.1} parent=1 // pred_check
      _
    $region75: #{tpu_custom_call.1} parent=1 // pred_check_branch
      %156 = sbr.rel (0) target = $region77
    $region76: #{tpu_custom_call.1} parent=1 // pred_region
      %157 = dma.done [#allocation6], 32
    $region77: #{tpu_custom_call.1} parent=1 // pred_fallthru
      _
    // Predicated region
    $region78: #{tpu_custom_call.1} parent=1 // pred_check
      _
    $region79: #{tpu_custom_call.1} parent=1 // pred_check_branch
      %159 = sbr.rel (0) target = $region81
    $region80: #{tpu_custom_call.1} parent=1 // pred_region
      %160 = dma.done [#allocation9], 6144
    $region81: #{tpu_custom_call.1} parent=1 // pred_fallthru
      _
    // Predicated region
    $region82: #{tpu_custom_call.1} parent=1 // pred_check
      _
    $region83: #{tpu_custom_call.1} parent=1 // pred_check_branch
      %162 = sbr.rel (0) target = $region85
    $region84: #{tpu_custom_call.1} parent=1 // pred_region
      %163 = dma.done [#allocation9], 2048
    $region85: #{tpu_custom_call.1} parent=1 // pred_fallthru
      _
    // Predicated region
    $region86: #{tpu_custom_call.1} parent=1 // pred_check
      _
    $region87: #{tpu_custom_call.1} parent=1 // pred_check_branch
      %165 = sbr.rel (0) target = $region89
    $region88: #{tpu_custom_call.1} parent=1 // pred_region
      %166 = dma.done [#allocation12], 32
    $region89: #{tpu_custom_call.1} parent=1 // pred_fallthru
      _
    // Predicated region
    $region90: #{tpu_custom_call.1} parent=1 // pred_check
      _
    $region91: #{tpu_custom_call.1} parent=1 // pred_check_branch
      %168 = sbr.rel (0) target = $region93
    $region92: #{tpu_custom_call.1} parent=1 // pred_region
      %169 = dma.done [#allocation12], 4096
    $region93: #{tpu_custom_call.1} parent=1 // pred_fallthru
      _
    // Predicated region
    $region94: #{tpu_custom_call.1} parent=1 // pred_check
      _
    $region95: #{tpu_custom_call.1} parent=1 // pred_check_branch
      %171 = sbr.rel (0) target = $region97
    $region96: #{tpu_custom_call.1} parent=1 // pred_region
      %172 = dma.done [#allocation15], 4096
    $region97: #{tpu_custom_call.1} parent=1 // pred_fallthru
      _
    // Predicated region
    $region98: #{tpu_custom_call.1} parent=1 // pred_check
      _
    $region99: #{tpu_custom_call.1} parent=1 // pred_check_branch
      %174 = sbr.rel (0) target = $region101
    $region100: #{tpu_custom_call.1} parent=1 // pred_region
      %175 = dma.done [#allocation15], 4096
    $region101: #{tpu_custom_call.1} parent=1 // pred_fallthru
      _
    %v177 = vlaneseq
    %v178 = vand.u32 %v177, 127
    %vm179 = vcmp.lt.s32.totalorder %v178, 96
    %v180 = vsel %vm179, 1, 0
    %v181 = vcvt.s32.f32 %v180
    %v182 = vld [vmem:[#allocation2] sm:$0xff]
    %v183 = vld [vmem:[#allocation2 + $0x8] sm:$0xff]
    %v184 = vld [vmem:[#allocation5] sm:$0x1]
    %v185 = vld [vmem:[#allocation7] sm:$0x1]
    %186 = vadd.xlane.f32.xlu0 %v182
    %v187 = vpop.xlane.xlu0 %186
    %188 = vadd.xlane.f32.xlu0 %v183
    %v189 = vpop.xlane.xlu0 %188
    %v190 = vmul.f32 %v187, 0.010416667
    %v191 = vmul.f32 %v189, 0.010416667
    %v192 = vsub.f32 %v182, %v190
    %v193 = vsub.f32 %v183, %v191
    %v194 = vmul.f32 %v192, %v181
    %v195 = vmul.f32 %v193, %v181
    %v196 = vmul.f32 %v194, %v194
    %v197 = vmul.f32 %v195, %v195
    %198 = vadd.xlane.f32.xlu0 %v196
    %v199 = vpop.xlane.xlu0 %198
    %200 = vadd.xlane.f32.xlu0 %v197
    %v201 = vpop.xlane.xlu0 %200
    %v202 = vmul.f32 %v199, 0.010416667
    %v203 = vmul.f32 %v201, 0.010416667
    %v204 = vadd.f32 %v202, 1e-05
    %v205 = vadd.f32 %v203, 1e-05
    %v206 = vrsqrt.pop %v204
    %v207 = vrsqrt.pop %v205
    %v208 = vmul.f32 %v194, %v206
    %v209 = vmul.f32 %v195, %v207
    %v211 = vlaneseq
    %v212 = vshrl.u32 %v211, 7
    %v213 = vsub.s32 0, %v212
    %v214 = vrot.slane %v184, %v213
    %v216 = vmul.f32 %v208, %v214
    %v217 = vmul.f32 %v209, %v214
    %v219 = vlaneseq
    %v220 = vshrl.u32 %v219, 7
    %v221 = vsub.s32 0, %v220
    %v222 = vrot.slane %v185, %v221
    %v224 = vadd.f32 %v216, %v222
    %v225 = vadd.f32 %v217, %v222
    %v226 = vpack.c.bf16 %v225, %v224
    %v227 = vld [vmem:[#allocation8] sm:$0xff]
    %v228 = vld [vmem:[#allocation8 + $0x8] sm:$0xf]
    %v229 = vld [vmem:[#allocation8 + $0xc] sm:$0xff]
    %v230 = vld [vmem:[#allocation8 + $0x14] sm:$0xf]
    %v231 = vld [vmem:[#allocation8 + $0x18] sm:$0xff]
    %v232 = vld [vmem:[#allocation8 + $0x20] sm:$0xf]
    %v233 = vld [vmem:[#allocation8 + $0x24] sm:$0xff]
    %v234 = vld [vmem:[#allocation8 + $0x2c] sm:$0xf]
    %v235 = vld [vmem:[#allocation8 + $0x30] sm:$0xff]
    %v236 = vld [vmem:[#allocation8 + $0x38] sm:$0xf]
    %v237 = vld [vmem:[#allocation8 + $0x3c] sm:$0xff]
    %v238 = vld [vmem:[#allocation8 + $0x44] sm:$0xf]
    %v239 = vld [vmem:[#allocation8 + $0x48] sm:$0xff]
    %v240 = vld [vmem:[#allocation8 + $0x50] sm:$0xf]
    %v241 = vld [vmem:[#allocation8 + $0x54] sm:$0xff]
    %v242 = vld [vmem:[#allocation8 + $0x5c] sm:$0xf]
    %v243 = vld [vmem:[#allocation8 + $0x60] sm:$0xff]
    %v244 = vld [vmem:[#allocation8 + $0x68] sm:$0xf]
    %v245 = vld [vmem:[#allocation8 + $0x6c] sm:$0xff]
    %v246 = vld [vmem:[#allocation8 + $0x74] sm:$0xf]
    %v247 = vld [vmem:[#allocation8 + $0x78] sm:$0xff]
    %v248 = vld [vmem:[#allocation8 + $0x80] sm:$0xf]
    %v249 = vld [vmem:[#allocation8 + $0x84] sm:$0xff]
    %v250 = vld [vmem:[#allocation8 + $0x8c] sm:$0xf]
    %v251 = vld [vmem:[#allocation8 + $0x90] sm:$0xff]
    %v252 = vld [vmem:[#allocation8 + $0x98] sm:$0xf]
    %v253 = vld [vmem:[#allocation8 + $0x9c] sm:$0xff]
    %v254 = vld [vmem:[#allocation8 + $0xa4] sm:$0xf]
    %v255 = vld [vmem:[#allocation8 + $0xa8] sm:$0xff]
    %v256 = vld [vmem:[#allocation8 + $0xb0] sm:$0xf]
    %v257 = vld [vmem:[#allocation8 + $0xb4] sm:$0xff]
    %v258 = vld [vmem:[#allocation8 + $0xbc] sm:$0xf]
    %v291 = vunpack.c.l.b16 %v227
    %v292 = vunpack.c.h.b16 %v227
    %v293 = vunpack.c.l.b16 %v228
    %v294 = vunpack.c.l.b16 %v229
    %v295 = vunpack.c.h.b16 %v229
    %v296 = vunpack.c.l.b16 %v230
    %v297 = vunpack.c.l.b16 %v231
    %v298 = vunpack.c.h.b16 %v231
    %v299 = vunpack.c.l.b16 %v232
    %v300 = vunpack.c.l.b16 %v233
    %v301 = vunpack.c.h.b16 %v233
    %v302 = vunpack.c.l.b16 %v234
    %v303 = vunpack.c.l.b16 %v235
    %v304 = vunpack.c.h.b16 %v235
    %v305 = vunpack.c.l.b16 %v236
    %v306 = vunpack.c.l.b16 %v237
    %v307 = vunpack.c.h.b16 %v237
    %v308 = vunpack.c.l.b16 %v238
    %v309 = vunpack.c.l.b16 %v239
    %v310 = vunpack.c.h.b16 %v239
    %v311 = vunpack.c.l.b16 %v240
    %v312 = vunpack.c.l.b16 %v241
    %v313 = vunpack.c.h.b16 %v241
    %v314 = vunpack.c.l.b16 %v242
    %v315 = vunpack.c.l.b16 %v243
    %v316 = vunpack.c.h.b16 %v243
    %v317 = vunpack.c.l.b16 %v244
    %v318 = vunpack.c.l.b16 %v245
    %v319 = vunpack.c.h.b16 %v245
    %v320 = vunpack.c.l.b16 %v246
    %v321 = vunpack.c.l.b16 %v247
    %v322 = vunpack.c.h.b16 %v247
    %v323 = vunpack.c.l.b16 %v248
    %v324 = vunpack.c.l.b16 %v249
    %v325 = vunpack.c.h.b16 %v249
    %v326 = vunpack.c.l.b16 %v250
    %v327 = vunpack.c.l.b16 %v251
    %v328 = vunpack.c.h.b16 %v251
    %v329 = vunpack.c.l.b16 %v252
    %v330 = vunpack.c.l.b16 %v253
    %v331 = vunpack.c.h.b16 %v253
    %v332 = vunpack.c.l.b16 %v254
    %v333 = vunpack.c.l.b16 %v255
    %v334 = vunpack.c.h.b16 %v255
    %v335 = vunpack.c.l.b16 %v256
    %v336 = vunpack.c.l.b16 %v257
    %v337 = vunpack.c.h.b16 %v257
    %v338 = vunpack.c.l.b16 %v258
    %v339 = vpack.c.b16 %v294, %v291
    %v340 = vpack.c.b16 %v295, %v292
    %v341 = vpack.c.b16 %v296, %v293
    %v342 = vpack.c.b16 %v300, %v297
    %v343 = vpack.c.b16 %v301, %v298
    %v344 = vpack.c.b16 %v302, %v299
    %v345 = vpack.c.b16 %v306, %v303
    %v346 = vpack.c.b16 %v307, %v304
    %v347 = vpack.c.b16 %v308, %v305
    %v348 = vpack.c.b16 %v312, %v309
    %v349 = vpack.c.b16 %v313, %v310
    %v350 = vpack.c.b16 %v314, %v311
    %v351 = vpack.c.b16 %v318, %v315
    %v352 = vpack.c.b16 %v319, %v316
    %v353 = vpack.c.b16 %v320, %v317
    %v354 = vpack.c.b16 %v324, %v321
    %v355 = vpack.c.b16 %v325, %v322
    %v356 = vpack.c.b16 %v326, %v323
    %v357 = vpack.c.b16 %v330, %v327
    %v358 = vpack.c.b16 %v331, %v328
    %v359 = vpack.c.b16 %v332, %v329
    %v360 = vpack.c.b16 %v336, %v333
    %v361 = vpack.c.b16 %v337, %v334
    %v362 = vpack.c.b16 %v338, %v335
    %387 = vmatprep.subr.bf16.mxu0 %v361
    %388 = vmatpush1.bf16.msra.mxu0 %v360
    %389 = vmatprep.subr.bf16.mxu0 %v358
    %390 = vmatpush1.bf16.msra.mxu0 %v357
    %391 = vmatprep.subr.bf16.mxu0 %v355
    %392 = vmatpush1.bf16.msra.mxu0 %v354
    %393 = vmatprep.subr.bf16.mxu0 %v352
    %394 = vmatpush1.bf16.msra.mxu0 %v351
    %395 = vmatprep.subr.bf16.mxu0 %v349
    %396 = vmatpush1.bf16.msra.mxu0 %v348
    %397 = vmatprep.subr.bf16.mxu0 %v346
    %398 = vmatpush1.bf16.msra.mxu0 %v345
    %399 = vmatprep.subr.bf16.mxu0 %v343
    %400 = vmatpush1.bf16.msra.mxu0 %v342
    %401 = vmatprep.subr.bf16.mxu0 %v340
    %402 = vmatpush1.bf16.msra.mxu0 %v339
    %403 = vmatprep.subr.bf16.mxu0 0
    %404 = vmatpush2.bf16.msra.mxu0 0
    %405 = vmatprep.subr.bf16.mxu0 0
    %406 = vmatpush2.bf16.msra.mxu0 0
    %407 = vmatprep.subr.bf16.mxu0 0
    %408 = vmatpush2.bf16.msra.mxu0 0
    %409 = vmatprep.subr.bf16.mxu0 0
    %410 = vmatpush2.bf16.msra.mxu0 0
    %411 = vmatprep.subr.bf16.mxu0 0
    %412 = vmatpush2.bf16.msra.mxu0 0
    %413 = vmatprep.subr.bf16.mxu0 0
    %414 = vmatpush2.bf16.msra.mxu0 0
    %415 = vmatprep.subr.bf16.mxu0 0
    %416 = vmatpush2.bf16.msra.mxu0 0
    %417 = vmatprep.subr.bf16.mxu0 0
    %418 = vmatpush2.bf16.msra.mxu0 0
    %419 = vmatprep.mubr.bf16.mxu0 0
    %420 = vmatmul.mubr.bf16.gmra.mxu0 %v226
    %v421 = vpop.f32.mrf.mxu0
    %v422 = vadd.f32 0.0, %v421
    %v423 = vpop.f32.mrf.mxu0
    %v424 = vadd.f32 0.0, %v423
    %v425 = vpop.f32.mrf.mxu0
    %v426 = vadd.f32 0.0, %v425
    %v427 = vpop.f32.mrf.mxu0
    %v428 = vadd.f32 0.0, %v427
    %429 = vdwg.mxu0
    %430 = vmatprep.subr.bf16.mxu0 0
    %431 = vmatpush1.bf16.msra.mxu0 %v362
    %432 = vmatprep.subr.bf16.mxu0 0
    %433 = vmatpush1.bf16.msra.mxu0 %v359
    %434 = vmatprep.subr.bf16.mxu0 0
    %435 = vmatpush1.bf16.msra.mxu0 %v356
    %436 = vmatprep.subr.bf16.mxu0 0
    %437 = vmatpush1.bf16.msra.mxu0 %v353
    %438 = vmatprep.subr.bf16.mxu0 0
    %439 = vmatpush1.bf16.msra.mxu0 %v350
    %440 = vmatprep.subr.bf16.mxu0 0
    %441 = vmatpush1.bf16.msra.mxu0 %v347
    %442 = vmatprep.subr.bf16.mxu0 0
    %443 = vmatpush1.bf16.msra.mxu0 %v344
    %444 = vmatprep.subr.bf16.mxu0 0
    %445 = vmatpush1.bf16.msra.mxu0 %v341
    %446 = vmatprep.subr.bf16.mxu0 0
    %447 = vmatpush2.bf16.msra.mxu0 0
    %448 = vmatprep.subr.bf16.mxu0 0
    %449 = vmatpush2.bf16.msra.mxu0 0
    %450 = vmatprep.subr.bf16.mxu0 0
    %451 = vmatpush2.bf16.msra.mxu0 0
    %452 = vmatprep.subr.bf16.mxu0 0
    %453 = vmatpush2.bf16.msra.mxu0 0
    %454 = vmatprep.subr.bf16.mxu0 0
    %455 = vmatpush2.bf16.msra.mxu0 0
    %456 = vmatprep.subr.bf16.mxu0 0
    %457 = vmatpush2.bf16.msra.mxu0 0
    %458 = vmatprep.subr.bf16.mxu0 0
    %459 = vmatpush2.bf16.msra.mxu0 0
    %460 = vmatprep.subr.bf16.mxu0 0
    %461 = vmatpush2.bf16.msra.mxu0 0
    %462 = vmatprep.mubr.bf16.mxu0 0
    %463 = vmatmul.mubr.bf16.gmra.mxu0 %v226
    %v464 = vpop.f32.mrf.mxu0
    %v465 = vadd.f32 0.0, %v464
    %v466 = vpop.f32.mrf.mxu0
    %v467 = vpop.f32.mrf.mxu0
    %v468 = vadd.f32 0.0, %v467
    %v469 = vpop.f32.mrf.mxu0
    %470 = vdwg.mxu0
    %v471 = vld [vmem:[#allocation10] sm:$0xf]
    %v472 = vld [vmem:[#allocation10 + $0x4] sm:$0xf]
    %v473 = vld [vmem:[#allocation10 + $0x8] sm:$0xf]
    %v474 = vld [vmem:[#allocation10 + $0xc] sm:$0xf]
    %v475 = vld [vmem:[#allocation10 + $0x10] sm:$0xf]
    %v476 = vld [vmem:[#allocation10 + $0x14] sm:$0xf]
    %v477 = vld [vmem:[#allocation10 + $0x18] sm:$0xf]
    %v478 = vld [vmem:[#allocation10 + $0x1c] sm:$0xf]
    %v479 = vld [vmem:[#allocation10 + $0x20] sm:$0xf]
    %v480 = vld [vmem:[#allocation10 + $0x24] sm:$0xf]
    %v481 = vld [vmem:[#allocation10 + $0x28] sm:$0xf]
    %v482 = vld [vmem:[#allocation10 + $0x2c] sm:$0xf]
    %v483 = vld [vmem:[#allocation10 + $0x30] sm:$0xf]
    %v484 = vld [vmem:[#allocation10 + $0x34] sm:$0xf]
    %v485 = vld [vmem:[#allocation10 + $0x38] sm:$0xf]
    %v486 = vld [vmem:[#allocation10 + $0x3c] sm:$0xf]
    %v487 = vpack.c.bf16 %v422, %v422
    %v488 = vpack.c.bf16 %v426, %v426
    %v489 = vpack.c.bf16 %v424, %v424
    %v490 = vpack.c.bf16 %v428, %v428
    %vm491 = vcmask 261120
    %v493 = vsel %vm491, %v487, 0
    %v496 = vsel %vm491, %v489, 0
    %498 = vmatprep.subr.bf16.mxu0 0
    %499 = vmatpush1.bf16.xpose.msra.mxu0 0
    %500 = vmatprep.subr.bf16.mxu0 0
    %501 = vmatpush1.bf16.xpose.msra.mxu0 0
    %502 = vmatprep.subr.bf16.mxu0 0
    %503 = vmatpush1.bf16.xpose.msra.mxu0 0
    %504 = vmatprep.subr.bf16.mxu0 0
    %505 = vmatpush1.bf16.xpose.msra.mxu0 0
    %506 = vmatprep.subr.bf16.mxu0 0
    %507 = vmatpush1.bf16.xpose.msra.mxu0 0
    %508 = vmatprep.subr.bf16.mxu0 0
    %509 = vmatpush1.bf16.xpose.msra.mxu0 0
    %510 = vmatprep.subr.bf16.mxu0 0
    %511 = vmatpush1.bf16.xpose.msra.mxu0 0
    %512 = vmatprep.subr.bf16.mxu0 0
    %513 = vmatpush1.bf16.xpose.msra.mxu0 %v496
    %514 = vmatprep.subr.bf16.mxu0 0
    %515 = vmatpush2.bf16.xpose.msra.mxu0 0
    %516 = vmatprep.subr.bf16.mxu0 0
    %517 = vmatpush2.bf16.xpose.msra.mxu0 0
    %518 = vmatprep.subr.bf16.mxu0 0
    %519 = vmatpush2.bf16.xpose.msra.mxu0 0
    %520 = vmatprep.subr.bf16.mxu0 0
    %521 = vmatpush2.bf16.xpose.msra.mxu0 0
    %522 = vmatprep.subr.bf16.mxu0 0
    %523 = vmatpush2.bf16.xpose.msra.mxu0 0
    %524 = vmatprep.subr.bf16.mxu0 0
    %525 = vmatpush2.bf16.xpose.msra.mxu0 0
    %526 = vmatprep.subr.bf16.mxu0 0
    %527 = vmatpush2.bf16.xpose.msra.mxu0 0
    %528 = vmatprep.subr.bf16.mxu0 0
    %529 = vmatpush2.bf16.xpose.msra.mxu0 0
    %530 = vmatprep.mubr.bf16.mxu0 0
    %531 = vmatmul.mubr.bf16.gmra.mxu0 %v493
    %v532 = vpop.f32.mrf.mxu0
    %v533 = vadd.f32 0.0, %v532
    %v534 = vpop.f32.mrf.mxu0
    %v535 = vpop.f32.mrf.mxu0
    %v536 = vpop.f32.mrf.mxu0
    %537 = vdwg.mxu0
    %v539 = vsel %vm491, %v488, 0
    %v542 = vsel %vm491, %v490, 0
    %544 = vmatprep.subr.bf16.mxu0 0
    %545 = vmatpush1.bf16.xpose.msra.mxu0 0
    %546 = vmatprep.subr.bf16.mxu0 0
    %547 = vmatpush1.bf16.xpose.msra.mxu0 0
    %548 = vmatprep.subr.bf16.mxu0 0
    %549 = vmatpush1.bf16.xpose.msra.mxu0 0
    %550 = vmatprep.subr.bf16.mxu0 0
    %551 = vmatpush1.bf16.xpose.msra.mxu0 0
    %552 = vmatprep.subr.bf16.mxu0 0
    %553 = vmatpush1.bf16.xpose.msra.mxu0 0
    %554 = vmatprep.subr.bf16.mxu0 0
    %555 = vmatpush1.bf16.xpose.msra.mxu0 0
    %556 = vmatprep.subr.bf16.mxu0 0
    %557 = vmatpush1.bf16.xpose.msra.mxu0 0
    %558 = vmatprep.subr.bf16.mxu0 0
    %559 = vmatpush1.bf16.xpose.msra.mxu0 %v542
    %560 = vmatprep.subr.bf16.mxu0 0
    %561 = vmatpush2.bf16.xpose.msra.mxu0 0
    %562 = vmatprep.subr.bf16.mxu0 0
    %563 = vmatpush2.bf16.xpose.msra.mxu0 0
    %564 = vmatprep.subr.bf16.mxu0 0
    %565 = vmatpush2.bf16.xpose.msra.mxu0 0
    %566 = vmatprep.subr.bf16.mxu0 0
    %567 = vmatpush2.bf16.xpose.msra.mxu0 0
    %568 = vmatprep.subr.bf16.mxu0 0
    %569 = vmatpush2.bf16.xpose.msra.mxu0 0
    %570 = vmatprep.subr.bf16.mxu0 0
    %571 = vmatpush2.bf16.xpose.msra.mxu0 0
    %572 = vmatprep.subr.bf16.mxu0 0
    %573 = vmatpush2.bf16.xpose.msra.mxu0 0
    %574 = vmatprep.subr.bf16.mxu0 0
    %575 = vmatpush2.bf16.xpose.msra.mxu0 0
    %576 = vmatprep.mubr.bf16.mxu0 0
    %577 = vmatmul.mubr.bf16.gmra.mxu0 %v539
    %v578 = vpop.f32.mrf.mxu0
    %v579 = vadd.f32 0.0, %v578
    %v580 = vpop.f32.mrf.mxu0
    %v581 = vpop.f32.mrf.mxu0
    %v582 = vpop.f32.mrf.mxu0
    %583 = vdwg.mxu0
    %v584 = vmul.f32 %v533, 0.17677669
    %v585 = vmul.f32 %v579, 0.17677669
    %vm586 = vcmask 64512
    %v587 = vsel %vm586, %v584, -inf
    %588 = vmax.xlane.f32.xlu0 %v587
    %v589 = vpop.xlane.xlu0 %588
    %v590 = vsel %vm586, %v585, -inf
    %591 = vmax.xlane.f32.xlu0 %v590
    %v592 = vpop.xlane.xlu0 %591
    %v593 = vsub.f32 %v584, %v589
    %v594 = vsub.f32 %v585, %v592
    %v595 = vmul.f32 %v593, 1.442695
    %v596 = vpow.pop %v595
    %v597 = vmul.f32 %v594, 1.442695
    %v598 = vpow.pop %v597
    %v599 = vsel %vm586, %v596, 0.0
    %600 = vadd.xlane.f32.xlu0 %v599
    %v601 = vpop.xlane.xlu0 %600
    %v602 = vsel %vm586, %v598, 0.0
    %603 = vadd.xlane.f32.xlu0 %v602
    %v604 = vpop.xlane.xlu0 %603
    %v605 = vrcp.pop %v601
    %v606 = vrcp.pop %v604
    %v607 = vmul.f32 %v596, %v605
    %v608 = vmul.f32 %v598, %v606
    %v609 = vpack.c.bf16 %v607, %v607
    %v610 = vpack.c.bf16 %v608, %v608
    %v611 = vpack.c.bf16 %v465, %v465
    %v612 = vpack.c.bf16 %v468, %v468
    %v614 = vsel %vm586, %v609, 0
    %vm616 = vcmask 1043456
    %v618 = vsel %vm616, %v611, 0
    %620 = vmatprep.subr.bf16.mxu0 0
    %621 = vmatpush1.bf16.msra.mxu0 0
    %622 = vmatprep.subr.bf16.mxu0 0
    %623 = vmatpush1.bf16.msra.mxu0 0
    %624 = vmatprep.subr.bf16.mxu0 0
    %625 = vmatpush1.bf16.msra.mxu0 0
    %626 = vmatprep.subr.bf16.mxu0 0
    %627 = vmatpush1.bf16.msra.mxu0 0
    %628 = vmatprep.subr.bf16.mxu0 0
    %629 = vmatpush1.bf16.msra.mxu0 0
    %630 = vmatprep.subr.bf16.mxu0 0
    %631 = vmatpush1.bf16.msra.mxu0 0
    %632 = vmatprep.subr.bf16.mxu0 0
    %633 = vmatpush1.bf16.msra.mxu0 0
    %634 = vmatprep.subr.bf16.mxu0 0
    %635 = vmatpush1.bf16.msra.mxu0 %v618
    %636 = vmatprep.subr.bf16.mxu0 0
    %637 = vmatpush2.bf16.msra.mxu0 0
    %638 = vmatprep.subr.bf16.mxu0 0
    %639 = vmatpush2.bf16.msra.mxu0 0
    %640 = vmatprep.subr.bf16.mxu0 0
    %641 = vmatpush2.bf16.msra.mxu0 0
    %642 = vmatprep.subr.bf16.mxu0 0
    %643 = vmatpush2.bf16.msra.mxu0 0
    %644 = vmatprep.subr.bf16.mxu0 0
    %645 = vmatpush2.bf16.msra.mxu0 0
    %646 = vmatprep.subr.bf16.mxu0 0
    %647 = vmatpush2.bf16.msra.mxu0 0
    %648 = vmatprep.subr.bf16.mxu0 0
    %649 = vmatpush2.bf16.msra.mxu0 0
    %650 = vmatprep.subr.bf16.mxu0 0
    %651 = vmatpush2.bf16.msra.mxu0 0
    %652 = vmatprep.mubr.bf16.mxu0 0
    %653 = vmatmul.mubr.bf16.gmra.mxu0 %v614
    %v654 = vpop.f32.mrf.mxu0
    %v655 = vadd.f32 0.0, %v654
    %v656 = vpop.f32.mrf.mxu0
    %v657 = vpop.f32.mrf.mxu0
    %v658 = vpop.f32.mrf.mxu0
    %659 = vdwg.mxu0
    %v661 = vsel %vm586, %v610, 0
    %v664 = vsel %vm616, %v612, 0
    %666 = vmatprep.subr.bf16.mxu0 0
    %667 = vmatpush1.bf16.msra.mxu0 0
    %668 = vmatprep.subr.bf16.mxu0 0
    %669 = vmatpush1.bf16.msra.mxu0 0
    %670 = vmatprep.subr.bf16.mxu0 0
    %671 = vmatpush1.bf16.msra.mxu0 0
    %672 = vmatprep.subr.bf16.mxu0 0
    %673 = vmatpush1.bf16.msra.mxu0 0
    %674 = vmatprep.subr.bf16.mxu0 0
    %675 = vmatpush1.bf16.msra.mxu0 0
    %676 = vmatprep.subr.bf16.mxu0 0
    %677 = vmatpush1.bf16.msra.mxu0 0
    %678 = vmatprep.subr.bf16.mxu0 0
    %679 = vmatpush1.bf16.msra.mxu0 0
    %680 = vmatprep.subr.bf16.mxu0 0
    %681 = vmatpush1.bf16.msra.mxu0 %v664
    %682 = vmatprep.subr.bf16.mxu0 0
    %683 = vmatpush2.bf16.msra.mxu0 0
    %684 = vmatprep.subr.bf16.mxu0 0
    %685 = vmatpush2.bf16.msra.mxu0 0
    %686 = vmatprep.subr.bf16.mxu0 0
    %687 = vmatpush2.bf16.msra.mxu0 0
    %688 = vmatprep.subr.bf16.mxu0 0
    %689 = vmatpush2.bf16.msra.mxu0 0
    %690 = vmatprep.subr.bf16.mxu0 0
    %691 = vmatpush2.bf16.msra.mxu0 0
    %692 = vmatprep.subr.bf16.mxu0 0
    %693 = vmatpush2.bf16.msra.mxu0 0
    %694 = vmatprep.subr.bf16.mxu0 0
    %695 = vmatpush2.bf16.msra.mxu0 0
    %696 = vmatprep.subr.bf16.mxu0 0
    %697 = vmatpush2.bf16.msra.mxu0 0
    %698 = vmatprep.mubr.bf16.mxu0 0
    %699 = vmatmul.mubr.bf16.gmra.mxu0 %v661
    %v700 = vpop.f32.mrf.mxu0
    %v701 = vadd.f32 0.0, %v700
    %v702 = vpop.f32.mrf.mxu0
    %v703 = vpop.f32.mrf.mxu0
    %v704 = vpop.f32.mrf.mxu0
    %705 = vdwg.mxu0
    %v706 = vpack.c.bf16 %v701, %v655
    %708 = vrot.lane.b32.xlu0 %v487, 96
    %v709 = vpop.permute.xlu0 %708
    %711 = vrot.lane.b32.xlu0 %v489, 96
    %v712 = vpop.permute.xlu0 %711
    %v714 = vsel %vm491, %v709, 0
    %v717 = vsel %vm491, %v712, 0
    %719 = vmatprep.subr.bf16.mxu0 0
    %720 = vmatpush1.bf16.xpose.msra.mxu0 0
    %721 = vmatprep.subr.bf16.mxu0 0
    %722 = vmatpush1.bf16.xpose.msra.mxu0 0
    %723 = vmatprep.subr.bf16.mxu0 0
    %724 = vmatpush1.bf16.xpose.msra.mxu0 0
    %725 = vmatprep.subr.bf16.mxu0 0
    %726 = vmatpush1.bf16.xpose.msra.mxu0 0
    %727 = vmatprep.subr.bf16.mxu0 0
    %728 = vmatpush1.bf16.xpose.msra.mxu0 0
    %729 = vmatprep.subr.bf16.mxu0 0
    %730 = vmatpush1.bf16.xpose.msra.mxu0 0
    %731 = vmatprep.subr.bf16.mxu0 0
    %732 = vmatpush1.bf16.xpose.msra.mxu0 0
    %733 = vmatprep.subr.bf16.mxu0 0
    %734 = vmatpush1.bf16.xpose.msra.mxu0 %v717
    %735 = vmatprep.subr.bf16.mxu0 0
    %736 = vmatpush2.bf16.xpose.msra.mxu0 0
    %737 = vmatprep.subr.bf16.mxu0 0
    %738 = vmatpush2.bf16.xpose.msra.mxu0 0
    %739 = vmatprep.subr.bf16.mxu0 0
    %740 = vmatpush2.bf16.xpose.msra.mxu0 0
    %741 = vmatprep.subr.bf16.mxu0 0
    %742 = vmatpush2.bf16.xpose.msra.mxu0 0
    %743 = vmatprep.subr.bf16.mxu0 0
    %744 = vmatpush2.bf16.xpose.msra.mxu0 0
    %745 = vmatprep.subr.bf16.mxu0 0
    %746 = vmatpush2.bf16.xpose.msra.mxu0 0
    %747 = vmatprep.subr.bf16.mxu0 0
    %748 = vmatpush2.bf16.xpose.msra.mxu0 0
    %749 = vmatprep.subr.bf16.mxu0 0
    %750 = vmatpush2.bf16.xpose.msra.mxu0 0
    %751 = vmatprep.mubr.bf16.mxu0 0
    %752 = vmatmul.mubr.bf16.gmra.mxu0 %v714
    %v753 = vpop.f32.mrf.mxu0
    %v754 = vadd.f32 0.0, %v753
    %v755 = vpop.f32.mrf.mxu0
    %v756 = vpop.f32.mrf.mxu0
    %v757 = vpop.f32.mrf.mxu0
    %758 = vdwg.mxu0
    %760 = vrot.lane.b32.xlu0 %v488, 96
    %v761 = vpop.permute.xlu0 %760
    %763 = vrot.lane.b32.xlu0 %v490, 96
    %v764 = vpop.permute.xlu0 %763
    %v766 = vsel %vm491, %v761, 0
    %v769 = vsel %vm491, %v764, 0
    %771 = vmatprep.subr.bf16.mxu0 0
    %772 = vmatpush1.bf16.xpose.msra.mxu0 0
    %773 = vmatprep.subr.bf16.mxu0 0
    %774 = vmatpush1.bf16.xpose.msra.mxu0 0
    %775 = vmatprep.subr.bf16.mxu0 0
    %776 = vmatpush1.bf16.xpose.msra.mxu0 0
    %777 = vmatprep.subr.bf16.mxu0 0
    %778 = vmatpush1.bf16.xpose.msra.mxu0 0
    %779 = vmatprep.subr.bf16.mxu0 0
    %780 = vmatpush1.bf16.xpose.msra.mxu0 0
    %781 = vmatprep.subr.bf16.mxu0 0
    %782 = vmatpush1.bf16.xpose.msra.mxu0 0
    %783 = vmatprep.subr.bf16.mxu0 0
    %784 = vmatpush1.bf16.xpose.msra.mxu0 0
    %785 = vmatprep.subr.bf16.mxu0 0
    %786 = vmatpush1.bf16.xpose.msra.mxu0 %v769
    %787 = vmatprep.subr.bf16.mxu0 0
    %788 = vmatpush2.bf16.xpose.msra.mxu0 0
    %789 = vmatprep.subr.bf16.mxu0 0
    %790 = vmatpush2.bf16.xpose.msra.mxu0 0
    %791 = vmatprep.subr.bf16.mxu0 0
    %792 = vmatpush2.bf16.xpose.msra.mxu0 0
    %793 = vmatprep.subr.bf16.mxu0 0
    %794 = vmatpush2.bf16.xpose.msra.mxu0 0
    %795 = vmatprep.subr.bf16.mxu0 0
    %796 = vmatpush2.bf16.xpose.msra.mxu0 0
    %797 = vmatprep.subr.bf16.mxu0 0
    %798 = vmatpush2.bf16.xpose.msra.mxu0 0
    %799 = vmatprep.subr.bf16.mxu0 0
    %800 = vmatpush2.bf16.xpose.msra.mxu0 0
    %801 = vmatprep.subr.bf16.mxu0 0
    %802 = vmatpush2.bf16.xpose.msra.mxu0 0
    %803 = vmatprep.mubr.bf16.mxu0 0
    %804 = vmatmul.mubr.bf16.gmra.mxu0 %v766
    %v805 = vpop.f32.mrf.mxu0
    %v806 = vadd.f32 0.0, %v805
    %v807 = vpop.f32.mrf.mxu0
    %v808 = vpop.f32.mrf.mxu0
    %v809 = vpop.f32.mrf.mxu0
    %810 = vdwg.mxu0
    %v811 = vmul.f32 %v754, 0.17677669
    %v812 = vmul.f32 %v806, 0.17677669
    %v813 = vsel %vm586, %v811, -inf
    %814 = vmax.xlane.f32.xlu0 %v813
    %v815 = vpop.xlane.xlu0 %814
    %v816 = vsel %vm586, %v812, -inf
    %817 = vmax.xlane.f32.xlu0 %v816
    %v818 = vpop.xlane.xlu0 %817
    %v819 = vsub.f32 %v811, %v815
    %v820 = vsub.f32 %v812, %v818
    %v821 = vmul.f32 %v819, 1.442695
    %v822 = vpow.pop %v821
    %v823 = vmul.f32 %v820, 1.442695
    %v824 = vpow.pop %v823
    %v825 = vsel %vm586, %v822, 0.0
    %826 = vadd.xlane.f32.xlu0 %v825
    %v827 = vpop.xlane.xlu0 %826
    %v828 = vsel %vm586, %v824, 0.0
    %829 = vadd.xlane.f32.xlu0 %v828
    %v830 = vpop.xlane.xlu0 %829
    %v831 = vrcp.pop %v827
    %v832 = vrcp.pop %v830
    %v833 = vmul.f32 %v822, %v831
    %v834 = vmul.f32 %v824, %v832
    %v835 = vpack.c.bf16 %v833, %v833
    %v836 = vpack.c.bf16 %v834, %v834
    %838 = vrot.lane.b32.xlu0 %v611, 96
    %v839 = vpop.permute.xlu0 %838
    %v841 = vsel %vm586, %v835, 0
    %v844 = vsel %vm616, %v839, 0
    %846 = vmatprep.subr.bf16.mxu0 0
    %847 = vmatpush1.bf16.msra.mxu0 0
    %848 = vmatprep.subr.bf16.mxu0 0
    %849 = vmatpush1.bf16.msra.mxu0 0
    %850 = vmatprep.subr.bf16.mxu0 0
    %851 = vmatpush1.bf16.msra.mxu0 0
    %852 = vmatprep.subr.bf16.mxu0 0
    %853 = vmatpush1.bf16.msra.mxu0 0
    %854 = vmatprep.subr.bf16.mxu0 0
    %855 = vmatpush1.bf16.msra.mxu0 0
    %856 = vmatprep.subr.bf16.mxu0 0
    %857 = vmatpush1.bf16.msra.mxu0 0
    %858 = vmatprep.subr.bf16.mxu0 0
    %859 = vmatpush1.bf16.msra.mxu0 0
    %860 = vmatprep.subr.bf16.mxu0 0
    %861 = vmatpush1.bf16.msra.mxu0 %v844
    %862 = vmatprep.subr.bf16.mxu0 0
    %863 = vmatpush2.bf16.msra.mxu0 0
    %864 = vmatprep.subr.bf16.mxu0 0
    %865 = vmatpush2.bf16.msra.mxu0 0
    %866 = vmatprep.subr.bf16.mxu0 0
    %867 = vmatpush2.bf16.msra.mxu0 0
    %868 = vmatprep.subr.bf16.mxu0 0
    %869 = vmatpush2.bf16.msra.mxu0 0
    %870 = vmatprep.subr.bf16.mxu0 0
    %871 = vmatpush2.bf16.msra.mxu0 0
    %872 = vmatprep.subr.bf16.mxu0 0
    %873 = vmatpush2.bf16.msra.mxu0 0
    %874 = vmatprep.subr.bf16.mxu0 0
    %875 = vmatpush2.bf16.msra.mxu0 0
    %876 = vmatprep.subr.bf16.mxu0 0
    %877 = vmatpush2.bf16.msra.mxu0 0
    %878 = vmatprep.mubr.bf16.mxu0 0
    %879 = vmatmul.mubr.bf16.gmra.mxu0 %v841
    %v880 = vpop.f32.mrf.mxu0
    %v881 = vadd.f32 0.0, %v880
    %v882 = vpop.f32.mrf.mxu0
    %v883 = vpop.f32.mrf.mxu0
    %v884 = vpop.f32.mrf.mxu0
    %885 = vdwg.mxu0
    %887 = vrot.lane.b32.xlu0 %v612, 96
    %v888 = vpop.permute.xlu0 %887
    %v890 = vsel %vm586, %v836, 0
    %v893 = vsel %vm616, %v888, 0
    %895 = vmatprep.subr.bf16.mxu0 0
    %896 = vmatpush1.bf16.msra.mxu0 0
    %897 = vmatprep.subr.bf16.mxu0 0
    %898 = vmatpush1.bf16.msra.mxu0 0
    %899 = vmatprep.subr.bf16.mxu0 0
    %900 = vmatpush1.bf16.msra.mxu0 0
    %901 = vmatprep.subr.bf16.mxu0 0
    %902 = vmatpush1.bf16.msra.mxu0 0
    %903 = vmatprep.subr.bf16.mxu0 0
    %904 = vmatpush1.bf16.msra.mxu0 0
    %905 = vmatprep.subr.bf16.mxu0 0
    %906 = vmatpush1.bf16.msra.mxu0 0
    %907 = vmatprep.subr.bf16.mxu0 0
    %908 = vmatpush1.bf16.msra.mxu0 0
    %909 = vmatprep.subr.bf16.mxu0 0
    %910 = vmatpush1.bf16.msra.mxu0 %v893
    %911 = vmatprep.subr.bf16.mxu0 0
    %912 = vmatpush2.bf16.msra.mxu0 0
    %913 = vmatprep.subr.bf16.mxu0 0
    %914 = vmatpush2.bf16.msra.mxu0 0
    %915 = vmatprep.subr.bf16.mxu0 0
    %916 = vmatpush2.bf16.msra.mxu0 0
    %917 = vmatprep.subr.bf16.mxu0 0
    %918 = vmatpush2.bf16.msra.mxu0 0
    %919 = vmatprep.subr.bf16.mxu0 0
    %920 = vmatpush2.bf16.msra.mxu0 0
    %921 = vmatprep.subr.bf16.mxu0 0
    %922 = vmatpush2.bf16.msra.mxu0 0
    %923 = vmatprep.subr.bf16.mxu0 0
    %924 = vmatpush2.bf16.msra.mxu0 0
    %925 = vmatprep.subr.bf16.mxu0 0
    %926 = vmatpush2.bf16.msra.mxu0 0
    %927 = vmatprep.mubr.bf16.mxu0 0
    %928 = vmatmul.mubr.bf16.gmra.mxu0 %v890
    %v929 = vpop.f32.mrf.mxu0
    %v930 = vadd.f32 0.0, %v929
    %v931 = vpop.f32.mrf.mxu0
    %v932 = vpop.f32.mrf.mxu0
    %v933 = vpop.f32.mrf.mxu0
    %934 = vdwg.mxu0
    %v935 = vpack.c.bf16 %v930, %v881
    %v940 = vunpack.c.l.b16 %v475
    %v941 = vunpack.c.l.b16 %v476
    %v942 = vunpack.c.l.b16 %v477
    %v943 = vunpack.c.l.b16 %v478
    %v944 = vpack.c.b16 %v941, %v940
    %v945 = vpack.c.b16 %v943, %v942
    %v949 = vsel %vm491, %v935, 0
    %951 = vmatprep.subr.bf16.mxu0 0
    %952 = vmatpush1.bf16.msra.mxu0 0
    %953 = vmatprep.subr.bf16.mxu0 0
    %954 = vmatpush1.bf16.msra.mxu0 0
    %955 = vmatprep.subr.bf16.mxu0 0
    %956 = vmatpush1.bf16.msra.mxu0 0
    %957 = vmatprep.subr.bf16.mxu0 0
    %958 = vmatpush1.bf16.msra.mxu0 0
    %959 = vmatprep.subr.bf16.mxu0 0
    %960 = vmatpush1.bf16.msra.mxu0 0
    %961 = vmatprep.subr.bf16.mxu0 0
    %962 = vmatpush1.bf16.msra.mxu0 0
    %963 = vmatprep.subr.bf16.mxu0 0
    %964 = vmatpush1.bf16.msra.mxu0 %v945
    %965 = vmatprep.subr.bf16.mxu0 0
    %966 = vmatpush1.bf16.msra.mxu0 %v944
    %967 = vmatprep.subr.bf16.mxu0 0
    %968 = vmatpush2.bf16.msra.mxu0 0
    %969 = vmatprep.subr.bf16.mxu0 0
    %970 = vmatpush2.bf16.msra.mxu0 0
    %971 = vmatprep.subr.bf16.mxu0 0
    %972 = vmatpush2.bf16.msra.mxu0 0
    %973 = vmatprep.subr.bf16.mxu0 0
    %974 = vmatpush2.bf16.msra.mxu0 0
    %975 = vmatprep.subr.bf16.mxu0 0
    %976 = vmatpush2.bf16.msra.mxu0 0
    %977 = vmatprep.subr.bf16.mxu0 0
    %978 = vmatpush2.bf16.msra.mxu0 0
    %979 = vmatprep.subr.bf16.mxu0 0
    %980 = vmatpush2.bf16.msra.mxu0 0
    %981 = vmatprep.subr.bf16.mxu0 0
    %982 = vmatpush2.bf16.msra.mxu0 0
    %983 = vmatprep.mubr.bf16.mxu0 0
    %984 = vmatmul.mubr.bf16.gmra.mxu0 %v949
    %v985 = vpop.f32.mrf.mxu0
    %v986 = vadd.f32 0.0, %v985
    %v987 = vpop.f32.mrf.mxu0
    %v988 = vpop.f32.mrf.mxu0
    %v989 = vadd.f32 0.0, %v988
    %v990 = vpop.f32.mrf.mxu0
    %991 = vdwg.mxu0
    %v996 = vunpack.c.l.b16 %v471
    %v997 = vunpack.c.l.b16 %v472
    %v998 = vunpack.c.l.b16 %v473
    %v999 = vunpack.c.l.b16 %v474
    %v1000 = vpack.c.b16 %v997, %v996
    %v1001 = vpack.c.b16 %v999, %v998
    %v1005 = vsel %vm491, %v706, 0
    %1007 = vmatprep.subr.bf16.mxu0 0
    %1008 = vmatpush1.bf16.msra.mxu0 0
    %1009 = vmatprep.subr.bf16.mxu0 0
    %1010 = vmatpush1.bf16.msra.mxu0 0
    %1011 = vmatprep.subr.bf16.mxu0 0
    %1012 = vmatpush1.bf16.msra.mxu0 0
    %1013 = vmatprep.subr.bf16.mxu0 0
    %1014 = vmatpush1.bf16.msra.mxu0 0
    %1015 = vmatprep.subr.bf16.mxu0 0
    %1016 = vmatpush1.bf16.msra.mxu0 0
    %1017 = vmatprep.subr.bf16.mxu0 0
    %1018 = vmatpush1.bf16.msra.mxu0 0
    %1019 = vmatprep.subr.bf16.mxu0 0
    %1020 = vmatpush1.bf16.msra.mxu0 %v1001
    %1021 = vmatprep.subr.bf16.mxu0 0
    %1022 = vmatpush1.bf16.msra.mxu0 %v1000
    %1023 = vmatprep.subr.bf16.mxu0 0
    %1024 = vmatpush2.bf16.msra.mxu0 0
    %1025 = vmatprep.subr.bf16.mxu0 0
    %1026 = vmatpush2.bf16.msra.mxu0 0
    %1027 = vmatprep.subr.bf16.mxu0 0
    %1028 = vmatpush2.bf16.msra.mxu0 0
    %1029 = vmatprep.subr.bf16.mxu0 0
    %1030 = vmatpush2.bf16.msra.mxu0 0
    %1031 = vmatprep.subr.bf16.mxu0 0
    %1032 = vmatpush2.bf16.msra.mxu0 0
    %1033 = vmatprep.subr.bf16.mxu0 0
    %1034 = vmatpush2.bf16.msra.mxu0 0
    %1035 = vmatprep.subr.bf16.mxu0 0
    %1036 = vmatpush2.bf16.msra.mxu0 0
    %1037 = vmatprep.subr.bf16.mxu0 0
    %1038 = vmatpush2.bf16.msra.mxu0 0
    %1039 = vmatprep.mubr.bf16.mxu0 0
    %1040 = vmatmul.mubr.bf16.gmra.mxu0 %v1005
    %v1041 = vpop.f32.mrf.mxu0
    %v1042 = vadd.f32 %v986, %v1041
    %v1043 = vpop.f32.mrf.mxu0
    %v1044 = vpop.f32.mrf.mxu0
    %v1045 = vadd.f32 %v989, %v1044
    %v1046 = vpop.f32.mrf.mxu0
    %1047 = vdwg.mxu0
    %1048 = vrot.lane.b32.xlu0 %v487, 64
    %v1049 = vpop.permute.xlu0 %1048
    %1050 = vrot.lane.b32.xlu0 %v489, 64
    %v1051 = vpop.permute.xlu0 %1050
    %v1053 = vsel %vm491, %v1049, 0
    %v1056 = vsel %vm491, %v1051, 0
    %1058 = vmatprep.subr.bf16.mxu0 0
    %1059 = vmatpush1.bf16.xpose.msra.mxu0 0
    %1060 = vmatprep.subr.bf16.mxu0 0
    %1061 = vmatpush1.bf16.xpose.msra.mxu0 0
    %1062 = vmatprep.subr.bf16.mxu0 0
    %1063 = vmatpush1.bf16.xpose.msra.mxu0 0
    %1064 = vmatprep.subr.bf16.mxu0 0
    %1065 = vmatpush1.bf16.xpose.msra.mxu0 0
    %1066 = vmatprep.subr.bf16.mxu0 0
    %1067 = vmatpush1.bf16.xpose.msra.mxu0 0
    %1068 = vmatprep.subr.bf16.mxu0 0
    %1069 = vmatpush1.bf16.xpose.msra.mxu0 0
    %1070 = vmatprep.subr.bf16.mxu0 0
    %1071 = vmatpush1.bf16.xpose.msra.mxu0 0
    %1072 = vmatprep.subr.bf16.mxu0 0
    %1073 = vmatpush1.bf16.xpose.msra.mxu0 %v1056
    %1074 = vmatprep.subr.bf16.mxu0 0
    %1075 = vmatpush2.bf16.xpose.msra.mxu0 0
    %1076 = vmatprep.subr.bf16.mxu0 0
    %1077 = vmatpush2.bf16.xpose.msra.mxu0 0
    %1078 = vmatprep.subr.bf16.mxu0 0
    %1079 = vmatpush2.bf16.xpose.msra.mxu0 0
    %1080 = vmatprep.subr.bf16.mxu0 0
    %1081 = vmatpush2.bf16.xpose.msra.mxu0 0
    %1082 = vmatprep.subr.bf16.mxu0 0
    %1083 = vmatpush2.bf16.xpose.msra.mxu0 0
    %1084 = vmatprep.subr.bf16.mxu0 0
    %1085 = vmatpush2.bf16.xpose.msra.mxu0 0
    %1086 = vmatprep.subr.bf16.mxu0 0
    %1087 = vmatpush2.bf16.xpose.msra.mxu0 0
    %1088 = vmatprep.subr.bf16.mxu0 0
    %1089 = vmatpush2.bf16.xpose.msra.mxu0 0
    %1090 = vmatprep.mubr.bf16.mxu0 0
    %1091 = vmatmul.mubr.bf16.gmra.mxu0 %v1053
    %v1092 = vpop.f32.mrf.mxu0
    %v1093 = vadd.f32 0.0, %v1092
    %v1094 = vpop.f32.mrf.mxu0
    %v1095 = vpop.f32.mrf.mxu0
    %v1096 = vpop.f32.mrf.mxu0
    %1097 = vdwg.mxu0
    %1098 = vrot.lane.b32.xlu0 %v488, 64
    %v1099 = vpop.permute.xlu0 %1098
    %1100 = vrot.lane.b32.xlu0 %v490, 64
    %v1101 = vpop.permute.xlu0 %1100
    %v1103 = vsel %vm491, %v1099, 0
    %v1106 = vsel %vm491, %v1101, 0
    %1108 = vmatprep.subr.bf16.mxu0 0
    %1109 = vmatpush1.bf16.xpose.msra.mxu0 0
    %1110 = vmatprep.subr.bf16.mxu0 0
    %1111 = vmatpush1.bf16.xpose.msra.mxu0 0
    %1112 = vmatprep.subr.bf16.mxu0 0
    %1113 = vmatpush1.bf16.xpose.msra.mxu0 0
    %1114 = vmatprep.subr.bf16.mxu0 0
    %1115 = vmatpush1.bf16.xpose.msra.mxu0 0
    %1116 = vmatprep.subr.bf16.mxu0 0
    %1117 = vmatpush1.bf16.xpose.msra.mxu0 0
    %1118 = vmatprep.subr.bf16.mxu0 0
    %1119 = vmatpush1.bf16.xpose.msra.mxu0 0
    %1120 = vmatprep.subr.bf16.mxu0 0
    %1121 = vmatpush1.bf16.xpose.msra.mxu0 0
    %1122 = vmatprep.subr.bf16.mxu0 0
    %1123 = vmatpush1.bf16.xpose.msra.mxu0 %v1106
    %1124 = vmatprep.subr.bf16.mxu0 0
    %1125 = vmatpush2.bf16.xpose.msra.mxu0 0
    %1126 = vmatprep.subr.bf16.mxu0 0
    %1127 = vmatpush2.bf16.xpose.msra.mxu0 0
    %1128 = vmatprep.subr.bf16.mxu0 0
    %1129 = vmatpush2.bf16.xpose.msra.mxu0 0
    %1130 = vmatprep.subr.bf16.mxu0 0
    %1131 = vmatpush2.bf16.xpose.msra.mxu0 0
    %1132 = vmatprep.subr.bf16.mxu0 0
    %1133 = vmatpush2.bf16.xpose.msra.mxu0 0
    %1134 = vmatprep.subr.bf16.mxu0 0
    %1135 = vmatpush2.bf16.xpose.msra.mxu0 0
    %1136 = vmatprep.subr.bf16.mxu0 0
    %1137 = vmatpush2.bf16.xpose.msra.mxu0 0
    %1138 = vmatprep.subr.bf16.mxu0 0
    %1139 = vmatpush2.bf16.xpose.msra.mxu0 0
    %1140 = vmatprep.mubr.bf16.mxu0 0
    %1141 = vmatmul.mubr.bf16.gmra.mxu0 %v1103
    %v1142 = vpop.f32.mrf.mxu0
    %v1143 = vadd.f32 0.0, %v1142
    %v1144 = vpop.f32.mrf.mxu0
    %v1145 = vpop.f32.mrf.mxu0
    %v1146 = vpop.f32.mrf.mxu0
    %1147 = vdwg.mxu0
    %v1148 = vmul.f32 %v1093, 0.17677669
    %v1149 = vmul.f32 %v1143, 0.17677669
    %v1150 = vsel %vm586, %v1148, -inf
    %1151 = vmax.xlane.f32.xlu0 %v1150
    %v1152 = vpop.xlane.xlu0 %1151
    %v1153 = vsel %vm586, %v1149, -inf
    %1154 = vmax.xlane.f32.xlu0 %v1153
    %v1155 = vpop.xlane.xlu0 %1154
    %v1156 = vsub.f32 %v1148, %v1152
    %v1157 = vsub.f32 %v1149, %v1155
    %v1158 = vmul.f32 %v1156, 1.442695
    %v1159 = vpow.pop %v1158
    %v1160 = vmul.f32 %v1157, 1.442695
    %v1161 = vpow.pop %v1160
    %v1162 = vsel %vm586, %v1159, 0.0
    %1163 = vadd.xlane.f32.xlu0 %v1162
    %v1164 = vpop.xlane.xlu0 %1163
    %v1165 = vsel %vm586, %v1161, 0.0
    %1166 = vadd.xlane.f32.xlu0 %v1165
    %v1167 = vpop.xlane.xlu0 %1166
    %v1168 = vrcp.pop %v1164
    %v1169 = vrcp.pop %v1167
    %v1170 = vmul.f32 %v1159, %v1168
    %v1171 = vmul.f32 %v1161, %v1169
    %v1172 = vpack.c.bf16 %v1170, %v1170
    %v1173 = vpack.c.bf16 %v1171, %v1171
    %1174 = vrot.lane.b32.xlu0 %v611, 64
    %v1175 = vpop.permute.xlu0 %1174
    %v1177 = vsel %vm586, %v1172, 0
    %v1180 = vsel %vm616, %v1175, 0
    %1182 = vmatprep.subr.bf16.mxu0 0
    %1183 = vmatpush1.bf16.msra.mxu0 0
    %1184 = vmatprep.subr.bf16.mxu0 0
    %1185 = vmatpush1.bf16.msra.mxu0 0
    %1186 = vmatprep.subr.bf16.mxu0 0
    %1187 = vmatpush1.bf16.msra.mxu0 0
    %1188 = vmatprep.subr.bf16.mxu0 0
    %1189 = vmatpush1.bf16.msra.mxu0 0
    %1190 = vmatprep.subr.bf16.mxu0 0
    %1191 = vmatpush1.bf16.msra.mxu0 0
    %1192 = vmatprep.subr.bf16.mxu0 0
    %1193 = vmatpush1.bf16.msra.mxu0 0
    %1194 = vmatprep.subr.bf16.mxu0 0
    %1195 = vmatpush1.bf16.msra.mxu0 0
    %1196 = vmatprep.subr.bf16.mxu0 0
    %1197 = vmatpush1.bf16.msra.mxu0 %v1180
    %1198 = vmatprep.subr.bf16.mxu0 0
    %1199 = vmatpush2.bf16.msra.mxu0 0
    %1200 = vmatprep.subr.bf16.mxu0 0
    %1201 = vmatpush2.bf16.msra.mxu0 0
    %1202 = vmatprep.subr.bf16.mxu0 0
    %1203 = vmatpush2.bf16.msra.mxu0 0
    %1204 = vmatprep.subr.bf16.mxu0 0
    %1205 = vmatpush2.bf16.msra.mxu0 0
    %1206 = vmatprep.subr.bf16.mxu0 0
    %1207 = vmatpush2.bf16.msra.mxu0 0
    %1208 = vmatprep.subr.bf16.mxu0 0
    %1209 = vmatpush2.bf16.msra.mxu0 0
    %1210 = vmatprep.subr.bf16.mxu0 0
    %1211 = vmatpush2.bf16.msra.mxu0 0
    %1212 = vmatprep.subr.bf16.mxu0 0
    %1213 = vmatpush2.bf16.msra.mxu0 0
    %1214 = vmatprep.mubr.bf16.mxu0 0
    %1215 = vmatmul.mubr.bf16.gmra.mxu0 %v1177
    %v1216 = vpop.f32.mrf.mxu0
    %v1217 = vadd.f32 0.0, %v1216
    %v1218 = vpop.f32.mrf.mxu0
    %v1219 = vpop.f32.mrf.mxu0
    %v1220 = vpop.f32.mrf.mxu0
    %1221 = vdwg.mxu0
    %1222 = vrot.lane.b32.xlu0 %v612, 64
    %v1223 = vpop.permute.xlu0 %1222
    %v1225 = vsel %vm586, %v1173, 0
    %v1228 = vsel %vm616, %v1223, 0
    %1230 = vmatprep.subr.bf16.mxu0 0
    %1231 = vmatpush1.bf16.msra.mxu0 0
    %1232 = vmatprep.subr.bf16.mxu0 0
    %1233 = vmatpush1.bf16.msra.mxu0 0
    %1234 = vmatprep.subr.bf16.mxu0 0
    %1235 = vmatpush1.bf16.msra.mxu0 0
    %1236 = vmatprep.subr.bf16.mxu0 0
    %1237 = vmatpush1.bf16.msra.mxu0 0
    %1238 = vmatprep.subr.bf16.mxu0 0
    %1239 = vmatpush1.bf16.msra.mxu0 0
    %1240 = vmatprep.subr.bf16.mxu0 0
    %1241 = vmatpush1.bf16.msra.mxu0 0
    %1242 = vmatprep.subr.bf16.mxu0 0
    %1243 = vmatpush1.bf16.msra.mxu0 0
    %1244 = vmatprep.subr.bf16.mxu0 0
    %1245 = vmatpush1.bf16.msra.mxu0 %v1228
    %1246 = vmatprep.subr.bf16.mxu0 0
    %1247 = vmatpush2.bf16.msra.mxu0 0
    %1248 = vmatprep.subr.bf16.mxu0 0
    %1249 = vmatpush2.bf16.msra.mxu0 0
    %1250 = vmatprep.subr.bf16.mxu0 0
    %1251 = vmatpush2.bf16.msra.mxu0 0
    %1252 = vmatprep.subr.bf16.mxu0 0
    %1253 = vmatpush2.bf16.msra.mxu0 0
    %1254 = vmatprep.subr.bf16.mxu0 0
    %1255 = vmatpush2.bf16.msra.mxu0 0
    %1256 = vmatprep.subr.bf16.mxu0 0
    %1257 = vmatpush2.bf16.msra.mxu0 0
    %1258 = vmatprep.subr.bf16.mxu0 0
    %1259 = vmatpush2.bf16.msra.mxu0 0
    %1260 = vmatprep.subr.bf16.mxu0 0
    %1261 = vmatpush2.bf16.msra.mxu0 0
    %1262 = vmatprep.mubr.bf16.mxu0 0
    %1263 = vmatmul.mubr.bf16.gmra.mxu0 %v1225
    %v1264 = vpop.f32.mrf.mxu0
    %v1265 = vadd.f32 0.0, %v1264
    %v1266 = vpop.f32.mrf.mxu0
    %v1267 = vpop.f32.mrf.mxu0
    %v1268 = vpop.f32.mrf.mxu0
    %1269 = vdwg.mxu0
    %v1270 = vpack.c.bf16 %v1265, %v1217
    %v1275 = vunpack.c.l.b16 %v479
    %v1276 = vunpack.c.l.b16 %v480
    %v1277 = vunpack.c.l.b16 %v481
    %v1278 = vunpack.c.l.b16 %v482
    %v1279 = vpack.c.b16 %v1276, %v1275
    %v1280 = vpack.c.b16 %v1278, %v1277
    %v1284 = vsel %vm491, %v1270, 0
    %1286 = vmatprep.subr.bf16.mxu0 0
    %1287 = vmatpush1.bf16.msra.mxu0 0
    %1288 = vmatprep.subr.bf16.mxu0 0
    %1289 = vmatpush1.bf16.msra.mxu0 0
    %1290 = vmatprep.subr.bf16.mxu0 0
    %1291 = vmatpush1.bf16.msra.mxu0 0
    %1292 = vmatprep.subr.bf16.mxu0 0
    %1293 = vmatpush1.bf16.msra.mxu0 0
    %1294 = vmatprep.subr.bf16.mxu0 0
    %1295 = vmatpush1.bf16.msra.mxu0 0
    %1296 = vmatprep.subr.bf16.mxu0 0
    %1297 = vmatpush1.bf16.msra.mxu0 0
    %1298 = vmatprep.subr.bf16.mxu0 0
    %1299 = vmatpush1.bf16.msra.mxu0 %v1280
    %1300 = vmatprep.subr.bf16.mxu0 0
    %1301 = vmatpush1.bf16.msra.mxu0 %v1279
    %1302 = vmatprep.subr.bf16.mxu0 0
    %1303 = vmatpush2.bf16.msra.mxu0 0
    %1304 = vmatprep.subr.bf16.mxu0 0
    %1305 = vmatpush2.bf16.msra.mxu0 0
    %1306 = vmatprep.subr.bf16.mxu0 0
    %1307 = vmatpush2.bf16.msra.mxu0 0
    %1308 = vmatprep.subr.bf16.mxu0 0
    %1309 = vmatpush2.bf16.msra.mxu0 0
    %1310 = vmatprep.subr.bf16.mxu0 0
    %1311 = vmatpush2.bf16.msra.mxu0 0
    %1312 = vmatprep.subr.bf16.mxu0 0
    %1313 = vmatpush2.bf16.msra.mxu0 0
    %1314 = vmatprep.subr.bf16.mxu0 0
    %1315 = vmatpush2.bf16.msra.mxu0 0
    %1316 = vmatprep.subr.bf16.mxu0 0
    %1317 = vmatpush2.bf16.msra.mxu0 0
    %1318 = vmatprep.mubr.bf16.mxu0 0
    %1319 = vmatmul.mubr.bf16.gmra.mxu0 %v1284
    %v1320 = vpop.f32.mrf.mxu0
    %v1321 = vadd.f32 0.0, %v1320
    %v1322 = vpop.f32.mrf.mxu0
    %v1323 = vpop.f32.mrf.mxu0
    %v1324 = vadd.f32 0.0, %v1323
    %v1325 = vpop.f32.mrf.mxu0
    %1326 = vdwg.mxu0
    %v1327 = vadd.f32 %v1042, %v1321
    %v1328 = vadd.f32 %v1045, %v1324
    %1329 = vrot.lane.b32.xlu0 %v487, 32
    %v1330 = vpop.permute.xlu0 %1329
    %1331 = vrot.lane.b32.xlu0 %v489, 32
    %v1332 = vpop.permute.xlu0 %1331
    %v1334 = vsel %vm491, %v1330, 0
    %v1337 = vsel %vm491, %v1332, 0
    %1339 = vmatprep.subr.bf16.mxu0 0
    %1340 = vmatpush1.bf16.xpose.msra.mxu0 0
    %1341 = vmatprep.subr.bf16.mxu0 0
    %1342 = vmatpush1.bf16.xpose.msra.mxu0 0
    %1343 = vmatprep.subr.bf16.mxu0 0
    %1344 = vmatpush1.bf16.xpose.msra.mxu0 0
    %1345 = vmatprep.subr.bf16.mxu0 0
    %1346 = vmatpush1.bf16.xpose.msra.mxu0 0
    %1347 = vmatprep.subr.bf16.mxu0 0
    %1348 = vmatpush1.bf16.xpose.msra.mxu0 0
    %1349 = vmatprep.subr.bf16.mxu0 0
    %1350 = vmatpush1.bf16.xpose.msra.mxu0 0
    %1351 = vmatprep.subr.bf16.mxu0 0
    %1352 = vmatpush1.bf16.xpose.msra.mxu0 0
    %1353 = vmatprep.subr.bf16.mxu0 0
    %1354 = vmatpush1.bf16.xpose.msra.mxu0 %v1337
    %1355 = vmatprep.subr.bf16.mxu0 0
    %1356 = vmatpush2.bf16.xpose.msra.mxu0 0
    %1357 = vmatprep.subr.bf16.mxu0 0
    %1358 = vmatpush2.bf16.xpose.msra.mxu0 0
    %1359 = vmatprep.subr.bf16.mxu0 0
    %1360 = vmatpush2.bf16.xpose.msra.mxu0 0
    %1361 = vmatprep.subr.bf16.mxu0 0
    %1362 = vmatpush2.bf16.xpose.msra.mxu0 0
    %1363 = vmatprep.subr.bf16.mxu0 0
    %1364 = vmatpush2.bf16.xpose.msra.mxu0 0
    %1365 = vmatprep.subr.bf16.mxu0 0
    %1366 = vmatpush2.bf16.xpose.msra.mxu0 0
    %1367 = vmatprep.subr.bf16.mxu0 0
    %1368 = vmatpush2.bf16.xpose.msra.mxu0 0
    %1369 = vmatprep.subr.bf16.mxu0 0
    %1370 = vmatpush2.bf16.xpose.msra.mxu0 0
    %1371 = vmatprep.mubr.bf16.mxu0 0
    %1372 = vmatmul.mubr.bf16.gmra.mxu0 %v1334
    %v1373 = vpop.f32.mrf.mxu0
    %v1374 = vadd.f32 0.0, %v1373
    %v1375 = vpop.f32.mrf.mxu0
    %v1376 = vpop.f32.mrf.mxu0
    %v1377 = vpop.f32.mrf.mxu0
    %1378 = vdwg.mxu0
    %1379 = vrot.lane.b32.xlu0 %v488, 32
    %v1380 = vpop.permute.xlu0 %1379
    %1381 = vrot.lane.b32.xlu0 %v490, 32
    %v1382 = vpop.permute.xlu0 %1381
    %v1384 = vsel %vm491, %v1380, 0
    %v1387 = vsel %vm491, %v1382, 0
    %1389 = vmatprep.subr.bf16.mxu0 0
    %1390 = vmatpush1.bf16.xpose.msra.mxu0 0
    %1391 = vmatprep.subr.bf16.mxu0 0
    %1392 = vmatpush1.bf16.xpose.msra.mxu0 0
    %1393 = vmatprep.subr.bf16.mxu0 0
    %1394 = vmatpush1.bf16.xpose.msra.mxu0 0
    %1395 = vmatprep.subr.bf16.mxu0 0
    %1396 = vmatpush1.bf16.xpose.msra.mxu0 0
    %1397 = vmatprep.subr.bf16.mxu0 0
    %1398 = vmatpush1.bf16.xpose.msra.mxu0 0
    %1399 = vmatprep.subr.bf16.mxu0 0
    %1400 = vmatpush1.bf16.xpose.msra.mxu0 0
    %1401 = vmatprep.subr.bf16.mxu0 0
    %1402 = vmatpush1.bf16.xpose.msra.mxu0 0
    %1403 = vmatprep.subr.bf16.mxu0 0
    %1404 = vmatpush1.bf16.xpose.msra.mxu0 %v1387
    %1405 = vmatprep.subr.bf16.mxu0 0
    %1406 = vmatpush2.bf16.xpose.msra.mxu0 0
    %1407 = vmatprep.subr.bf16.mxu0 0
    %1408 = vmatpush2.bf16.xpose.msra.mxu0 0
    %1409 = vmatprep.subr.bf16.mxu0 0
    %1410 = vmatpush2.bf16.xpose.msra.mxu0 0
    %1411 = vmatprep.subr.bf16.mxu0 0
    %1412 = vmatpush2.bf16.xpose.msra.mxu0 0
    %1413 = vmatprep.subr.bf16.mxu0 0
    %1414 = vmatpush2.bf16.xpose.msra.mxu0 0
    %1415 = vmatprep.subr.bf16.mxu0 0
    %1416 = vmatpush2.bf16.xpose.msra.mxu0 0
    %1417 = vmatprep.subr.bf16.mxu0 0
    %1418 = vmatpush2.bf16.xpose.msra.mxu0 0
    %1419 = vmatprep.subr.bf16.mxu0 0
    %1420 = vmatpush2.bf16.xpose.msra.mxu0 0
    %1421 = vmatprep.mubr.bf16.mxu0 0
    %1422 = vmatmul.mubr.bf16.gmra.mxu0 %v1384
    %v1423 = vpop.f32.mrf.mxu0
    %v1424 = vadd.f32 0.0, %v1423
    %v1425 = vpop.f32.mrf.mxu0
    %v1426 = vpop.f32.mrf.mxu0
    %v1427 = vpop.f32.mrf.mxu0
    %1428 = vdwg.mxu0
    %v1429 = vmul.f32 %v1374, 0.17677669
    %v1430 = vmul.f32 %v1424, 0.17677669
    %v1431 = vsel %vm586, %v1429, -inf
    %1432 = vmax.xlane.f32.xlu0 %v1431
    %v1433 = vpop.xlane.xlu0 %1432
    %v1434 = vsel %vm586, %v1430, -inf
    %1435 = vmax.xlane.f32.xlu0 %v1434
    %v1436 = vpop.xlane.xlu0 %1435
    %v1437 = vsub.f32 %v1429, %v1433
    %v1438 = vsub.f32 %v1430, %v1436
    %v1439 = vmul.f32 %v1437, 1.442695
    %v1440 = vpow.pop %v1439
    %v1441 = vmul.f32 %v1438, 1.442695
    %v1442 = vpow.pop %v1441
    %v1443 = vsel %vm586, %v1440, 0.0
    %1444 = vadd.xlane.f32.xlu0 %v1443
    %v1445 = vpop.xlane.xlu0 %1444
    %v1446 = vsel %vm586, %v1442, 0.0
    %1447 = vadd.xlane.f32.xlu0 %v1446
    %v1448 = vpop.xlane.xlu0 %1447
    %v1449 = vrcp.pop %v1445
    %v1450 = vrcp.pop %v1448
    %v1451 = vmul.f32 %v1440, %v1449
    %v1452 = vmul.f32 %v1442, %v1450
    %v1453 = vpack.c.bf16 %v1451, %v1451
    %v1454 = vpack.c.bf16 %v1452, %v1452
    %1455 = vrot.lane.b32.xlu0 %v611, 32
    %v1456 = vpop.permute.xlu0 %1455
    %v1458 = vsel %vm586, %v1453, 0
    %v1461 = vsel %vm616, %v1456, 0
    %1463 = vmatprep.subr.bf16.mxu0 0
    %1464 = vmatpush1.bf16.msra.mxu0 0
    %1465 = vmatprep.subr.bf16.mxu0 0
    %1466 = vmatpush1.bf16.msra.mxu0 0
    %1467 = vmatprep.subr.bf16.mxu0 0
    %1468 = vmatpush1.bf16.msra.mxu0 0
    %1469 = vmatprep.subr.bf16.mxu0 0
    %1470 = vmatpush1.bf16.msra.mxu0 0
    %1471 = vmatprep.subr.bf16.mxu0 0
    %1472 = vmatpush1.bf16.msra.mxu0 0
    %1473 = vmatprep.subr.bf16.mxu0 0
    %1474 = vmatpush1.bf16.msra.mxu0 0
    %1475 = vmatprep.subr.bf16.mxu0 0
    %1476 = vmatpush1.bf16.msra.mxu0 0
    %1477 = vmatprep.subr.bf16.mxu0 0
    %1478 = vmatpush1.bf16.msra.mxu0 %v1461
    %1479 = vmatprep.subr.bf16.mxu0 0
    %1480 = vmatpush2.bf16.msra.mxu0 0
    %1481 = vmatprep.subr.bf16.mxu0 0
    %1482 = vmatpush2.bf16.msra.mxu0 0
    %1483 = vmatprep.subr.bf16.mxu0 0
    %1484 = vmatpush2.bf16.msra.mxu0 0
    %1485 = vmatprep.subr.bf16.mxu0 0
    %1486 = vmatpush2.bf16.msra.mxu0 0
    %1487 = vmatprep.subr.bf16.mxu0 0
    %1488 = vmatpush2.bf16.msra.mxu0 0
    %1489 = vmatprep.subr.bf16.mxu0 0
    %1490 = vmatpush2.bf16.msra.mxu0 0
    %1491 = vmatprep.subr.bf16.mxu0 0
    %1492 = vmatpush2.bf16.msra.mxu0 0
    %1493 = vmatprep.subr.bf16.mxu0 0
    %1494 = vmatpush2.bf16.msra.mxu0 0
    %1495 = vmatprep.mubr.bf16.mxu0 0
    %1496 = vmatmul.mubr.bf16.gmra.mxu0 %v1458
    %v1497 = vpop.f32.mrf.mxu0
    %v1498 = vadd.f32 0.0, %v1497
    %v1499 = vpop.f32.mrf.mxu0
    %v1500 = vpop.f32.mrf.mxu0
    %v1501 = vpop.f32.mrf.mxu0
    %1502 = vdwg.mxu0
    %1503 = vrot.lane.b32.xlu0 %v612, 32
    %v1504 = vpop.permute.xlu0 %1503
    %v1506 = vsel %vm586, %v1454, 0
    %v1509 = vsel %vm616, %v1504, 0
    %1511 = vmatprep.subr.bf16.mxu0 0
    %1512 = vmatpush1.bf16.msra.mxu0 0
    %1513 = vmatprep.subr.bf16.mxu0 0
    %1514 = vmatpush1.bf16.msra.mxu0 0
    %1515 = vmatprep.subr.bf16.mxu0 0
    %1516 = vmatpush1.bf16.msra.mxu0 0
    %1517 = vmatprep.subr.bf16.mxu0 0
    %1518 = vmatpush1.bf16.msra.mxu0 0
    %1519 = vmatprep.subr.bf16.mxu0 0
    %1520 = vmatpush1.bf16.msra.mxu0 0
    %1521 = vmatprep.subr.bf16.mxu0 0
    %1522 = vmatpush1.bf16.msra.mxu0 0
    %1523 = vmatprep.subr.bf16.mxu0 0
    %1524 = vmatpush1.bf16.msra.mxu0 0
    %1525 = vmatprep.subr.bf16.mxu0 0
    %1526 = vmatpush1.bf16.msra.mxu0 %v1509
    %1527 = vmatprep.subr.bf16.mxu0 0
    %1528 = vmatpush2.bf16.msra.mxu0 0
    %1529 = vmatprep.subr.bf16.mxu0 0
    %1530 = vmatpush2.bf16.msra.mxu0 0
    %1531 = vmatprep.subr.bf16.mxu0 0
    %1532 = vmatpush2.bf16.msra.mxu0 0
    %1533 = vmatprep.subr.bf16.mxu0 0
    %1534 = vmatpush2.bf16.msra.mxu0 0
    %1535 = vmatprep.subr.bf16.mxu0 0
    %1536 = vmatpush2.bf16.msra.mxu0 0
    %1537 = vmatprep.subr.bf16.mxu0 0
    %1538 = vmatpush2.bf16.msra.mxu0 0
    %1539 = vmatprep.subr.bf16.mxu0 0
    %1540 = vmatpush2.bf16.msra.mxu0 0
    %1541 = vmatprep.subr.bf16.mxu0 0
    %1542 = vmatpush2.bf16.msra.mxu0 0
    %1543 = vmatprep.mubr.bf16.mxu0 0
    %1544 = vmatmul.mubr.bf16.gmra.mxu0 %v1506
    %v1545 = vpop.f32.mrf.mxu0
    %v1546 = vadd.f32 0.0, %v1545
    %v1547 = vpop.f32.mrf.mxu0
    %v1548 = vpop.f32.mrf.mxu0
    %v1549 = vpop.f32.mrf.mxu0
    %1550 = vdwg.mxu0
    %v1551 = vpack.c.bf16 %v1546, %v1498
    %v1556 = vunpack.c.l.b16 %v483
    %v1557 = vunpack.c.l.b16 %v484
    %v1558 = vunpack.c.l.b16 %v485
    %v1559 = vunpack.c.l.b16 %v486
    %v1560 = vpack.c.b16 %v1557, %v1556
    %v1561 = vpack.c.b16 %v1559, %v1558
    %v1565 = vsel %vm491, %v1551, 0
    %1567 = vmatprep.subr.bf16.mxu0 0
    %1568 = vmatpush1.bf16.msra.mxu0 0
    %1569 = vmatprep.subr.bf16.mxu0 0
    %1570 = vmatpush1.bf16.msra.mxu0 0
    %1571 = vmatprep.subr.bf16.mxu0 0
    %1572 = vmatpush1.bf16.msra.mxu0 0
    %1573 = vmatprep.subr.bf16.mxu0 0
    %1574 = vmatpush1.bf16.msra.mxu0 0
    %1575 = vmatprep.subr.bf16.mxu0 0
    %1576 = vmatpush1.bf16.msra.mxu0 0
    %1577 = vmatprep.subr.bf16.mxu0 0
    %1578 = vmatpush1.bf16.msra.mxu0 0
    %1579 = vmatprep.subr.bf16.mxu0 0
    %1580 = vmatpush1.bf16.msra.mxu0 %v1561
    %1581 = vmatprep.subr.bf16.mxu0 0
    %1582 = vmatpush1.bf16.msra.mxu0 %v1560
    %1583 = vmatprep.subr.bf16.mxu0 0
    %1584 = vmatpush2.bf16.msra.mxu0 0
    %1585 = vmatprep.subr.bf16.mxu0 0
    %1586 = vmatpush2.bf16.msra.mxu0 0
    %1587 = vmatprep.subr.bf16.mxu0 0
    %1588 = vmatpush2.bf16.msra.mxu0 0
    %1589 = vmatprep.subr.bf16.mxu0 0
    %1590 = vmatpush2.bf16.msra.mxu0 0
    %1591 = vmatprep.subr.bf16.mxu0 0
    %1592 = vmatpush2.bf16.msra.mxu0 0
    %1593 = vmatprep.subr.bf16.mxu0 0
    %1594 = vmatpush2.bf16.msra.mxu0 0
    %1595 = vmatprep.subr.bf16.mxu0 0
    %1596 = vmatpush2.bf16.msra.mxu0 0
    %1597 = vmatprep.subr.bf16.mxu0 0
    %1598 = vmatpush2.bf16.msra.mxu0 0
    %1599 = vmatprep.mubr.bf16.mxu0 0
    %1600 = vmatmul.mubr.bf16.gmra.mxu0 %v1565
    %v1601 = vpop.f32.mrf.mxu0
    %v1602 = vadd.f32 0.0, %v1601
    %v1603 = vpop.f32.mrf.mxu0
    %v1604 = vpop.f32.mrf.mxu0
    %v1605 = vadd.f32 0.0, %v1604
    %v1606 = vpop.f32.mrf.mxu0
    %1607 = vdwg.mxu0
    %v1608 = vadd.f32 %v1327, %v1602
    %v1609 = vadd.f32 %v1328, %v1605
    %v1610 = vadd.f32 %v182, %v1608
    %v1611 = vadd.f32 %v183, %v1609
    %v1612 = vld [vmem:[#allocation11] sm:$0x1]
    %v1614 = vlaneseq
    %v1615 = vshrl.u32 %v1614, 7
    %v1616 = vsub.s32 0, %v1615
    %v1617 = vrot.slane %v1612, %v1616
    %v1619 = vadd.f32 %v1610, %v1617
    %v1620 = vadd.f32 %v1611, %v1617
    %v1621 = vld [vmem:[%s6] sm:$0x1]
    %v1622 = vld [vmem:[%s7] sm:$0x1]
    %1623 = vadd.xlane.f32.xlu0 %v1619
    %v1624 = vpop.xlane.xlu0 %1623
    %1625 = vadd.xlane.f32.xlu0 %v1620
    %v1626 = vpop.xlane.xlu0 %1625
    %v1627 = vmul.f32 %v1624, 0.010416667
    %v1628 = vmul.f32 %v1626, 0.010416667
    %v1629 = vsub.f32 %v1619, %v1627
    %v1630 = vsub.f32 %v1620, %v1628
    %v1631 = vmul.f32 %v1629, %v181
    %v1632 = vmul.f32 %v1630, %v181
    %v1633 = vmul.f32 %v1631, %v1631
    %v1634 = vmul.f32 %v1632, %v1632
    %1635 = vadd.xlane.f32.xlu0 %v1633
    %v1636 = vpop.xlane.xlu0 %1635
    %1637 = vadd.xlane.f32.xlu0 %v1634
    %v1638 = vpop.xlane.xlu0 %1637
    %v1639 = vmul.f32 %v1636, 0.010416667
    %v1640 = vmul.f32 %v1638, 0.010416667
    %v1641 = vadd.f32 %v1639, 1e-05
    %v1642 = vadd.f32 %v1640, 1e-05
    %v1643 = vrsqrt.pop %v1641
    %v1644 = vrsqrt.pop %v1642
    %v1645 = vmul.f32 %v1631, %v1643
    %v1646 = vmul.f32 %v1632, %v1644
    %v1648 = vlaneseq
    %v1649 = vshrl.u32 %v1648, 7
    %v1650 = vsub.s32 0, %v1649
    %v1651 = vrot.slane %v1621, %v1650
    %v1653 = vmul.f32 %v1645, %v1651
    %v1654 = vmul.f32 %v1646, %v1651
    %v1656 = vlaneseq
    %v1657 = vshrl.u32 %v1656, 7
    %v1658 = vsub.s32 0, %v1657
    %v1659 = vrot.slane %v1622, %v1658
    %v1661 = vadd.f32 %v1653, %v1659
    %v1662 = vadd.f32 %v1654, %v1659
    %v1663 = vpack.c.bf16 %v1662, %v1661
    %v1664 = vld [vmem:[#allocation13] sm:$0xff]
    %v1665 = vld [vmem:[#allocation13 + $0x8] sm:$0xff]
    %v1666 = vld [vmem:[#allocation13 + $0x10] sm:$0xff]
    %v1667 = vld [vmem:[#allocation13 + $0x18] sm:$0xff]
    %v1668 = vld [vmem:[#allocation13 + $0x20] sm:$0xff]
    %v1669 = vld [vmem:[#allocation13 + $0x28] sm:$0xff]
    %v1670 = vld [vmem:[#allocation13 + $0x30] sm:$0xff]
    %v1671 = vld [vmem:[#allocation13 + $0x38] sm:$0xff]
    %v1672 = vld [vmem:[#allocation13 + $0x40] sm:$0xff]
    %v1673 = vld [vmem:[#allocation13 + $0x48] sm:$0xff]
    %v1674 = vld [vmem:[#allocation13 + $0x50] sm:$0xff]
    %v1675 = vld [vmem:[#allocation13 + $0x58] sm:$0xff]
    %v1676 = vld [vmem:[#allocation13 + $0x60] sm:$0xff]
    %v1677 = vld [vmem:[#allocation13 + $0x68] sm:$0xff]
    %v1678 = vld [vmem:[#allocation13 + $0x70] sm:$0xff]
    %v1679 = vld [vmem:[#allocation13 + $0x78] sm:$0xff]
    %v1680 = vld [vmem:[%s9] sm:$0x3]
    %v1682 = vlaneseq
    %v1683 = vshrl.u32 %v1682, 7
    %v1684 = vsub.s32 0, %v1683
    %v1685 = vrot.slane %v1680, %v1684
    %v1686 = vlaneseq
    %v1687 = vshrl.u32 %v1686, 7
    %v1688 = vsub.s32 1, %v1687
    %v1689 = vrot.slane %v1680, %v1688
    %v1708 = vunpack.c.l.b16 %v1664
    %v1709 = vunpack.c.h.b16 %v1664
    %v1710 = vunpack.c.l.b16 %v1665
    %v1711 = vunpack.c.h.b16 %v1665
    %v1712 = vunpack.c.l.b16 %v1666
    %v1713 = vunpack.c.h.b16 %v1666
    %v1714 = vunpack.c.l.b16 %v1667
    %v1715 = vunpack.c.h.b16 %v1667
    %v1716 = vunpack.c.l.b16 %v1668
    %v1717 = vunpack.c.h.b16 %v1668
    %v1718 = vunpack.c.l.b16 %v1669
    %v1719 = vunpack.c.h.b16 %v1669
    %v1720 = vunpack.c.l.b16 %v1670
    %v1721 = vunpack.c.h.b16 %v1670
    %v1722 = vunpack.c.l.b16 %v1671
    %v1723 = vunpack.c.h.b16 %v1671
    %v1724 = vunpack.c.l.b16 %v1672
    %v1725 = vunpack.c.h.b16 %v1672
    %v1726 = vunpack.c.l.b16 %v1673
    %v1727 = vunpack.c.h.b16 %v1673
    %v1728 = vunpack.c.l.b16 %v1674
    %v1729 = vunpack.c.h.b16 %v1674
    %v1730 = vunpack.c.l.b16 %v1675
    %v1731 = vunpack.c.h.b16 %v1675
    %v1732 = vunpack.c.l.b16 %v1676
    %v1733 = vunpack.c.h.b16 %v1676
    %v1734 = vunpack.c.l.b16 %v1677
    %v1735 = vunpack.c.h.b16 %v1677
    %v1736 = vunpack.c.l.b16 %v1678
    %v1737 = vunpack.c.h.b16 %v1678
    %v1738 = vunpack.c.l.b16 %v1679
    %v1739 = vunpack.c.h.b16 %v1679
    %v1740 = vpack.c.b16 %v1710, %v1708
    %v1741 = vpack.c.b16 %v1711, %v1709
    %v1742 = vpack.c.b16 %v1714, %v1712
    %v1743 = vpack.c.b16 %v1715, %v1713
    %v1744 = vpack.c.b16 %v1718, %v1716
    %v1745 = vpack.c.b16 %v1719, %v1717
    %v1746 = vpack.c.b16 %v1722, %v1720
    %v1747 = vpack.c.b16 %v1723, %v1721
    %v1748 = vpack.c.b16 %v1726, %v1724
    %v1749 = vpack.c.b16 %v1727, %v1725
    %v1750 = vpack.c.b16 %v1730, %v1728
    %v1751 = vpack.c.b16 %v1731, %v1729
    %v1752 = vpack.c.b16 %v1734, %v1732
    %v1753 = vpack.c.b16 %v1735, %v1733
    %v1754 = vpack.c.b16 %v1738, %v1736
    %v1755 = vpack.c.b16 %v1739, %v1737
    %1772 = vmatprep.subr.bf16.mxu0 %v1755
    %1773 = vmatpush1.bf16.msra.mxu0 %v1754
    %1774 = vmatprep.subr.bf16.mxu0 %v1753
    %1775 = vmatpush1.bf16.msra.mxu0 %v1752
    %1776 = vmatprep.subr.bf16.mxu0 %v1751
    %1777 = vmatpush1.bf16.msra.mxu0 %v1750
    %1778 = vmatprep.subr.bf16.mxu0 %v1749
    %1779 = vmatpush1.bf16.msra.mxu0 %v1748
    %1780 = vmatprep.subr.bf16.mxu0 %v1747
    %1781 = vmatpush1.bf16.msra.mxu0 %v1746
    %1782 = vmatprep.subr.bf16.mxu0 %v1745
    %1783 = vmatpush1.bf16.msra.mxu0 %v1744
    %1784 = vmatprep.subr.bf16.mxu0 %v1743
    %1785 = vmatpush1.bf16.msra.mxu0 %v1742
    %1786 = vmatprep.subr.bf16.mxu0 %v1741
    %1787 = vmatpush1.bf16.msra.mxu0 %v1740
    %1788 = vmatprep.subr.bf16.mxu0 0
    %1789 = vmatpush2.bf16.msra.mxu0 0
    %1790 = vmatprep.subr.bf16.mxu0 0
    %1791 = vmatpush2.bf16.msra.mxu0 0
    %1792 = vmatprep.subr.bf16.mxu0 0
    %1793 = vmatpush2.bf16.msra.mxu0 0
    %1794 = vmatprep.subr.bf16.mxu0 0
    %1795 = vmatpush2.bf16.msra.mxu0 0
    %1796 = vmatprep.subr.bf16.mxu0 0
    %1797 = vmatpush2.bf16.msra.mxu0 0
    %1798 = vmatprep.subr.bf16.mxu0 0
    %1799 = vmatpush2.bf16.msra.mxu0 0
    %1800 = vmatprep.subr.bf16.mxu0 0
    %1801 = vmatpush2.bf16.msra.mxu0 0
    %1802 = vmatprep.subr.bf16.mxu0 0
    %1803 = vmatpush2.bf16.msra.mxu0 0
    %1804 = vmatprep.mubr.bf16.mxu0 0
    %1805 = vmatmul.mubr.bf16.gmra.mxu0 %v1663
    %v1806 = vpop.f32.mrf.mxu0
    %v1807 = vadd.f32 %v1685, %v1806
    %v1808 = vpop.f32.mrf.mxu0
    %v1809 = vadd.f32 %v1689, %v1808
    %v1810 = vpop.f32.mrf.mxu0
    %v1811 = vadd.f32 %v1685, %v1810
    %v1812 = vpop.f32.mrf.mxu0
    %v1813 = vadd.f32 %v1689, %v1812
    %1814 = vdwg.mxu0
    %v1815 = vtanh.pop %v1807
    %v1816 = vtanh.pop %v1809
    %v1817 = vtanh.pop %v1811
    %v1818 = vtanh.pop %v1813
    %v1819 = vpack.c.bf16 %v1817, %v1815
    %v1820 = vpack.c.bf16 %v1818, %v1816
    %v1821 = vld [vmem:[#allocation14] sm:$0xf]
    %v1822 = vld [vmem:[#allocation14 + $0x4] sm:$0xf]
    %v1823 = vld [vmem:[#allocation14 + $0x8] sm:$0xf]
    %v1824 = vld [vmem:[#allocation14 + $0xc] sm:$0xf]
    %v1825 = vld [vmem:[#allocation14 + $0x10] sm:$0xf]
    %v1826 = vld [vmem:[#allocation14 + $0x14] sm:$0xf]
    %v1827 = vld [vmem:[#allocation14 + $0x18] sm:$0xf]
    %v1828 = vld [vmem:[#allocation14 + $0x1c] sm:$0xf]
    %v1829 = vld [vmem:[#allocation14 + $0x20] sm:$0xf]
    %v1830 = vld [vmem:[#allocation14 + $0x24] sm:$0xf]
    %v1831 = vld [vmem:[#allocation14 + $0x28] sm:$0xf]
    %v1832 = vld [vmem:[#allocation14 + $0x2c] sm:$0xf]
    %v1833 = vld [vmem:[#allocation14 + $0x30] sm:$0xf]
    %v1834 = vld [vmem:[#allocation14 + $0x34] sm:$0xf]
    %v1835 = vld [vmem:[#allocation14 + $0x38] sm:$0xf]
    %v1836 = vld [vmem:[#allocation14 + $0x3c] sm:$0xf]
    %v1837 = vld [vmem:[#allocation14 + $0x40] sm:$0xf]
    %v1838 = vld [vmem:[#allocation14 + $0x44] sm:$0xf]
    %v1839 = vld [vmem:[#allocation14 + $0x48] sm:$0xf]
    %v1840 = vld [vmem:[#allocation14 + $0x4c] sm:$0xf]
    %v1841 = vld [vmem:[#allocation14 + $0x50] sm:$0xf]
    %v1842 = vld [vmem:[#allocation14 + $0x54] sm:$0xf]
    %v1843 = vld [vmem:[#allocation14 + $0x58] sm:$0xf]
    %v1844 = vld [vmem:[#allocation14 + $0x5c] sm:$0xf]
    %v1845 = vld [vmem:[#allocation14 + $0x60] sm:$0xf]
    %v1846 = vld [vmem:[#allocation14 + $0x64] sm:$0xf]
    %v1847 = vld [vmem:[#allocation14 + $0x68] sm:$0xf]
    %v1848 = vld [vmem:[#allocation14 + $0x6c] sm:$0xf]
    %v1849 = vld [vmem:[#allocation14 + $0x70] sm:$0xf]
    %v1850 = vld [vmem:[#allocation14 + $0x74] sm:$0xf]
    %v1851 = vld [vmem:[#allocation14 + $0x78] sm:$0xf]
    %v1852 = vld [vmem:[#allocation14 + $0x7c] sm:$0xf]
    %v1853 = vld [vmem:[%s11] sm:$0x1]
    %v1855 = vlaneseq
    %v1856 = vshrl.u32 %v1855, 7
    %v1857 = vsub.s32 0, %v1856
    %v1858 = vrot.slane %v1853, %v1857
    %v1892 = vunpack.c.l.b16 %v1821
    %v1893 = vunpack.c.l.b16 %v1822
    %v1894 = vunpack.c.l.b16 %v1823
    %v1895 = vunpack.c.l.b16 %v1824
    %v1896 = vunpack.c.l.b16 %v1825
    %v1897 = vunpack.c.l.b16 %v1826
    %v1898 = vunpack.c.l.b16 %v1827
    %v1899 = vunpack.c.l.b16 %v1828
    %v1900 = vunpack.c.l.b16 %v1829
    %v1901 = vunpack.c.l.b16 %v1830
    %v1902 = vunpack.c.l.b16 %v1831
    %v1903 = vunpack.c.l.b16 %v1832
    %v1904 = vunpack.c.l.b16 %v1833
    %v1905 = vunpack.c.l.b16 %v1834
    %v1906 = vunpack.c.l.b16 %v1835
    %v1907 = vunpack.c.l.b16 %v1836
    %v1908 = vunpack.c.l.b16 %v1837
    %v1909 = vunpack.c.l.b16 %v1838
    %v1910 = vunpack.c.l.b16 %v1839
    %v1911 = vunpack.c.l.b16 %v1840
    %v1912 = vunpack.c.l.b16 %v1841
    %v1913 = vunpack.c.l.b16 %v1842
    %v1914 = vunpack.c.l.b16 %v1843
    %v1915 = vunpack.c.l.b16 %v1844
    %v1916 = vunpack.c.l.b16 %v1845
    %v1917 = vunpack.c.l.b16 %v1846
    %v1918 = vunpack.c.l.b16 %v1847
    %v1919 = vunpack.c.l.b16 %v1848
    %v1920 = vunpack.c.l.b16 %v1849
    %v1921 = vunpack.c.l.b16 %v1850
    %v1922 = vunpack.c.l.b16 %v1851
    %v1923 = vunpack.c.l.b16 %v1852
    %v1924 = vpack.c.b16 %v1893, %v1892
    %v1925 = vpack.c.b16 %v1895, %v1894
    %v1926 = vpack.c.b16 %v1897, %v1896
    %v1927 = vpack.c.b16 %v1899, %v1898
    %v1928 = vpack.c.b16 %v1901, %v1900
    %v1929 = vpack.c.b16 %v1903, %v1902
    %v1930 = vpack.c.b16 %v1905, %v1904
    %v1931 = vpack.c.b16 %v1907, %v1906
    %v1932 = vpack.c.b16 %v1909, %v1908
    %v1933 = vpack.c.b16 %v1911, %v1910
    %v1934 = vpack.c.b16 %v1913, %v1912
    %v1935 = vpack.c.b16 %v1915, %v1914
    %v1936 = vpack.c.b16 %v1917, %v1916
    %v1937 = vpack.c.b16 %v1919, %v1918
    %v1938 = vpack.c.b16 %v1921, %v1920
    %v1939 = vpack.c.b16 %v1923, %v1922
    %1956 = vmatprep.subr.bf16.mxu0 0
    %1957 = vmatpush1.bf16.msra.mxu0 %v1931
    %1958 = vmatprep.subr.bf16.mxu0 0
    %1959 = vmatpush1.bf16.msra.mxu0 %v1930
    %1960 = vmatprep.subr.bf16.mxu0 0
    %1961 = vmatpush1.bf16.msra.mxu0 %v1929
    %1962 = vmatprep.subr.bf16.mxu0 0
    %1963 = vmatpush1.bf16.msra.mxu0 %v1928
    %1964 = vmatprep.subr.bf16.mxu0 0
    %1965 = vmatpush1.bf16.msra.mxu0 %v1927
    %1966 = vmatprep.subr.bf16.mxu0 0
    %1967 = vmatpush1.bf16.msra.mxu0 %v1926
    %1968 = vmatprep.subr.bf16.mxu0 0
    %1969 = vmatpush1.bf16.msra.mxu0 %v1925
    %1970 = vmatprep.subr.bf16.mxu0 0
    %1971 = vmatpush1.bf16.msra.mxu0 %v1924
    %1972 = vmatprep.subr.bf16.mxu0 0
    %1973 = vmatpush2.bf16.msra.mxu0 %v1939
    %1974 = vmatprep.subr.bf16.mxu0 0
    %1975 = vmatpush2.bf16.msra.mxu0 %v1938
    %1976 = vmatprep.subr.bf16.mxu0 0
    %1977 = vmatpush2.bf16.msra.mxu0 %v1937
    %1978 = vmatprep.subr.bf16.mxu0 0
    %1979 = vmatpush2.bf16.msra.mxu0 %v1936
    %1980 = vmatprep.subr.bf16.mxu0 0
    %1981 = vmatpush2.bf16.msra.mxu0 %v1935
    %1982 = vmatprep.subr.bf16.mxu0 0
    %1983 = vmatpush2.bf16.msra.mxu0 %v1934
    %1984 = vmatprep.subr.bf16.mxu0 0
    %1985 = vmatpush2.bf16.msra.mxu0 %v1933
    %1986 = vmatprep.subr.bf16.mxu0 0
    %1987 = vmatpush2.bf16.msra.mxu0 %v1932
    %1988 = vmatprep.mubr.bf16.mxu0 %v1820
    %1989 = vmatmul.mubr.bf16.gmra.mxu0 %v1819
    %v1990 = vpop.f32.mrf.mxu0
    %v1991 = vadd.f32 %v1858, %v1990
    %v1992 = vpop.f32.mrf.mxu0
    %v1993 = vpop.f32.mrf.mxu0
    %v1994 = vadd.f32 %v1858, %v1993
    %v1995 = vpop.f32.mrf.mxu0
    %1996 = vdwg.mxu0
    %v1997 = vadd.f32 %v1619, %v1991
    %v1998 = vadd.f32 %v1620, %v1994
    %s1999 = scalar_lea.vmem [#allocation5], 1
    %v2000 = vld [vmem:[%s1999] sm:$0x1]
    %s2001 = scalar_lea.vmem [#allocation7], 1
    %v2002 = vld [vmem:[%s2001] sm:$0x1]
    %2003 = vadd.xlane.f32.xlu0 %v1997
    %v2004 = vpop.xlane.xlu0 %2003
    %2005 = vadd.xlane.f32.xlu0 %v1998
    %v2006 = vpop.xlane.xlu0 %2005
    %v2007 = vmul.f32 %v2004, 0.010416667
    %v2008 = vmul.f32 %v2006, 0.010416667
    %v2009 = vsub.f32 %v1997, %v2007
    %v2010 = vsub.f32 %v1998, %v2008
    %v2011 = vmul.f32 %v2009, %v181
    %v2012 = vmul.f32 %v2010, %v181
    %v2013 = vmul.f32 %v2011, %v2011
    %v2014 = vmul.f32 %v2012, %v2012
    %2015 = vadd.xlane.f32.xlu0 %v2013
    %v2016 = vpop.xlane.xlu0 %2015
    %2017 = vadd.xlane.f32.xlu0 %v2014
    %v2018 = vpop.xlane.xlu0 %2017
    %v2019 = vmul.f32 %v2016, 0.010416667
    %v2020 = vmul.f32 %v2018, 0.010416667
    %v2021 = vadd.f32 %v2019, 1e-05
    %v2022 = vadd.f32 %v2020, 1e-05
    %v2023 = vrsqrt.pop %v2021
    %v2024 = vrsqrt.pop %v2022
    %v2025 = vmul.f32 %v2011, %v2023
    %v2026 = vmul.f32 %v2012, %v2024
    %v2028 = vlaneseq
    %v2029 = vshrl.u32 %v2028, 7
    %v2030 = vsub.s32 0, %v2029
    %v2031 = vrot.slane %v2000, %v2030
    %v2033 = vmul.f32 %v2025, %v2031
    %v2034 = vmul.f32 %v2026, %v2031
    %v2036 = vlaneseq
    %v2037 = vshrl.u32 %v2036, 7
    %v2038 = vsub.s32 0, %v2037
    %v2039 = vrot.slane %v2002, %v2038
    %v2041 = vadd.f32 %v2033, %v2039
    %v2042 = vadd.f32 %v2034, %v2039
    %v2043 = vpack.c.bf16 %v2042, %v2041
    %s2044 = scalar_lea.vmem [#allocation8], 192
    %v2045 = vld [vmem:[%s2044] sm:$0xff]
    %v2046 = vld [vmem:[%s2044 + $0x8] sm:$0xf]
    %v2047 = vld [vmem:[%s2044 + $0xc] sm:$0xff]
    %v2048 = vld [vmem:[%s2044 + $0x14] sm:$0xf]
    %v2049 = vld [vmem:[%s2044 + $0x18] sm:$0xff]
    %v2050 = vld [vmem:[%s2044 + $0x20] sm:$0xf]
    %v2051 = vld [vmem:[%s2044 + $0x24] sm:$0xff]
    %v2052 = vld [vmem:[%s2044 + $0x2c] sm:$0xf]
    %v2053 = vld [vmem:[%s2044 + $0x30] sm:$0xff]
    %v2054 = vld [vmem:[%s2044 + $0x38] sm:$0xf]
    %v2055 = vld [vmem:[%s2044 + $0x3c] sm:$0xff]
    %v2056 = vld [vmem:[%s2044 + $0x44] sm:$0xf]
    %v2057 = vld [vmem:[%s2044 + $0x48] sm:$0xff]
    %v2058 = vld [vmem:[%s2044 + $0x50] sm:$0xf]
    %v2059 = vld [vmem:[%s2044 + $0x54] sm:$0xff]
    %v2060 = vld [vmem:[%s2044 + $0x5c] sm:$0xf]
    %v2061 = vld [vmem:[%s2044 + $0x60] sm:$0xff]
    %v2062 = vld [vmem:[%s2044 + $0x68] sm:$0xf]
    %v2063 = vld [vmem:[%s2044 + $0x6c] sm:$0xff]
    %v2064 = vld [vmem:[%s2044 + $0x74] sm:$0xf]
    %v2065 = vld [vmem:[%s2044 + $0x78] sm:$0xff]
    %v2066 = vld [vmem:[%s2044 + $0x80] sm:$0xf]
    %v2067 = vld [vmem:[%s2044 + $0x84] sm:$0xff]
    %v2068 = vld [vmem:[%s2044 + $0x8c] sm:$0xf]
    %v2069 = vld [vmem:[%s2044 + $0x90] sm:$0xff]
    %v2070 = vld [vmem:[%s2044 + $0x98] sm:$0xf]
    %v2071 = vld [vmem:[%s2044 + $0x9c] sm:$0xff]
    %v2072 = vld [vmem:[%s2044 + $0xa4] sm:$0xf]
    %v2073 = vld [vmem:[%s2044 + $0xa8] sm:$0xff]
    %v2074 = vld [vmem:[%s2044 + $0xb0] sm:$0xf]
    %v2075 = vld [vmem:[%s2044 + $0xb4] sm:$0xff]
    %v2076 = vld [vmem:[%s2044 + $0xbc] sm:$0xf]
    %v2109 = vunpack.c.l.b16 %v2045
    %v2110 = vunpack.c.h.b16 %v2045
    %v2111 = vunpack.c.l.b16 %v2046
    %v2112 = vunpack.c.l.b16 %v2047
    %v2113 = vunpack.c.h.b16 %v2047
    %v2114 = vunpack.c.l.b16 %v2048
    %v2115 = vunpack.c.l.b16 %v2049
    %v2116 = vunpack.c.h.b16 %v2049
    %v2117 = vunpack.c.l.b16 %v2050
    %v2118 = vunpack.c.l.b16 %v2051
    %v2119 = vunpack.c.h.b16 %v2051
    %v2120 = vunpack.c.l.b16 %v2052
    %v2121 = vunpack.c.l.b16 %v2053
    %v2122 = vunpack.c.h.b16 %v2053
    %v2123 = vunpack.c.l.b16 %v2054
    %v2124 = vunpack.c.l.b16 %v2055
    %v2125 = vunpack.c.h.b16 %v2055
    %v2126 = vunpack.c.l.b16 %v2056
    %v2127 = vunpack.c.l.b16 %v2057
    %v2128 = vunpack.c.h.b16 %v2057
    %v2129 = vunpack.c.l.b16 %v2058
    %v2130 = vunpack.c.l.b16 %v2059
    %v2131 = vunpack.c.h.b16 %v2059
    %v2132 = vunpack.c.l.b16 %v2060
    %v2133 = vunpack.c.l.b16 %v2061
    %v2134 = vunpack.c.h.b16 %v2061
    %v2135 = vunpack.c.l.b16 %v2062
    %v2136 = vunpack.c.l.b16 %v2063
    %v2137 = vunpack.c.h.b16 %v2063
    %v2138 = vunpack.c.l.b16 %v2064
    %v2139 = vunpack.c.l.b16 %v2065
    %v2140 = vunpack.c.h.b16 %v2065
    %v2141 = vunpack.c.l.b16 %v2066
    %v2142 = vunpack.c.l.b16 %v2067
    %v2143 = vunpack.c.h.b16 %v2067
    %v2144 = vunpack.c.l.b16 %v2068
    %v2145 = vunpack.c.l.b16 %v2069
    %v2146 = vunpack.c.h.b16 %v2069
    %v2147 = vunpack.c.l.b16 %v2070
    %v2148 = vunpack.c.l.b16 %v2071
    %v2149 = vunpack.c.h.b16 %v2071
    %v2150 = vunpack.c.l.b16 %v2072
    %v2151 = vunpack.c.l.b16 %v2073
    %v2152 = vunpack.c.h.b16 %v2073
    %v2153 = vunpack.c.l.b16 %v2074
    %v2154 = vunpack.c.l.b16 %v2075
    %v2155 = vunpack.c.h.b16 %v2075
    %v2156 = vunpack.c.l.b16 %v2076
    %v2157 = vpack.c.b16 %v2112, %v2109
    %v2158 = vpack.c.b16 %v2113, %v2110
    %v2159 = vpack.c.b16 %v2114, %v2111
    %v2160 = vpack.c.b16 %v2118, %v2115
    %v2161 = vpack.c.b16 %v2119, %v2116
    %v2162 = vpack.c.b16 %v2120, %v2117
    %v2163 = vpack.c.b16 %v2124, %v2121
    %v2164 = vpack.c.b16 %v2125, %v2122
    %v2165 = vpack.c.b16 %v2126, %v2123
    %v2166 = vpack.c.b16 %v2130, %v2127
    %v2167 = vpack.c.b16 %v2131, %v2128
    %v2168 = vpack.c.b16 %v2132, %v2129
    %v2169 = vpack.c.b16 %v2136, %v2133
    %v2170 = vpack.c.b16 %v2137, %v2134
    %v2171 = vpack.c.b16 %v2138, %v2135
    %v2172 = vpack.c.b16 %v2142, %v2139
    %v2173 = vpack.c.b16 %v2143, %v2140
    %v2174 = vpack.c.b16 %v2144, %v2141
    %v2175 = vpack.c.b16 %v2148, %v2145
    %v2176 = vpack.c.b16 %v2149, %v2146
    %v2177 = vpack.c.b16 %v2150, %v2147
    %v2178 = vpack.c.b16 %v2154, %v2151
    %v2179 = vpack.c.b16 %v2155, %v2152
    %v2180 = vpack.c.b16 %v2156, %v2153
    %2205 = vmatprep.subr.bf16.mxu0 %v2179
    %2206 = vmatpush1.bf16.msra.mxu0 %v2178
    %2207 = vmatprep.subr.bf16.mxu0 %v2176
    %2208 = vmatpush1.bf16.msra.mxu0 %v2175
    %2209 = vmatprep.subr.bf16.mxu0 %v2173
    %2210 = vmatpush1.bf16.msra.mxu0 %v2172
    %2211 = vmatprep.subr.bf16.mxu0 %v2170
    %2212 = vmatpush1.bf16.msra.mxu0 %v2169
    %2213 = vmatprep.subr.bf16.mxu0 %v2167
    %2214 = vmatpush1.bf16.msra.mxu0 %v2166
    %2215 = vmatprep.subr.bf16.mxu0 %v2164
    %2216 = vmatpush1.bf16.msra.mxu0 %v2163
    %2217 = vmatprep.subr.bf16.mxu0 %v2161
    %2218 = vmatpush1.bf16.msra.mxu0 %v2160
    %2219 = vmatprep.subr.bf16.mxu0 %v2158
    %2220 = vmatpush1.bf16.msra.mxu0 %v2157
    %2221 = vmatprep.subr.bf16.mxu0 0
    %2222 = vmatpush2.bf16.msra.mxu0 0
    %2223 = vmatprep.subr.bf16.mxu0 0
    %2224 = vmatpush2.bf16.msra.mxu0 0
    %2225 = vmatprep.subr.bf16.mxu0 0
    %2226 = vmatpush2.bf16.msra.mxu0 0
    %2227 = vmatprep.subr.bf16.mxu0 0
    %2228 = vmatpush2.bf16.msra.mxu0 0
    %2229 = vmatprep.subr.bf16.mxu0 0
    %2230 = vmatpush2.bf16.msra.mxu0 0
    %2231 = vmatprep.subr.bf16.mxu0 0
    %2232 = vmatpush2.bf16.msra.mxu0 0
    %2233 = vmatprep.subr.bf16.mxu0 0
    %2234 = vmatpush2.bf16.msra.mxu0 0
    %2235 = vmatprep.subr.bf16.mxu0 0
    %2236 = vmatpush2.bf16.msra.mxu0 0
    %2237 = vmatprep.mubr.bf16.mxu0 0
    %2238 = vmatmul.mubr.bf16.gmra.mxu0 %v2043
    %v2239 = vpop.f32.mrf.mxu0
    %v2240 = vadd.f32 0.0, %v2239
    %v2241 = vpop.f32.mrf.mxu0
    %v2242 = vadd.f32 0.0, %v2241
    %v2243 = vpop.f32.mrf.mxu0
    %v2244 = vadd.f32 0.0, %v2243
    %v2245 = vpop.f32.mrf.mxu0
    %v2246 = vadd.f32 0.0, %v2245
    %2247 = vdwg.mxu0
    %2248 = vmatprep.subr.bf16.mxu0 0
    %2249 = vmatpush1.bf16.msra.mxu0 %v2180
    %2250 = vmatprep.subr.bf16.mxu0 0
    %2251 = vmatpush1.bf16.msra.mxu0 %v2177
    %2252 = vmatprep.subr.bf16.mxu0 0
    %2253 = vmatpush1.bf16.msra.mxu0 %v2174
    %2254 = vmatprep.subr.bf16.mxu0 0
    %2255 = vmatpush1.bf16.msra.mxu0 %v2171
    %2256 = vmatprep.subr.bf16.mxu0 0
    %2257 = vmatpush1.bf16.msra.mxu0 %v2168
    %2258 = vmatprep.subr.bf16.mxu0 0
    %2259 = vmatpush1.bf16.msra.mxu0 %v2165
    %2260 = vmatprep.subr.bf16.mxu0 0
    %2261 = vmatpush1.bf16.msra.mxu0 %v2162
    %2262 = vmatprep.subr.bf16.mxu0 0
    %2263 = vmatpush1.bf16.msra.mxu0 %v2159
    %2264 = vmatprep.subr.bf16.mxu0 0
    %2265 = vmatpush2.bf16.msra.mxu0 0
    %2266 = vmatprep.subr.bf16.mxu0 0
    %2267 = vmatpush2.bf16.msra.mxu0 0
    %2268 = vmatprep.subr.bf16.mxu0 0
    %2269 = vmatpush2.bf16.msra.mxu0 0
    %2270 = vmatprep.subr.bf16.mxu0 0
    %2271 = vmatpush2.bf16.msra.mxu0 0
    %2272 = vmatprep.subr.bf16.mxu0 0
    %2273 = vmatpush2.bf16.msra.mxu0 0
    %2274 = vmatprep.subr.bf16.mxu0 0
    %2275 = vmatpush2.bf16.msra.mxu0 0
    %2276 = vmatprep.subr.bf16.mxu0 0
    %2277 = vmatpush2.bf16.msra.mxu0 0
    %2278 = vmatprep.subr.bf16.mxu0 0
    %2279 = vmatpush2.bf16.msra.mxu0 0
    %2280 = vmatprep.mubr.bf16.mxu0 0
    %2281 = vmatmul.mubr.bf16.gmra.mxu0 %v2043
    %v2282 = vpop.f32.mrf.mxu0
    %v2283 = vadd.f32 0.0, %v2282
    %v2284 = vpop.f32.mrf.mxu0
    %v2285 = vpop.f32.mrf.mxu0
    %v2286 = vadd.f32 0.0, %v2285
    %v2287 = vpop.f32.mrf.mxu0
    %2288 = vdwg.mxu0
    %s2289 = scalar_lea.vmem [#allocation10], 64
    %v2290 = vld [vmem:[%s2289] sm:$0xf]
    %v2291 = vld [vmem:[%s2289 + $0x4] sm:$0xf]
    %v2292 = vld [vmem:[%s2289 + $0x8] sm:$0xf]
    %v2293 = vld [vmem:[%s2289 + $0xc] sm:$0xf]
    %v2294 = vld [vmem:[%s2289 + $0x10] sm:$0xf]
    %v2295 = vld [vmem:[%s2289 + $0x14] sm:$0xf]
    %v2296 = vld [vmem:[%s2289 + $0x18] sm:$0xf]
    %v2297 = vld [vmem:[%s2289 + $0x1c] sm:$0xf]
    %v2298 = vld [vmem:[%s2289 + $0x20] sm:$0xf]
    %v2299 = vld [vmem:[%s2289 + $0x24] sm:$0xf]
    %v2300 = vld [vmem:[%s2289 + $0x28] sm:$0xf]
    %v2301 = vld [vmem:[%s2289 + $0x2c] sm:$0xf]
    %v2302 = vld [vmem:[%s2289 + $0x30] sm:$0xf]
    %v2303 = vld [vmem:[%s2289 + $0x34] sm:$0xf]
    %v2304 = vld [vmem:[%s2289 + $0x38] sm:$0xf]
    %v2305 = vld [vmem:[%s2289 + $0x3c] sm:$0xf]
    %v2306 = vpack.c.bf16 %v2240, %v2240
    %v2307 = vpack.c.bf16 %v2244, %v2244
    %v2308 = vpack.c.bf16 %v2242, %v2242
    %v2309 = vpack.c.bf16 %v2246, %v2246
    %v2311 = vsel %vm491, %v2306, 0
    %v2314 = vsel %vm491, %v2308, 0
    %2316 = vmatprep.subr.bf16.mxu0 0
    %2317 = vmatpush1.bf16.xpose.msra.mxu0 0
    %2318 = vmatprep.subr.bf16.mxu0 0
    %2319 = vmatpush1.bf16.xpose.msra.mxu0 0
    %2320 = vmatprep.subr.bf16.mxu0 0
    %2321 = vmatpush1.bf16.xpose.msra.mxu0 0
    %2322 = vmatprep.subr.bf16.mxu0 0
    %2323 = vmatpush1.bf16.xpose.msra.mxu0 0
    %2324 = vmatprep.subr.bf16.mxu0 0
    %2325 = vmatpush1.bf16.xpose.msra.mxu0 0
    %2326 = vmatprep.subr.bf16.mxu0 0
    %2327 = vmatpush1.bf16.xpose.msra.mxu0 0
    %2328 = vmatprep.subr.bf16.mxu0 0
    %2329 = vmatpush1.bf16.xpose.msra.mxu0 0
    %2330 = vmatprep.subr.bf16.mxu0 0
    %2331 = vmatpush1.bf16.xpose.msra.mxu0 %v2314
    %2332 = vmatprep.subr.bf16.mxu0 0
    %2333 = vmatpush2.bf16.xpose.msra.mxu0 0
    %2334 = vmatprep.subr.bf16.mxu0 0
    %2335 = vmatpush2.bf16.xpose.msra.mxu0 0
    %2336 = vmatprep.subr.bf16.mxu0 0
    %2337 = vmatpush2.bf16.xpose.msra.mxu0 0
    %2338 = vmatprep.subr.bf16.mxu0 0
    %2339 = vmatpush2.bf16.xpose.msra.mxu0 0
    %2340 = vmatprep.subr.bf16.mxu0 0
    %2341 = vmatpush2.bf16.xpose.msra.mxu0 0
    %2342 = vmatprep.subr.bf16.mxu0 0
    %2343 = vmatpush2.bf16.xpose.msra.mxu0 0
    %2344 = vmatprep.subr.bf16.mxu0 0
    %2345 = vmatpush2.bf16.xpose.msra.mxu0 0
    %2346 = vmatprep.subr.bf16.mxu0 0
    %2347 = vmatpush2.bf16.xpose.msra.mxu0 0
    %2348 = vmatprep.mubr.bf16.mxu0 0
    %2349 = vmatmul.mubr.bf16.gmra.mxu0 %v2311
    %v2350 = vpop.f32.mrf.mxu0
    %v2351 = vadd.f32 0.0, %v2350
    %v2352 = vpop.f32.mrf.mxu0
    %v2353 = vpop.f32.mrf.mxu0
    %v2354 = vpop.f32.mrf.mxu0
    %2355 = vdwg.mxu0
    %v2357 = vsel %vm491, %v2307, 0
    %v2360 = vsel %vm491, %v2309, 0
    %2362 = vmatprep.subr.bf16.mxu0 0
    %2363 = vmatpush1.bf16.xpose.msra.mxu0 0
    %2364 = vmatprep.subr.bf16.mxu0 0
    %2365 = vmatpush1.bf16.xpose.msra.mxu0 0
    %2366 = vmatprep.subr.bf16.mxu0 0
    %2367 = vmatpush1.bf16.xpose.msra.mxu0 0
    %2368 = vmatprep.subr.bf16.mxu0 0
    %2369 = vmatpush1.bf16.xpose.msra.mxu0 0
    %2370 = vmatprep.subr.bf16.mxu0 0
    %2371 = vmatpush1.bf16.xpose.msra.mxu0 0
    %2372 = vmatprep.subr.bf16.mxu0 0
    %2373 = vmatpush1.bf16.xpose.msra.mxu0 0
    %2374 = vmatprep.subr.bf16.mxu0 0
    %2375 = vmatpush1.bf16.xpose.msra.mxu0 0
    %2376 = vmatprep.subr.bf16.mxu0 0
    %2377 = vmatpush1.bf16.xpose.msra.mxu0 %v2360
    %2378 = vmatprep.subr.bf16.mxu0 0
    %2379 = vmatpush2.bf16.xpose.msra.mxu0 0
    %2380 = vmatprep.subr.bf16.mxu0 0
    %2381 = vmatpush2.bf16.xpose.msra.mxu0 0
    %2382 = vmatprep.subr.bf16.mxu0 0
    %2383 = vmatpush2.bf16.xpose.msra.mxu0 0
    %2384 = vmatprep.subr.bf16.mxu0 0
    %2385 = vmatpush2.bf16.xpose.msra.mxu0 0
    %2386 = vmatprep.subr.bf16.mxu0 0
    %2387 = vmatpush2.bf16.xpose.msra.mxu0 0
    %2388 = vmatprep.subr.bf16.mxu0 0
    %2389 = vmatpush2.bf16.xpose.msra.mxu0 0
    %2390 = vmatprep.subr.bf16.mxu0 0
    %2391 = vmatpush2.bf16.xpose.msra.mxu0 0
    %2392 = vmatprep.subr.bf16.mxu0 0
    %2393 = vmatpush2.bf16.xpose.msra.mxu0 0
    %2394 = vmatprep.mubr.bf16.mxu0 0
    %2395 = vmatmul.mubr.bf16.gmra.mxu0 %v2357
    %v2396 = vpop.f32.mrf.mxu0
    %v2397 = vadd.f32 0.0, %v2396
    %v2398 = vpop.f32.mrf.mxu0
    %v2399 = vpop.f32.mrf.mxu0
    %v2400 = vpop.f32.mrf.mxu0
    %2401 = vdwg.mxu0
    %v2402 = vmul.f32 %v2351, 0.17677669
    %v2403 = vmul.f32 %v2397, 0.17677669
    %v2404 = vsel %vm586, %v2402, -inf
    %2405 = vmax.xlane.f32.xlu0 %v2404
    %v2406 = vpop.xlane.xlu0 %2405
    %v2407 = vsel %vm586, %v2403, -inf
    %2408 = vmax.xlane.f32.xlu0 %v2407
    %v2409 = vpop.xlane.xlu0 %2408
    %v2410 = vsub.f32 %v2402, %v2406
    %v2411 = vsub.f32 %v2403, %v2409
    %v2412 = vmul.f32 %v2410, 1.442695
    %v2413 = vpow.pop %v2412
    %v2414 = vmul.f32 %v2411, 1.442695
    %v2415 = vpow.pop %v2414
    %v2416 = vsel %vm586, %v2413, 0.0
    %2417 = vadd.xlane.f32.xlu0 %v2416
    %v2418 = vpop.xlane.xlu0 %2417
    %v2419 = vsel %vm586, %v2415, 0.0
    %2420 = vadd.xlane.f32.xlu0 %v2419
    %v2421 = vpop.xlane.xlu0 %2420
    %v2422 = vrcp.pop %v2418
    %v2423 = vrcp.pop %v2421
    %v2424 = vmul.f32 %v2413, %v2422
    %v2425 = vmul.f32 %v2415, %v2423
    %v2426 = vpack.c.bf16 %v2424, %v2424
    %v2427 = vpack.c.bf16 %v2425, %v2425
    %v2428 = vpack.c.bf16 %v2283, %v2283
    %v2429 = vpack.c.bf16 %v2286, %v2286
    %v2431 = vsel %vm586, %v2426, 0
    %v2434 = vsel %vm616, %v2428, 0
    %2436 = vmatprep.subr.bf16.mxu0 0
    %2437 = vmatpush1.bf16.msra.mxu0 0
    %2438 = vmatprep.subr.bf16.mxu0 0
    %2439 = vmatpush1.bf16.msra.mxu0 0
    %2440 = vmatprep.subr.bf16.mxu0 0
    %2441 = vmatpush1.bf16.msra.mxu0 0
    %2442 = vmatprep.subr.bf16.mxu0 0
    %2443 = vmatpush1.bf16.msra.mxu0 0
    %2444 = vmatprep.subr.bf16.mxu0 0
    %2445 = vmatpush1.bf16.msra.mxu0 0
    %2446 = vmatprep.subr.bf16.mxu0 0
    %2447 = vmatpush1.bf16.msra.mxu0 0
    %2448 = vmatprep.subr.bf16.mxu0 0
    %2449 = vmatpush1.bf16.msra.mxu0 0
    %2450 = vmatprep.subr.bf16.mxu0 0
    %2451 = vmatpush1.bf16.msra.mxu0 %v2434
    %2452 = vmatprep.subr.bf16.mxu0 0
    %2453 = vmatpush2.bf16.msra.mxu0 0
    %2454 = vmatprep.subr.bf16.mxu0 0
    %2455 = vmatpush2.bf16.msra.mxu0 0
    %2456 = vmatprep.subr.bf16.mxu0 0
    %2457 = vmatpush2.bf16.msra.mxu0 0
    %2458 = vmatprep.subr.bf16.mxu0 0
    %2459 = vmatpush2.bf16.msra.mxu0 0
    %2460 = vmatprep.subr.bf16.mxu0 0
    %2461 = vmatpush2.bf16.msra.mxu0 0
    %2462 = vmatprep.subr.bf16.mxu0 0
    %2463 = vmatpush2.bf16.msra.mxu0 0
    %2464 = vmatprep.subr.bf16.mxu0 0
    %2465 = vmatpush2.bf16.msra.mxu0 0
    %2466 = vmatprep.subr.bf16.mxu0 0
    %2467 = vmatpush2.bf16.msra.mxu0 0
    %2468 = vmatprep.mubr.bf16.mxu0 0
    %2469 = vmatmul.mubr.bf16.gmra.mxu0 %v2431
    %v2470 = vpop.f32.mrf.mxu0
    %v2471 = vadd.f32 0.0, %v2470
    %v2472 = vpop.f32.mrf.mxu0
    %v2473 = vpop.f32.mrf.mxu0
    %v2474 = vpop.f32.mrf.mxu0
    %2475 = vdwg.mxu0
    %v2477 = vsel %vm586, %v2427, 0
    %v2480 = vsel %vm616, %v2429, 0
    %2482 = vmatprep.subr.bf16.mxu0 0
    %2483 = vmatpush1.bf16.msra.mxu0 0
    %2484 = vmatprep.subr.bf16.mxu0 0
    %2485 = vmatpush1.bf16.msra.mxu0 0
    %2486 = vmatprep.subr.bf16.mxu0 0
    %2487 = vmatpush1.bf16.msra.mxu0 0
    %2488 = vmatprep.subr.bf16.mxu0 0
    %2489 = vmatpush1.bf16.msra.mxu0 0
    %2490 = vmatprep.subr.bf16.mxu0 0
    %2491 = vmatpush1.bf16.msra.mxu0 0
    %2492 = vmatprep.subr.bf16.mxu0 0
    %2493 = vmatpush1.bf16.msra.mxu0 0
    %2494 = vmatprep.subr.bf16.mxu0 0
    %2495 = vmatpush1.bf16.msra.mxu0 0
    %2496 = vmatprep.subr.bf16.mxu0 0
    %2497 = vmatpush1.bf16.msra.mxu0 %v2480
    %2498 = vmatprep.subr.bf16.mxu0 0
    %2499 = vmatpush2.bf16.msra.mxu0 0
    %2500 = vmatprep.subr.bf16.mxu0 0
    %2501 = vmatpush2.bf16.msra.mxu0 0
    %2502 = vmatprep.subr.bf16.mxu0 0
    %2503 = vmatpush2.bf16.msra.mxu0 0
    %2504 = vmatprep.subr.bf16.mxu0 0
    %2505 = vmatpush2.bf16.msra.mxu0 0
    %2506 = vmatprep.subr.bf16.mxu0 0
    %2507 = vmatpush2.bf16.msra.mxu0 0
    %2508 = vmatprep.subr.bf16.mxu0 0
    %2509 = vmatpush2.bf16.msra.mxu0 0
    %2510 = vmatprep.subr.bf16.mxu0 0
    %2511 = vmatpush2.bf16.msra.mxu0 0
    %2512 = vmatprep.subr.bf16.mxu0 0
    %2513 = vmatpush2.bf16.msra.mxu0 0
    %2514 = vmatprep.mubr.bf16.mxu0 0
    %2515 = vmatmul.mubr.bf16.gmra.mxu0 %v2477
    %v2516 = vpop.f32.mrf.mxu0
    %v2517 = vadd.f32 0.0, %v2516
    %v2518 = vpop.f32.mrf.mxu0
    %v2519 = vpop.f32.mrf.mxu0
    %v2520 = vpop.f32.mrf.mxu0
    %2521 = vdwg.mxu0
    %v2522 = vpack.c.bf16 %v2517, %v2471
    %2524 = vrot.lane.b32.xlu0 %v2306, 96
    %v2525 = vpop.permute.xlu0 %2524
    %2527 = vrot.lane.b32.xlu0 %v2308, 96
    %v2528 = vpop.permute.xlu0 %2527
    %v2530 = vsel %vm491, %v2525, 0
    %v2533 = vsel %vm491, %v2528, 0
    %2535 = vmatprep.subr.bf16.mxu0 0
    %2536 = vmatpush1.bf16.xpose.msra.mxu0 0
    %2537 = vmatprep.subr.bf16.mxu0 0
    %2538 = vmatpush1.bf16.xpose.msra.mxu0 0
    %2539 = vmatprep.subr.bf16.mxu0 0
    %2540 = vmatpush1.bf16.xpose.msra.mxu0 0
    %2541 = vmatprep.subr.bf16.mxu0 0
    %2542 = vmatpush1.bf16.xpose.msra.mxu0 0
    %2543 = vmatprep.subr.bf16.mxu0 0
    %2544 = vmatpush1.bf16.xpose.msra.mxu0 0
    %2545 = vmatprep.subr.bf16.mxu0 0
    %2546 = vmatpush1.bf16.xpose.msra.mxu0 0
    %2547 = vmatprep.subr.bf16.mxu0 0
    %2548 = vmatpush1.bf16.xpose.msra.mxu0 0
    %2549 = vmatprep.subr.bf16.mxu0 0
    %2550 = vmatpush1.bf16.xpose.msra.mxu0 %v2533
    %2551 = vmatprep.subr.bf16.mxu0 0
    %2552 = vmatpush2.bf16.xpose.msra.mxu0 0
    %2553 = vmatprep.subr.bf16.mxu0 0
    %2554 = vmatpush2.bf16.xpose.msra.mxu0 0
    %2555 = vmatprep.subr.bf16.mxu0 0
    %2556 = vmatpush2.bf16.xpose.msra.mxu0 0
    %2557 = vmatprep.subr.bf16.mxu0 0
    %2558 = vmatpush2.bf16.xpose.msra.mxu0 0
    %2559 = vmatprep.subr.bf16.mxu0 0
    %2560 = vmatpush2.bf16.xpose.msra.mxu0 0
    %2561 = vmatprep.subr.bf16.mxu0 0
    %2562 = vmatpush2.bf16.xpose.msra.mxu0 0
    %2563 = vmatprep.subr.bf16.mxu0 0
    %2564 = vmatpush2.bf16.xpose.msra.mxu0 0
    %2565 = vmatprep.subr.bf16.mxu0 0
    %2566 = vmatpush2.bf16.xpose.msra.mxu0 0
    %2567 = vmatprep.mubr.bf16.mxu0 0
    %2568 = vmatmul.mubr.bf16.gmra.mxu0 %v2530
    %v2569 = vpop.f32.mrf.mxu0
    %v2570 = vadd.f32 0.0, %v2569
    %v2571 = vpop.f32.mrf.mxu0
    %v2572 = vpop.f32.mrf.mxu0
    %v2573 = vpop.f32.mrf.mxu0
    %2574 = vdwg.mxu0
    %2576 = vrot.lane.b32.xlu0 %v2307, 96
    %v2577 = vpop.permute.xlu0 %2576
    %2579 = vrot.lane.b32.xlu0 %v2309, 96
    %v2580 = vpop.permute.xlu0 %2579
    %v2582 = vsel %vm491, %v2577, 0
    %v2585 = vsel %vm491, %v2580, 0
    %2587 = vmatprep.subr.bf16.mxu0 0
    %2588 = vmatpush1.bf16.xpose.msra.mxu0 0
    %2589 = vmatprep.subr.bf16.mxu0 0
    %2590 = vmatpush1.bf16.xpose.msra.mxu0 0
    %2591 = vmatprep.subr.bf16.mxu0 0
    %2592 = vmatpush1.bf16.xpose.msra.mxu0 0
    %2593 = vmatprep.subr.bf16.mxu0 0
    %2594 = vmatpush1.bf16.xpose.msra.mxu0 0
    %2595 = vmatprep.subr.bf16.mxu0 0
    %2596 = vmatpush1.bf16.xpose.msra.mxu0 0
    %2597 = vmatprep.subr.bf16.mxu0 0
    %2598 = vmatpush1.bf16.xpose.msra.mxu0 0
    %2599 = vmatprep.subr.bf16.mxu0 0
    %2600 = vmatpush1.bf16.xpose.msra.mxu0 0
    %2601 = vmatprep.subr.bf16.mxu0 0
    %2602 = vmatpush1.bf16.xpose.msra.mxu0 %v2585
    %2603 = vmatprep.subr.bf16.mxu0 0
    %2604 = vmatpush2.bf16.xpose.msra.mxu0 0
    %2605 = vmatprep.subr.bf16.mxu0 0
    %2606 = vmatpush2.bf16.xpose.msra.mxu0 0
    %2607 = vmatprep.subr.bf16.mxu0 0
    %2608 = vmatpush2.bf16.xpose.msra.mxu0 0
    %2609 = vmatprep.subr.bf16.mxu0 0
    %2610 = vmatpush2.bf16.xpose.msra.mxu0 0
    %2611 = vmatprep.subr.bf16.mxu0 0
    %2612 = vmatpush2.bf16.xpose.msra.mxu0 0
    %2613 = vmatprep.subr.bf16.mxu0 0
    %2614 = vmatpush2.bf16.xpose.msra.mxu0 0
    %2615 = vmatprep.subr.bf16.mxu0 0
    %2616 = vmatpush2.bf16.xpose.msra.mxu0 0
    %2617 = vmatprep.subr.bf16.mxu0 0
    %2618 = vmatpush2.bf16.xpose.msra.mxu0 0
    %2619 = vmatprep.mubr.bf16.mxu0 0
    %2620 = vmatmul.mubr.bf16.gmra.mxu0 %v2582
    %v2621 = vpop.f32.mrf.mxu0
    %v2622 = vadd.f32 0.0, %v2621
    %v2623 = vpop.f32.mrf.mxu0
    %v2624 = vpop.f32.mrf.mxu0
    %v2625 = vpop.f32.mrf.mxu0
    %2626 = vdwg.mxu0
    %v2627 = vmul.f32 %v2570, 0.17677669
    %v2628 = vmul.f32 %v2622, 0.17677669
    %v2629 = vsel %vm586, %v2627, -inf
    %2630 = vmax.xlane.f32.xlu0 %v2629
    %v2631 = vpop.xlane.xlu0 %2630
    %v2632 = vsel %vm586, %v2628, -inf
    %2633 = vmax.xlane.f32.xlu0 %v2632
    %v2634 = vpop.xlane.xlu0 %2633
    %v2635 = vsub.f32 %v2627, %v2631
    %v2636 = vsub.f32 %v2628, %v2634
    %v2637 = vmul.f32 %v2635, 1.442695
    %v2638 = vpow.pop %v2637
    %v2639 = vmul.f32 %v2636, 1.442695
    %v2640 = vpow.pop %v2639
    %v2641 = vsel %vm586, %v2638, 0.0
    %2642 = vadd.xlane.f32.xlu0 %v2641
    %v2643 = vpop.xlane.xlu0 %2642
    %v2644 = vsel %vm586, %v2640, 0.0
    %2645 = vadd.xlane.f32.xlu0 %v2644
    %v2646 = vpop.xlane.xlu0 %2645
    %v2647 = vrcp.pop %v2643
    %v2648 = vrcp.pop %v2646
    %v2649 = vmul.f32 %v2638, %v2647
    %v2650 = vmul.f32 %v2640, %v2648
    %v2651 = vpack.c.bf16 %v2649, %v2649
    %v2652 = vpack.c.bf16 %v2650, %v2650
    %2654 = vrot.lane.b32.xlu0 %v2428, 96
    %v2655 = vpop.permute.xlu0 %2654
    %v2657 = vsel %vm586, %v2651, 0
    %v2660 = vsel %vm616, %v2655, 0
    %2662 = vmatprep.subr.bf16.mxu0 0
    %2663 = vmatpush1.bf16.msra.mxu0 0
    %2664 = vmatprep.subr.bf16.mxu0 0
    %2665 = vmatpush1.bf16.msra.mxu0 0
    %2666 = vmatprep.subr.bf16.mxu0 0
    %2667 = vmatpush1.bf16.msra.mxu0 0
    %2668 = vmatprep.subr.bf16.mxu0 0
    %2669 = vmatpush1.bf16.msra.mxu0 0
    %2670 = vmatprep.subr.bf16.mxu0 0
    %2671 = vmatpush1.bf16.msra.mxu0 0
    %2672 = vmatprep.subr.bf16.mxu0 0
    %2673 = vmatpush1.bf16.msra.mxu0 0
    %2674 = vmatprep.subr.bf16.mxu0 0
    %2675 = vmatpush1.bf16.msra.mxu0 0
    %2676 = vmatprep.subr.bf16.mxu0 0
    %2677 = vmatpush1.bf16.msra.mxu0 %v2660
    %2678 = vmatprep.subr.bf16.mxu0 0
    %2679 = vmatpush2.bf16.msra.mxu0 0
    %2680 = vmatprep.subr.bf16.mxu0 0
    %2681 = vmatpush2.bf16.msra.mxu0 0
    %2682 = vmatprep.subr.bf16.mxu0 0
    %2683 = vmatpush2.bf16.msra.mxu0 0
    %2684 = vmatprep.subr.bf16.mxu0 0
    %2685 = vmatpush2.bf16.msra.mxu0 0
    %2686 = vmatprep.subr.bf16.mxu0 0
    %2687 = vmatpush2.bf16.msra.mxu0 0
    %2688 = vmatprep.subr.bf16.mxu0 0
    %2689 = vmatpush2.bf16.msra.mxu0 0
    %2690 = vmatprep.subr.bf16.mxu0 0
    %2691 = vmatpush2.bf16.msra.mxu0 0
    %2692 = vmatprep.subr.bf16.mxu0 0
    %2693 = vmatpush2.bf16.msra.mxu0 0
    %2694 = vmatprep.mubr.bf16.mxu0 0
    %2695 = vmatmul.mubr.bf16.gmra.mxu0 %v2657
    %v2696 = vpop.f32.mrf.mxu0
    %v2697 = vadd.f32 0.0, %v2696
    %v2698 = vpop.f32.mrf.mxu0
    %v2699 = vpop.f32.mrf.mxu0
    %v2700 = vpop.f32.mrf.mxu0
    %2701 = vdwg.mxu0
    %2703 = vrot.lane.b32.xlu0 %v2429, 96
    %v2704 = vpop.permute.xlu0 %2703
    %v2706 = vsel %vm586, %v2652, 0
    %v2709 = vsel %vm616, %v2704, 0
    %2711 = vmatprep.subr.bf16.mxu0 0
    %2712 = vmatpush1.bf16.msra.mxu0 0
    %2713 = vmatprep.subr.bf16.mxu0 0
    %2714 = vmatpush1.bf16.msra.mxu0 0
    %2715 = vmatprep.subr.bf16.mxu0 0
    %2716 = vmatpush1.bf16.msra.mxu0 0
    %2717 = vmatprep.subr.bf16.mxu0 0
    %2718 = vmatpush1.bf16.msra.mxu0 0
    %2719 = vmatprep.subr.bf16.mxu0 0
    %2720 = vmatpush1.bf16.msra.mxu0 0
    %2721 = vmatprep.subr.bf16.mxu0 0
    %2722 = vmatpush1.bf16.msra.mxu0 0
    %2723 = vmatprep.subr.bf16.mxu0 0
    %2724 = vmatpush1.bf16.msra.mxu0 0
    %2725 = vmatprep.subr.bf16.mxu0 0
    %2726 = vmatpush1.bf16.msra.mxu0 %v2709
    %2727 = vmatprep.subr.bf16.mxu0 0
    %2728 = vmatpush2.bf16.msra.mxu0 0
    %2729 = vmatprep.subr.bf16.mxu0 0
    %2730 = vmatpush2.bf16.msra.mxu0 0
    %2731 = vmatprep.subr.bf16.mxu0 0
    %2732 = vmatpush2.bf16.msra.mxu0 0
    %2733 = vmatprep.subr.bf16.mxu0 0
    %2734 = vmatpush2.bf16.msra.mxu0 0
    %2735 = vmatprep.subr.bf16.mxu0 0
    %2736 = vmatpush2.bf16.msra.mxu0 0
    %2737 = vmatprep.subr.bf16.mxu0 0
    %2738 = vmatpush2.bf16.msra.mxu0 0
    %2739 = vmatprep.subr.bf16.mxu0 0
    %2740 = vmatpush2.bf16.msra.mxu0 0
    %2741 = vmatprep.subr.bf16.mxu0 0
    %2742 = vmatpush2.bf16.msra.mxu0 0
    %2743 = vmatprep.mubr.bf16.mxu0 0
    %2744 = vmatmul.mubr.bf16.gmra.mxu0 %v2706
    %v2745 = vpop.f32.mrf.mxu0
    %v2746 = vadd.f32 0.0, %v2745
    %v2747 = vpop.f32.mrf.mxu0
    %v2748 = vpop.f32.mrf.mxu0
    %v2749 = vpop.f32.mrf.mxu0
    %2750 = vdwg.mxu0
    %v2751 = vpack.c.bf16 %v2746, %v2697
    %v2756 = vunpack.c.l.b16 %v2294
    %v2757 = vunpack.c.l.b16 %v2295
    %v2758 = vunpack.c.l.b16 %v2296
    %v2759 = vunpack.c.l.b16 %v2297
    %v2760 = vpack.c.b16 %v2757, %v2756
    %v2761 = vpack.c.b16 %v2759, %v2758
    %v2765 = vsel %vm491, %v2751, 0
    %2767 = vmatprep.subr.bf16.mxu0 0
    %2768 = vmatpush1.bf16.msra.mxu0 0
    %2769 = vmatprep.subr.bf16.mxu0 0
    %2770 = vmatpush1.bf16.msra.mxu0 0
    %2771 = vmatprep.subr.bf16.mxu0 0
    %2772 = vmatpush1.bf16.msra.mxu0 0
    %2773 = vmatprep.subr.bf16.mxu0 0
    %2774 = vmatpush1.bf16.msra.mxu0 0
    %2775 = vmatprep.subr.bf16.mxu0 0
    %2776 = vmatpush1.bf16.msra.mxu0 0
    %2777 = vmatprep.subr.bf16.mxu0 0
    %2778 = vmatpush1.bf16.msra.mxu0 0
    %2779 = vmatprep.subr.bf16.mxu0 0
    %2780 = vmatpush1.bf16.msra.mxu0 %v2761
    %2781 = vmatprep.subr.bf16.mxu0 0
    %2782 = vmatpush1.bf16.msra.mxu0 %v2760
    %2783 = vmatprep.subr.bf16.mxu0 0
    %2784 = vmatpush2.bf16.msra.mxu0 0
    %2785 = vmatprep.subr.bf16.mxu0 0
    %2786 = vmatpush2.bf16.msra.mxu0 0
    %2787 = vmatprep.subr.bf16.mxu0 0
    %2788 = vmatpush2.bf16.msra.mxu0 0
    %2789 = vmatprep.subr.bf16.mxu0 0
    %2790 = vmatpush2.bf16.msra.mxu0 0
    %2791 = vmatprep.subr.bf16.mxu0 0
    %2792 = vmatpush2.bf16.msra.mxu0 0
    %2793 = vmatprep.subr.bf16.mxu0 0
    %2794 = vmatpush2.bf16.msra.mxu0 0
    %2795 = vmatprep.subr.bf16.mxu0 0
    %2796 = vmatpush2.bf16.msra.mxu0 0
    %2797 = vmatprep.subr.bf16.mxu0 0
    %2798 = vmatpush2.bf16.msra.mxu0 0
    %2799 = vmatprep.mubr.bf16.mxu0 0
    %2800 = vmatmul.mubr.bf16.gmra.mxu0 %v2765
    %v2801 = vpop.f32.mrf.mxu0
    %v2802 = vadd.f32 0.0, %v2801
    %v2803 = vpop.f32.mrf.mxu0
    %v2804 = vpop.f32.mrf.mxu0
    %v2805 = vadd.f32 0.0, %v2804
    %v2806 = vpop.f32.mrf.mxu0
    %2807 = vdwg.mxu0
    %v2812 = vunpack.c.l.b16 %v2290
    %v2813 = vunpack.c.l.b16 %v2291
    %v2814 = vunpack.c.l.b16 %v2292
    %v2815 = vunpack.c.l.b16 %v2293
    %v2816 = vpack.c.b16 %v2813, %v2812
    %v2817 = vpack.c.b16 %v2815, %v2814
    %v2821 = vsel %vm491, %v2522, 0
    %2823 = vmatprep.subr.bf16.mxu0 0
    %2824 = vmatpush1.bf16.msra.mxu0 0
    %2825 = vmatprep.subr.bf16.mxu0 0
    %2826 = vmatpush1.bf16.msra.mxu0 0
    %2827 = vmatprep.subr.bf16.mxu0 0
    %2828 = vmatpush1.bf16.msra.mxu0 0
    %2829 = vmatprep.subr.bf16.mxu0 0
    %2830 = vmatpush1.bf16.msra.mxu0 0
    %2831 = vmatprep.subr.bf16.mxu0 0
    %2832 = vmatpush1.bf16.msra.mxu0 0
    %2833 = vmatprep.subr.bf16.mxu0 0
    %2834 = vmatpush1.bf16.msra.mxu0 0
    %2835 = vmatprep.subr.bf16.mxu0 0
    %2836 = vmatpush1.bf16.msra.mxu0 %v2817
    %2837 = vmatprep.subr.bf16.mxu0 0
    %2838 = vmatpush1.bf16.msra.mxu0 %v2816
    %2839 = vmatprep.subr.bf16.mxu0 0
    %2840 = vmatpush2.bf16.msra.mxu0 0
    %2841 = vmatprep.subr.bf16.mxu0 0
    %2842 = vmatpush2.bf16.msra.mxu0 0
    %2843 = vmatprep.subr.bf16.mxu0 0
    %2844 = vmatpush2.bf16.msra.mxu0 0
    %2845 = vmatprep.subr.bf16.mxu0 0
    %2846 = vmatpush2.bf16.msra.mxu0 0
    %2847 = vmatprep.subr.bf16.mxu0 0
    %2848 = vmatpush2.bf16.msra.mxu0 0
    %2849 = vmatprep.subr.bf16.mxu0 0
    %2850 = vmatpush2.bf16.msra.mxu0 0
    %2851 = vmatprep.subr.bf16.mxu0 0
    %2852 = vmatpush2.bf16.msra.mxu0 0
    %2853 = vmatprep.subr.bf16.mxu0 0
    %2854 = vmatpush2.bf16.msra.mxu0 0
    %2855 = vmatprep.mubr.bf16.mxu0 0
    %2856 = vmatmul.mubr.bf16.gmra.mxu0 %v2821
    %v2857 = vpop.f32.mrf.mxu0
    %v2858 = vadd.f32 %v2802, %v2857
    %v2859 = vpop.f32.mrf.mxu0
    %v2860 = vpop.f32.mrf.mxu0
    %v2861 = vadd.f32 %v2805, %v2860
    %v2862 = vpop.f32.mrf.mxu0
    %2863 = vdwg.mxu0
    %2864 = vrot.lane.b32.xlu0 %v2306, 64
    %v2865 = vpop.permute.xlu0 %2864
    %2866 = vrot.lane.b32.xlu0 %v2308, 64
    %v2867 = vpop.permute.xlu0 %2866
    %v2869 = vsel %vm491, %v2865, 0
    %v2872 = vsel %vm491, %v2867, 0
    %2874 = vmatprep.subr.bf16.mxu0 0
    %2875 = vmatpush1.bf16.xpose.msra.mxu0 0
    %2876 = vmatprep.subr.bf16.mxu0 0
    %2877 = vmatpush1.bf16.xpose.msra.mxu0 0
    %2878 = vmatprep.subr.bf16.mxu0 0
    %2879 = vmatpush1.bf16.xpose.msra.mxu0 0
    %2880 = vmatprep.subr.bf16.mxu0 0
    %2881 = vmatpush1.bf16.xpose.msra.mxu0 0
    %2882 = vmatprep.subr.bf16.mxu0 0
    %2883 = vmatpush1.bf16.xpose.msra.mxu0 0
    %2884 = vmatprep.subr.bf16.mxu0 0
    %2885 = vmatpush1.bf16.xpose.msra.mxu0 0
    %2886 = vmatprep.subr.bf16.mxu0 0
    %2887 = vmatpush1.bf16.xpose.msra.mxu0 0
    %2888 = vmatprep.subr.bf16.mxu0 0
    %2889 = vmatpush1.bf16.xpose.msra.mxu0 %v2872
    %2890 = vmatprep.subr.bf16.mxu0 0
    %2891 = vmatpush2.bf16.xpose.msra.mxu0 0
    %2892 = vmatprep.subr.bf16.mxu0 0
    %2893 = vmatpush2.bf16.xpose.msra.mxu0 0
    %2894 = vmatprep.subr.bf16.mxu0 0
    %2895 = vmatpush2.bf16.xpose.msra.mxu0 0
    %2896 = vmatprep.subr.bf16.mxu0 0
    %2897 = vmatpush2.bf16.xpose.msra.mxu0 0
    %2898 = vmatprep.subr.bf16.mxu0 0
    %2899 = vmatpush2.bf16.xpose.msra.mxu0 0
    %2900 = vmatprep.subr.bf16.mxu0 0
    %2901 = vmatpush2.bf16.xpose.msra.mxu0 0
    %2902 = vmatprep.subr.bf16.mxu0 0
    %2903 = vmatpush2.bf16.xpose.msra.mxu0 0
    %2904 = vmatprep.subr.bf16.mxu0 0
    %2905 = vmatpush2.bf16.xpose.msra.mxu0 0
    %2906 = vmatprep.mubr.bf16.mxu0 0
    %2907 = vmatmul.mubr.bf16.gmra.mxu0 %v2869
    %v2908 = vpop.f32.mrf.mxu0
    %v2909 = vadd.f32 0.0, %v2908
    %v2910 = vpop.f32.mrf.mxu0
    %v2911 = vpop.f32.mrf.mxu0
    %v2912 = vpop.f32.mrf.mxu0
    %2913 = vdwg.mxu0
    %2914 = vrot.lane.b32.xlu0 %v2307, 64
    %v2915 = vpop.permute.xlu0 %2914
    %2916 = vrot.lane.b32.xlu0 %v2309, 64
    %v2917 = vpop.permute.xlu0 %2916
    %v2919 = vsel %vm491, %v2915, 0
    %v2922 = vsel %vm491, %v2917, 0
    %2924 = vmatprep.subr.bf16.mxu0 0
    %2925 = vmatpush1.bf16.xpose.msra.mxu0 0
    %2926 = vmatprep.subr.bf16.mxu0 0
    %2927 = vmatpush1.bf16.xpose.msra.mxu0 0
    %2928 = vmatprep.subr.bf16.mxu0 0
    %2929 = vmatpush1.bf16.xpose.msra.mxu0 0
    %2930 = vmatprep.subr.bf16.mxu0 0
    %2931 = vmatpush1.bf16.xpose.msra.mxu0 0
    %2932 = vmatprep.subr.bf16.mxu0 0
    %2933 = vmatpush1.bf16.xpose.msra.mxu0 0
    %2934 = vmatprep.subr.bf16.mxu0 0
    %2935 = vmatpush1.bf16.xpose.msra.mxu0 0
    %2936 = vmatprep.subr.bf16.mxu0 0
    %2937 = vmatpush1.bf16.xpose.msra.mxu0 0
    %2938 = vmatprep.subr.bf16.mxu0 0
    %2939 = vmatpush1.bf16.xpose.msra.mxu0 %v2922
    %2940 = vmatprep.subr.bf16.mxu0 0
    %2941 = vmatpush2.bf16.xpose.msra.mxu0 0
    %2942 = vmatprep.subr.bf16.mxu0 0
    %2943 = vmatpush2.bf16.xpose.msra.mxu0 0
    %2944 = vmatprep.subr.bf16.mxu0 0
    %2945 = vmatpush2.bf16.xpose.msra.mxu0 0
    %2946 = vmatprep.subr.bf16.mxu0 0
    %2947 = vmatpush2.bf16.xpose.msra.mxu0 0
    %2948 = vmatprep.subr.bf16.mxu0 0
    %2949 = vmatpush2.bf16.xpose.msra.mxu0 0
    %2950 = vmatprep.subr.bf16.mxu0 0
    %2951 = vmatpush2.bf16.xpose.msra.mxu0 0
    %2952 = vmatprep.subr.bf16.mxu0 0
    %2953 = vmatpush2.bf16.xpose.msra.mxu0 0
    %2954 = vmatprep.subr.bf16.mxu0 0
    %2955 = vmatpush2.bf16.xpose.msra.mxu0 0
    %2956 = vmatprep.mubr.bf16.mxu0 0
    %2957 = vmatmul.mubr.bf16.gmra.mxu0 %v2919
    %v2958 = vpop.f32.mrf.mxu0
    %v2959 = vadd.f32 0.0, %v2958
    %v2960 = vpop.f32.mrf.mxu0
    %v2961 = vpop.f32.mrf.mxu0
    %v2962 = vpop.f32.mrf.mxu0
    %2963 = vdwg.mxu0
    %v2964 = vmul.f32 %v2909, 0.17677669
    %v2965 = vmul.f32 %v2959, 0.17677669
    %v2966 = vsel %vm586, %v2964, -inf
    %2967 = vmax.xlane.f32.xlu0 %v2966
    %v2968 = vpop.xlane.xlu0 %2967
    %v2969 = vsel %vm586, %v2965, -inf
    %2970 = vmax.xlane.f32.xlu0 %v2969
    %v2971 = vpop.xlane.xlu0 %2970
    %v2972 = vsub.f32 %v2964, %v2968
    %v2973 = vsub.f32 %v2965, %v2971
    %v2974 = vmul.f32 %v2972, 1.442695
    %v2975 = vpow.pop %v2974
    %v2976 = vmul.f32 %v2973, 1.442695
    %v2977 = vpow.pop %v2976
    %v2978 = vsel %vm586, %v2975, 0.0
    %2979 = vadd.xlane.f32.xlu0 %v2978
    %v2980 = vpop.xlane.xlu0 %2979
    %v2981 = vsel %vm586, %v2977, 0.0
    %2982 = vadd.xlane.f32.xlu0 %v2981
    %v2983 = vpop.xlane.xlu0 %2982
    %v2984 = vrcp.pop %v2980
    %v2985 = vrcp.pop %v2983
    %v2986 = vmul.f32 %v2975, %v2984
    %v2987 = vmul.f32 %v2977, %v2985
    %v2988 = vpack.c.bf16 %v2986, %v2986
    %v2989 = vpack.c.bf16 %v2987, %v2987
    %2990 = vrot.lane.b32.xlu0 %v2428, 64
    %v2991 = vpop.permute.xlu0 %2990
    %v2993 = vsel %vm586, %v2988, 0
    %v2996 = vsel %vm616, %v2991, 0
    %2998 = vmatprep.subr.bf16.mxu0 0
    %2999 = vmatpush1.bf16.msra.mxu0 0
    %3000 = vmatprep.subr.bf16.mxu0 0
    %3001 = vmatpush1.bf16.msra.mxu0 0
    %3002 = vmatprep.subr.bf16.mxu0 0
    %3003 = vmatpush1.bf16.msra.mxu0 0
    %3004 = vmatprep.subr.bf16.mxu0 0
    %3005 = vmatpush1.bf16.msra.mxu0 0
    %3006 = vmatprep.subr.bf16.mxu0 0
    %3007 = vmatpush1.bf16.msra.mxu0 0
    %3008 = vmatprep.subr.bf16.mxu0 0
    %3009 = vmatpush1.bf16.msra.mxu0 0
    %3010 = vmatprep.subr.bf16.mxu0 0
    %3011 = vmatpush1.bf16.msra.mxu0 0
    %3012 = vmatprep.subr.bf16.mxu0 0
    %3013 = vmatpush1.bf16.msra.mxu0 %v2996
    %3014 = vmatprep.subr.bf16.mxu0 0
    %3015 = vmatpush2.bf16.msra.mxu0 0
    %3016 = vmatprep.subr.bf16.mxu0 0
    %3017 = vmatpush2.bf16.msra.mxu0 0
    %3018 = vmatprep.subr.bf16.mxu0 0
    %3019 = vmatpush2.bf16.msra.mxu0 0
    %3020 = vmatprep.subr.bf16.mxu0 0
    %3021 = vmatpush2.bf16.msra.mxu0 0
    %3022 = vmatprep.subr.bf16.mxu0 0
    %3023 = vmatpush2.bf16.msra.mxu0 0
    %3024 = vmatprep.subr.bf16.mxu0 0
    %3025 = vmatpush2.bf16.msra.mxu0 0
    %3026 = vmatprep.subr.bf16.mxu0 0
    %3027 = vmatpush2.bf16.msra.mxu0 0
    %3028 = vmatprep.subr.bf16.mxu0 0
    %3029 = vmatpush2.bf16.msra.mxu0 0
    %3030 = vmatprep.mubr.bf16.mxu0 0
    %3031 = vmatmul.mubr.bf16.gmra.mxu0 %v2993
    %v3032 = vpop.f32.mrf.mxu0
    %v3033 = vadd.f32 0.0, %v3032
    %v3034 = vpop.f32.mrf.mxu0
    %v3035 = vpop.f32.mrf.mxu0
    %v3036 = vpop.f32.mrf.mxu0
    %3037 = vdwg.mxu0
    %3038 = vrot.lane.b32.xlu0 %v2429, 64
    %v3039 = vpop.permute.xlu0 %3038
    %v3041 = vsel %vm586, %v2989, 0
    %v3044 = vsel %vm616, %v3039, 0
    %3046 = vmatprep.subr.bf16.mxu0 0
    %3047 = vmatpush1.bf16.msra.mxu0 0
    %3048 = vmatprep.subr.bf16.mxu0 0
    %3049 = vmatpush1.bf16.msra.mxu0 0
    %3050 = vmatprep.subr.bf16.mxu0 0
    %3051 = vmatpush1.bf16.msra.mxu0 0
    %3052 = vmatprep.subr.bf16.mxu0 0
    %3053 = vmatpush1.bf16.msra.mxu0 0
    %3054 = vmatprep.subr.bf16.mxu0 0
    %3055 = vmatpush1.bf16.msra.mxu0 0
    %3056 = vmatprep.subr.bf16.mxu0 0
    %3057 = vmatpush1.bf16.msra.mxu0 0
    %3058 = vmatprep.subr.bf16.mxu0 0
    %3059 = vmatpush1.bf16.msra.mxu0 0
    %3060 = vmatprep.subr.bf16.mxu0 0
    %3061 = vmatpush1.bf16.msra.mxu0 %v3044
    %3062 = vmatprep.subr.bf16.mxu0 0
    %3063 = vmatpush2.bf16.msra.mxu0 0
    %3064 = vmatprep.subr.bf16.mxu0 0
    %3065 = vmatpush2.bf16.msra.mxu0 0
    %3066 = vmatprep.subr.bf16.mxu0 0
    %3067 = vmatpush2.bf16.msra.mxu0 0
    %3068 = vmatprep.subr.bf16.mxu0 0
    %3069 = vmatpush2.bf16.msra.mxu0 0
    %3070 = vmatprep.subr.bf16.mxu0 0
    %3071 = vmatpush2.bf16.msra.mxu0 0
    %3072 = vmatprep.subr.bf16.mxu0 0
    %3073 = vmatpush2.bf16.msra.mxu0 0
    %3074 = vmatprep.subr.bf16.mxu0 0
    %3075 = vmatpush2.bf16.msra.mxu0 0
    %3076 = vmatprep.subr.bf16.mxu0 0
    %3077 = vmatpush2.bf16.msra.mxu0 0
    %3078 = vmatprep.mubr.bf16.mxu0 0
    %3079 = vmatmul.mubr.bf16.gmra.mxu0 %v3041
    %v3080 = vpop.f32.mrf.mxu0
    %v3081 = vadd.f32 0.0, %v3080
    %v3082 = vpop.f32.mrf.mxu0
    %v3083 = vpop.f32.mrf.mxu0
    %v3084 = vpop.f32.mrf.mxu0
    %3085 = vdwg.mxu0
    %v3086 = vpack.c.bf16 %v3081, %v3033
    %v3091 = vunpack.c.l.b16 %v2298
    %v3092 = vunpack.c.l.b16 %v2299
    %v3093 = vunpack.c.l.b16 %v2300
    %v3094 = vunpack.c.l.b16 %v2301
    %v3095 = vpack.c.b16 %v3092, %v3091
    %v3096 = vpack.c.b16 %v3094, %v3093
    %v3100 = vsel %vm491, %v3086, 0
    %3102 = vmatprep.subr.bf16.mxu0 0
    %3103 = vmatpush1.bf16.msra.mxu0 0
    %3104 = vmatprep.subr.bf16.mxu0 0
    %3105 = vmatpush1.bf16.msra.mxu0 0
    %3106 = vmatprep.subr.bf16.mxu0 0
    %3107 = vmatpush1.bf16.msra.mxu0 0
    %3108 = vmatprep.subr.bf16.mxu0 0
    %3109 = vmatpush1.bf16.msra.mxu0 0
    %3110 = vmatprep.subr.bf16.mxu0 0
    %3111 = vmatpush1.bf16.msra.mxu0 0
    %3112 = vmatprep.subr.bf16.mxu0 0
    %3113 = vmatpush1.bf16.msra.mxu0 0
    %3114 = vmatprep.subr.bf16.mxu0 0
    %3115 = vmatpush1.bf16.msra.mxu0 %v3096
    %3116 = vmatprep.subr.bf16.mxu0 0
    %3117 = vmatpush1.bf16.msra.mxu0 %v3095
    %3118 = vmatprep.subr.bf16.mxu0 0
    %3119 = vmatpush2.bf16.msra.mxu0 0
    %3120 = vmatprep.subr.bf16.mxu0 0
    %3121 = vmatpush2.bf16.msra.mxu0 0
    %3122 = vmatprep.subr.bf16.mxu0 0
    %3123 = vmatpush2.bf16.msra.mxu0 0
    %3124 = vmatprep.subr.bf16.mxu0 0
    %3125 = vmatpush2.bf16.msra.mxu0 0
    %3126 = vmatprep.subr.bf16.mxu0 0
    %3127 = vmatpush2.bf16.msra.mxu0 0
    %3128 = vmatprep.subr.bf16.mxu0 0
    %3129 = vmatpush2.bf16.msra.mxu0 0
    %3130 = vmatprep.subr.bf16.mxu0 0
    %3131 = vmatpush2.bf16.msra.mxu0 0
    %3132 = vmatprep.subr.bf16.mxu0 0
    %3133 = vmatpush2.bf16.msra.mxu0 0
    %3134 = vmatprep.mubr.bf16.mxu0 0
    %3135 = vmatmul.mubr.bf16.gmra.mxu0 %v3100
    %v3136 = vpop.f32.mrf.mxu0
    %v3137 = vadd.f32 0.0, %v3136
    %v3138 = vpop.f32.mrf.mxu0
    %v3139 = vpop.f32.mrf.mxu0
    %v3140 = vadd.f32 0.0, %v3139
    %v3141 = vpop.f32.mrf.mxu0
    %3142 = vdwg.mxu0
    %v3143 = vadd.f32 %v2858, %v3137
    %v3144 = vadd.f32 %v2861, %v3140
    %3145 = vrot.lane.b32.xlu0 %v2306, 32
    %v3146 = vpop.permute.xlu0 %3145
    %3147 = vrot.lane.b32.xlu0 %v2308, 32
    %v3148 = vpop.permute.xlu0 %3147
    %v3150 = vsel %vm491, %v3146, 0
    %v3153 = vsel %vm491, %v3148, 0
    %3155 = vmatprep.subr.bf16.mxu0 0
    %3156 = vmatpush1.bf16.xpose.msra.mxu0 0
    %3157 = vmatprep.subr.bf16.mxu0 0
    %3158 = vmatpush1.bf16.xpose.msra.mxu0 0
    %3159 = vmatprep.subr.bf16.mxu0 0
    %3160 = vmatpush1.bf16.xpose.msra.mxu0 0
    %3161 = vmatprep.subr.bf16.mxu0 0
    %3162 = vmatpush1.bf16.xpose.msra.mxu0 0
    %3163 = vmatprep.subr.bf16.mxu0 0
    %3164 = vmatpush1.bf16.xpose.msra.mxu0 0
    %3165 = vmatprep.subr.bf16.mxu0 0
    %3166 = vmatpush1.bf16.xpose.msra.mxu0 0
    %3167 = vmatprep.subr.bf16.mxu0 0
    %3168 = vmatpush1.bf16.xpose.msra.mxu0 0
    %3169 = vmatprep.subr.bf16.mxu0 0
    %3170 = vmatpush1.bf16.xpose.msra.mxu0 %v3153
    %3171 = vmatprep.subr.bf16.mxu0 0
    %3172 = vmatpush2.bf16.xpose.msra.mxu0 0
    %3173 = vmatprep.subr.bf16.mxu0 0
    %3174 = vmatpush2.bf16.xpose.msra.mxu0 0
    %3175 = vmatprep.subr.bf16.mxu0 0
    %3176 = vmatpush2.bf16.xpose.msra.mxu0 0
    %3177 = vmatprep.subr.bf16.mxu0 0
    %3178 = vmatpush2.bf16.xpose.msra.mxu0 0
    %3179 = vmatprep.subr.bf16.mxu0 0
    %3180 = vmatpush2.bf16.xpose.msra.mxu0 0
    %3181 = vmatprep.subr.bf16.mxu0 0
    %3182 = vmatpush2.bf16.xpose.msra.mxu0 0
    %3183 = vmatprep.subr.bf16.mxu0 0
    %3184 = vmatpush2.bf16.xpose.msra.mxu0 0
    %3185 = vmatprep.subr.bf16.mxu0 0
    %3186 = vmatpush2.bf16.xpose.msra.mxu0 0
    %3187 = vmatprep.mubr.bf16.mxu0 0
    %3188 = vmatmul.mubr.bf16.gmra.mxu0 %v3150
    %v3189 = vpop.f32.mrf.mxu0
    %v3190 = vadd.f32 0.0, %v3189
    %v3191 = vpop.f32.mrf.mxu0
    %v3192 = vpop.f32.mrf.mxu0
    %v3193 = vpop.f32.mrf.mxu0
    %3194 = vdwg.mxu0
    %3195 = vrot.lane.b32.xlu0 %v2307, 32
    %v3196 = vpop.permute.xlu0 %3195
    %3197 = vrot.lane.b32.xlu0 %v2309, 32
    %v3198 = vpop.permute.xlu0 %3197
    %v3200 = vsel %vm491, %v3196, 0
    %v3203 = vsel %vm491, %v3198, 0
    %3205 = vmatprep.subr.bf16.mxu0 0
    %3206 = vmatpush1.bf16.xpose.msra.mxu0 0
    %3207 = vmatprep.subr.bf16.mxu0 0
    %3208 = vmatpush1.bf16.xpose.msra.mxu0 0
    %3209 = vmatprep.subr.bf16.mxu0 0
    %3210 = vmatpush1.bf16.xpose.msra.mxu0 0
    %3211 = vmatprep.subr.bf16.mxu0 0
    %3212 = vmatpush1.bf16.xpose.msra.mxu0 0
    %3213 = vmatprep.subr.bf16.mxu0 0
    %3214 = vmatpush1.bf16.xpose.msra.mxu0 0
    %3215 = vmatprep.subr.bf16.mxu0 0
    %3216 = vmatpush1.bf16.xpose.msra.mxu0 0
    %3217 = vmatprep.subr.bf16.mxu0 0
    %3218 = vmatpush1.bf16.xpose.msra.mxu0 0
    %3219 = vmatprep.subr.bf16.mxu0 0
    %3220 = vmatpush1.bf16.xpose.msra.mxu0 %v3203
    %3221 = vmatprep.subr.bf16.mxu0 0
    %3222 = vmatpush2.bf16.xpose.msra.mxu0 0
    %3223 = vmatprep.subr.bf16.mxu0 0
    %3224 = vmatpush2.bf16.xpose.msra.mxu0 0
    %3225 = vmatprep.subr.bf16.mxu0 0
    %3226 = vmatpush2.bf16.xpose.msra.mxu0 0
    %3227 = vmatprep.subr.bf16.mxu0 0
    %3228 = vmatpush2.bf16.xpose.msra.mxu0 0
    %3229 = vmatprep.subr.bf16.mxu0 0
    %3230 = vmatpush2.bf16.xpose.msra.mxu0 0
    %3231 = vmatprep.subr.bf16.mxu0 0
    %3232 = vmatpush2.bf16.xpose.msra.mxu0 0
    %3233 = vmatprep.subr.bf16.mxu0 0
    %3234 = vmatpush2.bf16.xpose.msra.mxu0 0
    %3235 = vmatprep.subr.bf16.mxu0 0
    %3236 = vmatpush2.bf16.xpose.msra.mxu0 0
    %3237 = vmatprep.mubr.bf16.mxu0 0
    %3238 = vmatmul.mubr.bf16.gmra.mxu0 %v3200
    %v3239 = vpop.f32.mrf.mxu0
    %v3240 = vadd.f32 0.0, %v3239
    %v3241 = vpop.f32.mrf.mxu0
    %v3242 = vpop.f32.mrf.mxu0
    %v3243 = vpop.f32.mrf.mxu0
    %3244 = vdwg.mxu0
    %v3245 = vmul.f32 %v3190, 0.17677669
    %v3246 = vmul.f32 %v3240, 0.17677669
    %v3247 = vsel %vm586, %v3245, -inf
    %3248 = vmax.xlane.f32.xlu0 %v3247
    %v3249 = vpop.xlane.xlu0 %3248
    %v3250 = vsel %vm586, %v3246, -inf
    %3251 = vmax.xlane.f32.xlu0 %v3250
    %v3252 = vpop.xlane.xlu0 %3251
    %v3253 = vsub.f32 %v3245, %v3249
    %v3254 = vsub.f32 %v3246, %v3252
    %v3255 = vmul.f32 %v3253, 1.442695
    %v3256 = vpow.pop %v3255
    %v3257 = vmul.f32 %v3254, 1.442695
    %v3258 = vpow.pop %v3257
    %v3259 = vsel %vm586, %v3256, 0.0
    %3260 = vadd.xlane.f32.xlu0 %v3259
    %v3261 = vpop.xlane.xlu0 %3260
    %v3262 = vsel %vm586, %v3258, 0.0
    %3263 = vadd.xlane.f32.xlu0 %v3262
    %v3264 = vpop.xlane.xlu0 %3263
    %v3265 = vrcp.pop %v3261
    %v3266 = vrcp.pop %v3264
    %v3267 = vmul.f32 %v3256, %v3265
    %v3268 = vmul.f32 %v3258, %v3266
    %v3269 = vpack.c.bf16 %v3267, %v3267
    %v3270 = vpack.c.bf16 %v3268, %v3268
    %3271 = vrot.lane.b32.xlu0 %v2428, 32
    %v3272 = vpop.permute.xlu0 %3271
    %v3274 = vsel %vm586, %v3269, 0
    %v3277 = vsel %vm616, %v3272, 0
    %3279 = vmatprep.subr.bf16.mxu0 0
    %3280 = vmatpush1.bf16.msra.mxu0 0
    %3281 = vmatprep.subr.bf16.mxu0 0
    %3282 = vmatpush1.bf16.msra.mxu0 0
    %3283 = vmatprep.subr.bf16.mxu0 0
    %3284 = vmatpush1.bf16.msra.mxu0 0
    %3285 = vmatprep.subr.bf16.mxu0 0
    %3286 = vmatpush1.bf16.msra.mxu0 0
    %3287 = vmatprep.subr.bf16.mxu0 0
    %3288 = vmatpush1.bf16.msra.mxu0 0
    %3289 = vmatprep.subr.bf16.mxu0 0
    %3290 = vmatpush1.bf16.msra.mxu0 0
    %3291 = vmatprep.subr.bf16.mxu0 0
    %3292 = vmatpush1.bf16.msra.mxu0 0
    %3293 = vmatprep.subr.bf16.mxu0 0
    %3294 = vmatpush1.bf16.msra.mxu0 %v3277
    %3295 = vmatprep.subr.bf16.mxu0 0
    %3296 = vmatpush2.bf16.msra.mxu0 0
    %3297 = vmatprep.subr.bf16.mxu0 0
    %3298 = vmatpush2.bf16.msra.mxu0 0
    %3299 = vmatprep.subr.bf16.mxu0 0
    %3300 = vmatpush2.bf16.msra.mxu0 0
    %3301 = vmatprep.subr.bf16.mxu0 0
    %3302 = vmatpush2.bf16.msra.mxu0 0
    %3303 = vmatprep.subr.bf16.mxu0 0
    %3304 = vmatpush2.bf16.msra.mxu0 0
    %3305 = vmatprep.subr.bf16.mxu0 0
    %3306 = vmatpush2.bf16.msra.mxu0 0
    %3307 = vmatprep.subr.bf16.mxu0 0
    %3308 = vmatpush2.bf16.msra.mxu0 0
    %3309 = vmatprep.subr.bf16.mxu0 0
    %3310 = vmatpush2.bf16.msra.mxu0 0
    %3311 = vmatprep.mubr.bf16.mxu0 0
    %3312 = vmatmul.mubr.bf16.gmra.mxu0 %v3274
    %v3313 = vpop.f32.mrf.mxu0
    %v3314 = vadd.f32 0.0, %v3313
    %v3315 = vpop.f32.mrf.mxu0
    %v3316 = vpop.f32.mrf.mxu0
    %v3317 = vpop.f32.mrf.mxu0
    %3318 = vdwg.mxu0
    %3319 = vrot.lane.b32.xlu0 %v2429, 32
    %v3320 = vpop.permute.xlu0 %3319
    %v3322 = vsel %vm586, %v3270, 0
    %v3325 = vsel %vm616, %v3320, 0
    %3327 = vmatprep.subr.bf16.mxu0 0
    %3328 = vmatpush1.bf16.msra.mxu0 0
    %3329 = vmatprep.subr.bf16.mxu0 0
    %3330 = vmatpush1.bf16.msra.mxu0 0
    %3331 = vmatprep.subr.bf16.mxu0 0
    %3332 = vmatpush1.bf16.msra.mxu0 0
    %3333 = vmatprep.subr.bf16.mxu0 0
    %3334 = vmatpush1.bf16.msra.mxu0 0
    %3335 = vmatprep.subr.bf16.mxu0 0
    %3336 = vmatpush1.bf16.msra.mxu0 0
    %3337 = vmatprep.subr.bf16.mxu0 0
    %3338 = vmatpush1.bf16.msra.mxu0 0
    %3339 = vmatprep.subr.bf16.mxu0 0
    %3340 = vmatpush1.bf16.msra.mxu0 0
    %3341 = vmatprep.subr.bf16.mxu0 0
    %3342 = vmatpush1.bf16.msra.mxu0 %v3325
    %3343 = vmatprep.subr.bf16.mxu0 0
    %3344 = vmatpush2.bf16.msra.mxu0 0
    %3345 = vmatprep.subr.bf16.mxu0 0
    %3346 = vmatpush2.bf16.msra.mxu0 0
    %3347 = vmatprep.subr.bf16.mxu0 0
    %3348 = vmatpush2.bf16.msra.mxu0 0
    %3349 = vmatprep.subr.bf16.mxu0 0
    %3350 = vmatpush2.bf16.msra.mxu0 0
    %3351 = vmatprep.subr.bf16.mxu0 0
    %3352 = vmatpush2.bf16.msra.mxu0 0
    %3353 = vmatprep.subr.bf16.mxu0 0
    %3354 = vmatpush2.bf16.msra.mxu0 0
    %3355 = vmatprep.subr.bf16.mxu0 0
    %3356 = vmatpush2.bf16.msra.mxu0 0
    %3357 = vmatprep.subr.bf16.mxu0 0
    %3358 = vmatpush2.bf16.msra.mxu0 0
    %3359 = vmatprep.mubr.bf16.mxu0 0
    %3360 = vmatmul.mubr.bf16.gmra.mxu0 %v3322
    %v3361 = vpop.f32.mrf.mxu0
    %v3362 = vadd.f32 0.0, %v3361
    %v3363 = vpop.f32.mrf.mxu0
    %v3364 = vpop.f32.mrf.mxu0
    %v3365 = vpop.f32.mrf.mxu0
    %3366 = vdwg.mxu0
    %v3367 = vpack.c.bf16 %v3362, %v3314
    %v3372 = vunpack.c.l.b16 %v2302
    %v3373 = vunpack.c.l.b16 %v2303
    %v3374 = vunpack.c.l.b16 %v2304
    %v3375 = vunpack.c.l.b16 %v2305
    %v3376 = vpack.c.b16 %v3373, %v3372
    %v3377 = vpack.c.b16 %v3375, %v3374
    %v3381 = vsel %vm491, %v3367, 0
    %3383 = vmatprep.subr.bf16.mxu0 0
    %3384 = vmatpush1.bf16.msra.mxu0 0
    %3385 = vmatprep.subr.bf16.mxu0 0
    %3386 = vmatpush1.bf16.msra.mxu0 0
    %3387 = vmatprep.subr.bf16.mxu0 0
    %3388 = vmatpush1.bf16.msra.mxu0 0
    %3389 = vmatprep.subr.bf16.mxu0 0
    %3390 = vmatpush1.bf16.msra.mxu0 0
    %3391 = vmatprep.subr.bf16.mxu0 0
    %3392 = vmatpush1.bf16.msra.mxu0 0
    %3393 = vmatprep.subr.bf16.mxu0 0
    %3394 = vmatpush1.bf16.msra.mxu0 0
    %3395 = vmatprep.subr.bf16.mxu0 0
    %3396 = vmatpush1.bf16.msra.mxu0 %v3377
    %3397 = vmatprep.subr.bf16.mxu0 0
    %3398 = vmatpush1.bf16.msra.mxu0 %v3376
    %3399 = vmatprep.subr.bf16.mxu0 0
    %3400 = vmatpush2.bf16.msra.mxu0 0
    %3401 = vmatprep.subr.bf16.mxu0 0
    %3402 = vmatpush2.bf16.msra.mxu0 0
    %3403 = vmatprep.subr.bf16.mxu0 0
    %3404 = vmatpush2.bf16.msra.mxu0 0
    %3405 = vmatprep.subr.bf16.mxu0 0
    %3406 = vmatpush2.bf16.msra.mxu0 0
    %3407 = vmatprep.subr.bf16.mxu0 0
    %3408 = vmatpush2.bf16.msra.mxu0 0
    %3409 = vmatprep.subr.bf16.mxu0 0
    %3410 = vmatpush2.bf16.msra.mxu0 0
    %3411 = vmatprep.subr.bf16.mxu0 0
    %3412 = vmatpush2.bf16.msra.mxu0 0
    %3413 = vmatprep.subr.bf16.mxu0 0
    %3414 = vmatpush2.bf16.msra.mxu0 0
    %3415 = vmatprep.mubr.bf16.mxu0 0
    %3416 = vmatmul.mubr.bf16.gmra.mxu0 %v3381
    %v3417 = vpop.f32.mrf.mxu0
    %v3418 = vadd.f32 0.0, %v3417
    %v3419 = vpop.f32.mrf.mxu0
    %v3420 = vpop.f32.mrf.mxu0
    %v3421 = vadd.f32 0.0, %v3420
    %v3422 = vpop.f32.mrf.mxu0
    %3423 = vdwg.mxu0
    %v3424 = vadd.f32 %v3143, %v3418
    %v3425 = vadd.f32 %v3144, %v3421
    %v3426 = vadd.f32 %v1997, %v3424
    %v3427 = vadd.f32 %v1998, %v3425
    %s3428 = scalar_lea.vmem [#allocation11], 1
    %v3429 = vld [vmem:[%s3428] sm:$0x1]
    %v3431 = vlaneseq
    %v3432 = vshrl.u32 %v3431, 7
    %v3433 = vsub.s32 0, %v3432
    %v3434 = vrot.slane %v3429, %v3433
    %v3436 = vadd.f32 %v3426, %v3434
    %v3437 = vadd.f32 %v3427, %v3434
    %s3438 = scalar_lea.vmem %s6, 1
    %v3439 = vld [vmem:[%s3438] sm:$0x1]
    %s3440 = scalar_lea.vmem %s7, 1
    %v3441 = vld [vmem:[%s3440] sm:$0x1]
    %3442 = vadd.xlane.f32.xlu0 %v3436
    %v3443 = vpop.xlane.xlu0 %3442
    %3444 = vadd.xlane.f32.xlu0 %v3437
    %v3445 = vpop.xlane.xlu0 %3444
    %v3446 = vmul.f32 %v3443, 0.010416667
    %v3447 = vmul.f32 %v3445, 0.010416667
    %v3448 = vsub.f32 %v3436, %v3446
    %v3449 = vsub.f32 %v3437, %v3447
    %v3450 = vmul.f32 %v3448, %v181
    %v3451 = vmul.f32 %v3449, %v181
    %v3452 = vmul.f32 %v3450, %v3450
    %v3453 = vmul.f32 %v3451, %v3451
    %3454 = vadd.xlane.f32.xlu0 %v3452
    %v3455 = vpop.xlane.xlu0 %3454
    %3456 = vadd.xlane.f32.xlu0 %v3453
    %v3457 = vpop.xlane.xlu0 %3456
    %v3458 = vmul.f32 %v3455, 0.010416667
    %v3459 = vmul.f32 %v3457, 0.010416667
    %v3460 = vadd.f32 %v3458, 1e-05
    %v3461 = vadd.f32 %v3459, 1e-05
    %v3462 = vrsqrt.pop %v3460
    %v3463 = vrsqrt.pop %v3461
    %v3464 = vmul.f32 %v3450, %v3462
    %v3465 = vmul.f32 %v3451, %v3463
    %v3467 = vlaneseq
    %v3468 = vshrl.u32 %v3467, 7
    %v3469 = vsub.s32 0, %v3468
    %v3470 = vrot.slane %v3439, %v3469
    %v3472 = vmul.f32 %v3464, %v3470
    %v3473 = vmul.f32 %v3465, %v3470
    %v3475 = vlaneseq
    %v3476 = vshrl.u32 %v3475, 7
    %v3477 = vsub.s32 0, %v3476
    %v3478 = vrot.slane %v3441, %v3477
    %v3480 = vadd.f32 %v3472, %v3478
    %v3481 = vadd.f32 %v3473, %v3478
    %v3482 = vpack.c.bf16 %v3481, %v3480
    %s3483 = scalar_lea.vmem [#allocation13], 128
    %v3484 = vld [vmem:[%s3483] sm:$0xff]
    %v3485 = vld [vmem:[%s3483 + $0x8] sm:$0xff]
    %v3486 = vld [vmem:[%s3483 + $0x10] sm:$0xff]
    %v3487 = vld [vmem:[%s3483 + $0x18] sm:$0xff]
    %v3488 = vld [vmem:[%s3483 + $0x20] sm:$0xff]
    %v3489 = vld [vmem:[%s3483 + $0x28] sm:$0xff]
    %v3490 = vld [vmem:[%s3483 + $0x30] sm:$0xff]
    %v3491 = vld [vmem:[%s3483 + $0x38] sm:$0xff]
    %v3492 = vld [vmem:[%s3483 + $0x40] sm:$0xff]
    %v3493 = vld [vmem:[%s3483 + $0x48] sm:$0xff]
    %v3494 = vld [vmem:[%s3483 + $0x50] sm:$0xff]
    %v3495 = vld [vmem:[%s3483 + $0x58] sm:$0xff]
    %v3496 = vld [vmem:[%s3483 + $0x60] sm:$0xff]
    %v3497 = vld [vmem:[%s3483 + $0x68] sm:$0xff]
    %v3498 = vld [vmem:[%s3483 + $0x70] sm:$0xff]
    %v3499 = vld [vmem:[%s3483 + $0x78] sm:$0xff]
    %s3500 = scalar_lea.vmem %s9, 2
    %v3501 = vld [vmem:[%s3500] sm:$0x3]
    %v3503 = vlaneseq
    %v3504 = vshrl.u32 %v3503, 7
    %v3505 = vsub.s32 0, %v3504
    %v3506 = vrot.slane %v3501, %v3505
    %v3507 = vlaneseq
    %v3508 = vshrl.u32 %v3507, 7
    %v3509 = vsub.s32 1, %v3508
    %v3510 = vrot.slane %v3501, %v3509
    %v3529 = vunpack.c.l.b16 %v3484
    %v3530 = vunpack.c.h.b16 %v3484
    %v3531 = vunpack.c.l.b16 %v3485
    %v3532 = vunpack.c.h.b16 %v3485
    %v3533 = vunpack.c.l.b16 %v3486
    %v3534 = vunpack.c.h.b16 %v3486
    %v3535 = vunpack.c.l.b16 %v3487
    %v3536 = vunpack.c.h.b16 %v3487
    %v3537 = vunpack.c.l.b16 %v3488
    %v3538 = vunpack.c.h.b16 %v3488
    %v3539 = vunpack.c.l.b16 %v3489
    %v3540 = vunpack.c.h.b16 %v3489
    %v3541 = vunpack.c.l.b16 %v3490
    %v3542 = vunpack.c.h.b16 %v3490
    %v3543 = vunpack.c.l.b16 %v3491
    %v3544 = vunpack.c.h.b16 %v3491
    %v3545 = vunpack.c.l.b16 %v3492
    %v3546 = vunpack.c.h.b16 %v3492
    %v3547 = vunpack.c.l.b16 %v3493
    %v3548 = vunpack.c.h.b16 %v3493
    %v3549 = vunpack.c.l.b16 %v3494
    %v3550 = vunpack.c.h.b16 %v3494
    %v3551 = vunpack.c.l.b16 %v3495
    %v3552 = vunpack.c.h.b16 %v3495
    %v3553 = vunpack.c.l.b16 %v3496
    %v3554 = vunpack.c.h.b16 %v3496
    %v3555 = vunpack.c.l.b16 %v3497
    %v3556 = vunpack.c.h.b16 %v3497
    %v3557 = vunpack.c.l.b16 %v3498
    %v3558 = vunpack.c.h.b16 %v3498
    %v3559 = vunpack.c.l.b16 %v3499
    %v3560 = vunpack.c.h.b16 %v3499
    %v3561 = vpack.c.b16 %v3531, %v3529
    %v3562 = vpack.c.b16 %v3532, %v3530
    %v3563 = vpack.c.b16 %v3535, %v3533
    %v3564 = vpack.c.b16 %v3536, %v3534
    %v3565 = vpack.c.b16 %v3539, %v3537
    %v3566 = vpack.c.b16 %v3540, %v3538
    %v3567 = vpack.c.b16 %v3543, %v3541
    %v3568 = vpack.c.b16 %v3544, %v3542
    %v3569 = vpack.c.b16 %v3547, %v3545
    %v3570 = vpack.c.b16 %v3548, %v3546
    %v3571 = vpack.c.b16 %v3551, %v3549
    %v3572 = vpack.c.b16 %v3552, %v3550
    %v3573 = vpack.c.b16 %v3555, %v3553
    %v3574 = vpack.c.b16 %v3556, %v3554
    %v3575 = vpack.c.b16 %v3559, %v3557
    %v3576 = vpack.c.b16 %v3560, %v3558
    %3593 = vmatprep.subr.bf16.mxu0 %v3576
    %3594 = vmatpush1.bf16.msra.mxu0 %v3575
    %3595 = vmatprep.subr.bf16.mxu0 %v3574
    %3596 = vmatpush1.bf16.msra.mxu0 %v3573
    %3597 = vmatprep.subr.bf16.mxu0 %v3572
    %3598 = vmatpush1.bf16.msra.mxu0 %v3571
    %3599 = vmatprep.subr.bf16.mxu0 %v3570
    %3600 = vmatpush1.bf16.msra.mxu0 %v3569
    %3601 = vmatprep.subr.bf16.mxu0 %v3568
    %3602 = vmatpush1.bf16.msra.mxu0 %v3567
    %3603 = vmatprep.subr.bf16.mxu0 %v3566
    %3604 = vmatpush1.bf16.msra.mxu0 %v3565
    %3605 = vmatprep.subr.bf16.mxu0 %v3564
    %3606 = vmatpush1.bf16.msra.mxu0 %v3563
    %3607 = vmatprep.subr.bf16.mxu0 %v3562
    %3608 = vmatpush1.bf16.msra.mxu0 %v3561
    %3609 = vmatprep.subr.bf16.mxu0 0
    %3610 = vmatpush2.bf16.msra.mxu0 0
    %3611 = vmatprep.subr.bf16.mxu0 0
    %3612 = vmatpush2.bf16.msra.mxu0 0
    %3613 = vmatprep.subr.bf16.mxu0 0
    %3614 = vmatpush2.bf16.msra.mxu0 0
    %3615 = vmatprep.subr.bf16.mxu0 0
    %3616 = vmatpush2.bf16.msra.mxu0 0
    %3617 = vmatprep.subr.bf16.mxu0 0
    %3618 = vmatpush2.bf16.msra.mxu0 0
    %3619 = vmatprep.subr.bf16.mxu0 0
    %3620 = vmatpush2.bf16.msra.mxu0 0
    %3621 = vmatprep.subr.bf16.mxu0 0
    %3622 = vmatpush2.bf16.msra.mxu0 0
    %3623 = vmatprep.subr.bf16.mxu0 0
    %3624 = vmatpush2.bf16.msra.mxu0 0
    %3625 = vmatprep.mubr.bf16.mxu0 0
    %3626 = vmatmul.mubr.bf16.gmra.mxu0 %v3482
    %v3627 = vpop.f32.mrf.mxu0
    %v3628 = vadd.f32 %v3506, %v3627
    %v3629 = vpop.f32.mrf.mxu0
    %v3630 = vadd.f32 %v3510, %v3629
    %v3631 = vpop.f32.mrf.mxu0
    %v3632 = vadd.f32 %v3506, %v3631
    %v3633 = vpop.f32.mrf.mxu0
    %v3634 = vadd.f32 %v3510, %v3633
    %3635 = vdwg.mxu0
    %v3636 = vtanh.pop %v3628
    %v3637 = vtanh.pop %v3630
    %v3638 = vtanh.pop %v3632
    %v3639 = vtanh.pop %v3634
    %v3640 = vpack.c.bf16 %v3638, %v3636
    %v3641 = vpack.c.bf16 %v3639, %v3637
    %s3642 = scalar_lea.vmem [#allocation14], 128
    %v3643 = vld [vmem:[%s3642] sm:$0xf]
    %v3644 = vld [vmem:[%s3642 + $0x4] sm:$0xf]
    %v3645 = vld [vmem:[%s3642 + $0x8] sm:$0xf]
    %v3646 = vld [vmem:[%s3642 + $0xc] sm:$0xf]
    %v3647 = vld [vmem:[%s3642 + $0x10] sm:$0xf]
    %v3648 = vld [vmem:[%s3642 + $0x14] sm:$0xf]
    %v3649 = vld [vmem:[%s3642 + $0x18] sm:$0xf]
    %v3650 = vld [vmem:[%s3642 + $0x1c] sm:$0xf]
    %v3651 = vld [vmem:[%s3642 + $0x20] sm:$0xf]
    %v3652 = vld [vmem:[%s3642 + $0x24] sm:$0xf]
    %v3653 = vld [vmem:[%s3642 + $0x28] sm:$0xf]
    %v3654 = vld [vmem:[%s3642 + $0x2c] sm:$0xf]
    %v3655 = vld [vmem:[%s3642 + $0x30] sm:$0xf]
    %v3656 = vld [vmem:[%s3642 + $0x34] sm:$0xf]
    %v3657 = vld [vmem:[%s3642 + $0x38] sm:$0xf]
    %v3658 = vld [vmem:[%s3642 + $0x3c] sm:$0xf]
    %v3659 = vld [vmem:[%s3642 + $0x40] sm:$0xf]
    %v3660 = vld [vmem:[%s3642 + $0x44] sm:$0xf]
    %v3661 = vld [vmem:[%s3642 + $0x48] sm:$0xf]
    %v3662 = vld [vmem:[%s3642 + $0x4c] sm:$0xf]
    %v3663 = vld [vmem:[%s3642 + $0x50] sm:$0xf]
    %v3664 = vld [vmem:[%s3642 + $0x54] sm:$0xf]
    %v3665 = vld [vmem:[%s3642 + $0x58] sm:$0xf]
    %v3666 = vld [vmem:[%s3642 + $0x5c] sm:$0xf]
    %v3667 = vld [vmem:[%s3642 + $0x60] sm:$0xf]
    %v3668 = vld [vmem:[%s3642 + $0x64] sm:$0xf]
    %v3669 = vld [vmem:[%s3642 + $0x68] sm:$0xf]
    %v3670 = vld [vmem:[%s3642 + $0x6c] sm:$0xf]
    %v3671 = vld [vmem:[%s3642 + $0x70] sm:$0xf]
    %v3672 = vld [vmem:[%s3642 + $0x74] sm:$0xf]
    %v3673 = vld [vmem:[%s3642 + $0x78] sm:$0xf]
    %v3674 = vld [vmem:[%s3642 + $0x7c] sm:$0xf]
    %s3675 = scalar_lea.vmem %s11, 1
    %v3676 = vld [vmem:[%s3675] sm:$0x1]
    %v3678 = vlaneseq
    %v3679 = vshrl.u32 %v3678, 7
    %v3680 = vsub.s32 0, %v3679
    %v3681 = vrot.slane %v3676, %v3680
    %v3715 = vunpack.c.l.b16 %v3643
    %v3716 = vunpack.c.l.b16 %v3644
    %v3717 = vunpack.c.l.b16 %v3645
    %v3718 = vunpack.c.l.b16 %v3646
    %v3719 = vunpack.c.l.b16 %v3647
    %v3720 = vunpack.c.l.b16 %v3648
    %v3721 = vunpack.c.l.b16 %v3649
    %v3722 = vunpack.c.l.b16 %v3650
    %v3723 = vunpack.c.l.b16 %v3651
    %v3724 = vunpack.c.l.b16 %v3652
    %v3725 = vunpack.c.l.b16 %v3653
    %v3726 = vunpack.c.l.b16 %v3654
    %v3727 = vunpack.c.l.b16 %v3655
    %v3728 = vunpack.c.l.b16 %v3656
    %v3729 = vunpack.c.l.b16 %v3657
    %v3730 = vunpack.c.l.b16 %v3658
    %v3731 = vunpack.c.l.b16 %v3659
    %v3732 = vunpack.c.l.b16 %v3660
    %v3733 = vunpack.c.l.b16 %v3661
    %v3734 = vunpack.c.l.b16 %v3662
    %v3735 = vunpack.c.l.b16 %v3663
    %v3736 = vunpack.c.l.b16 %v3664
    %v3737 = vunpack.c.l.b16 %v3665
    %v3738 = vunpack.c.l.b16 %v3666
    %v3739 = vunpack.c.l.b16 %v3667
    %v3740 = vunpack.c.l.b16 %v3668
    %v3741 = vunpack.c.l.b16 %v3669
    %v3742 = vunpack.c.l.b16 %v3670
    %v3743 = vunpack.c.l.b16 %v3671
    %v3744 = vunpack.c.l.b16 %v3672
    %v3745 = vunpack.c.l.b16 %v3673
    %v3746 = vunpack.c.l.b16 %v3674
    %v3747 = vpack.c.b16 %v3716, %v3715
    %v3748 = vpack.c.b16 %v3718, %v3717
    %v3749 = vpack.c.b16 %v3720, %v3719
    %v3750 = vpack.c.b16 %v3722, %v3721
    %v3751 = vpack.c.b16 %v3724, %v3723
    %v3752 = vpack.c.b16 %v3726, %v3725
    %v3753 = vpack.c.b16 %v3728, %v3727
    %v3754 = vpack.c.b16 %v3730, %v3729
    %v3755 = vpack.c.b16 %v3732, %v3731
    %v3756 = vpack.c.b16 %v3734, %v3733
    %v3757 = vpack.c.b16 %v3736, %v3735
    %v3758 = vpack.c.b16 %v3738, %v3737
    %v3759 = vpack.c.b16 %v3740, %v3739
    %v3760 = vpack.c.b16 %v3742, %v3741
    %v3761 = vpack.c.b16 %v3744, %v3743
    %v3762 = vpack.c.b16 %v3746, %v3745
    %3779 = vmatprep.subr.bf16.mxu0 0
    %3780 = vmatpush1.bf16.msra.mxu0 %v3754
    %3781 = vmatprep.subr.bf16.mxu0 0
    %3782 = vmatpush1.bf16.msra.mxu0 %v3753
    %3783 = vmatprep.subr.bf16.mxu0 0
    %3784 = vmatpush1.bf16.msra.mxu0 %v3752
    %3785 = vmatprep.subr.bf16.mxu0 0
    %3786 = vmatpush1.bf16.msra.mxu0 %v3751
    %3787 = vmatprep.subr.bf16.mxu0 0
    %3788 = vmatpush1.bf16.msra.mxu0 %v3750
    %3789 = vmatprep.subr.bf16.mxu0 0
    %3790 = vmatpush1.bf16.msra.mxu0 %v3749
    %3791 = vmatprep.subr.bf16.mxu0 0
    %3792 = vmatpush1.bf16.msra.mxu0 %v3748
    %3793 = vmatprep.subr.bf16.mxu0 0
    %3794 = vmatpush1.bf16.msra.mxu0 %v3747
    %3795 = vmatprep.subr.bf16.mxu0 0
    %3796 = vmatpush2.bf16.msra.mxu0 %v3762
    %3797 = vmatprep.subr.bf16.mxu0 0
    %3798 = vmatpush2.bf16.msra.mxu0 %v3761
    %3799 = vmatprep.subr.bf16.mxu0 0
    %3800 = vmatpush2.bf16.msra.mxu0 %v3760
    %3801 = vmatprep.subr.bf16.mxu0 0
    %3802 = vmatpush2.bf16.msra.mxu0 %v3759
    %3803 = vmatprep.subr.bf16.mxu0 0
    %3804 = vmatpush2.bf16.msra.mxu0 %v3758
    %3805 = vmatprep.subr.bf16.mxu0 0
    %3806 = vmatpush2.bf16.msra.mxu0 %v3757
    %3807 = vmatprep.subr.bf16.mxu0 0
    %3808 = vmatpush2.bf16.msra.mxu0 %v3756
    %3809 = vmatprep.subr.bf16.mxu0 0
    %3810 = vmatpush2.bf16.msra.mxu0 %v3755
    %3811 = vmatprep.mubr.bf16.mxu0 %v3641
    %3812 = vmatmul.mubr.bf16.gmra.mxu0 %v3640
    %v3813 = vpop.f32.mrf.mxu0
    %v3814 = vadd.f32 %v3681, %v3813
    %v3815 = vpop.f32.mrf.mxu0
    %v3816 = vpop.f32.mrf.mxu0
    %v3817 = vadd.f32 %v3681, %v3816
    %v3818 = vpop.f32.mrf.mxu0
    %3819 = vdwg.mxu0
    %v3820 = vadd.f32 %v3436, %v3814
    %v3821 = vadd.f32 %v3437, %v3817
    %v3822 = vld [vmem:[%s12] sm:$0x1]
    %v3823 = vld [vmem:[%s13] sm:$0x1]
    %3824 = vadd.xlane.f32.xlu0 %v3820
    %v3825 = vpop.xlane.xlu0 %3824
    %3826 = vadd.xlane.f32.xlu0 %v3821
    %v3827 = vpop.xlane.xlu0 %3826
    %v3828 = vmul.f32 %v3825, 0.010416667
    %v3829 = vmul.f32 %v3827, 0.010416667
    %v3830 = vsub.f32 %v3820, %v3828
    %v3831 = vsub.f32 %v3821, %v3829
    %v3832 = vmul.f32 %v3830, %v181
    %v3833 = vmul.f32 %v3831, %v181
    %v3834 = vmul.f32 %v3832, %v3832
    %v3835 = vmul.f32 %v3833, %v3833
    %3836 = vadd.xlane.f32.xlu0 %v3834
    %v3837 = vpop.xlane.xlu0 %3836
    %3838 = vadd.xlane.f32.xlu0 %v3835
    %v3839 = vpop.xlane.xlu0 %3838
    %v3840 = vmul.f32 %v3837, 0.010416667
    %v3841 = vmul.f32 %v3839, 0.010416667
    %v3842 = vadd.f32 %v3840, 1e-05
    %v3843 = vadd.f32 %v3841, 1e-05
    %v3844 = vrsqrt.pop %v3842
    %v3845 = vrsqrt.pop %v3843
    %v3846 = vmul.f32 %v3832, %v3844
    %v3847 = vmul.f32 %v3833, %v3845
    %v3849 = vlaneseq
    %v3850 = vshrl.u32 %v3849, 7
    %v3851 = vsub.s32 0, %v3850
    %v3852 = vrot.slane %v3822, %v3851
    %v3854 = vmul.f32 %v3846, %v3852
    %v3855 = vmul.f32 %v3847, %v3852
    %v3857 = vlaneseq
    %v3858 = vshrl.u32 %v3857, 7
    %v3859 = vsub.s32 0, %v3858
    %v3860 = vrot.slane %v3823, %v3859
    %v3862 = vadd.f32 %v3854, %v3860
    %v3863 = vadd.f32 %v3855, %v3860
    %v3864 = vpack.c.bf16 %v3863, %v3862
    %v3865 = vld [vmem:[#allocation16] sm:$0xff]
    %v3866 = vld [vmem:[#allocation16 + $0x8] sm:$0xff]
    %v3867 = vld [vmem:[#allocation16 + $0x10] sm:$0xff]
    %v3868 = vld [vmem:[#allocation16 + $0x18] sm:$0xff]
    %v3869 = vld [vmem:[#allocation16 + $0x20] sm:$0xff]
    %v3870 = vld [vmem:[#allocation16 + $0x28] sm:$0xff]
    %v3871 = vld [vmem:[#allocation16 + $0x30] sm:$0xff]
    %v3872 = vld [vmem:[#allocation16 + $0x38] sm:$0xff]
    %v3873 = vld [vmem:[#allocation16 + $0x40] sm:$0xff]
    %v3874 = vld [vmem:[#allocation16 + $0x48] sm:$0xff]
    %v3875 = vld [vmem:[#allocation16 + $0x50] sm:$0xff]
    %v3876 = vld [vmem:[#allocation16 + $0x58] sm:$0xff]
    %v3877 = vld [vmem:[#allocation16 + $0x60] sm:$0xff]
    %v3878 = vld [vmem:[#allocation16 + $0x68] sm:$0xff]
    %v3879 = vld [vmem:[#allocation16 + $0x70] sm:$0xff]
    %v3880 = vld [vmem:[#allocation16 + $0x78] sm:$0xff]
    %v3881 = vld [vmem:[#allocation16 + $0x80] sm:$0xff]
    %v3882 = vld [vmem:[#allocation16 + $0x88] sm:$0xff]
    %v3883 = vld [vmem:[#allocation16 + $0x90] sm:$0xff]
    %v3884 = vld [vmem:[#allocation16 + $0x98] sm:$0xff]
    %v3885 = vld [vmem:[#allocation16 + $0xa0] sm:$0xff]
    %v3886 = vld [vmem:[#allocation16 + $0xa8] sm:$0xff]
    %v3887 = vld [vmem:[#allocation16 + $0xb0] sm:$0xff]
    %v3888 = vld [vmem:[#allocation16 + $0xb8] sm:$0xff]
    %v3889 = vld [vmem:[#allocation16 + $0xc0] sm:$0xff]
    %v3890 = vld [vmem:[#allocation16 + $0xc8] sm:$0xff]
    %v3891 = vld [vmem:[#allocation16 + $0xd0] sm:$0xff]
    %v3892 = vld [vmem:[#allocation16 + $0xd8] sm:$0xff]
    %v3893 = vld [vmem:[#allocation16 + $0xe0] sm:$0xff]
    %v3894 = vld [vmem:[#allocation16 + $0xe8] sm:$0xff]
    %v3895 = vld [vmem:[#allocation16 + $0xf0] sm:$0xff]
    %v3896 = vld [vmem:[#allocation16 + $0xf8] sm:$0xff]
    %v3897 = vld [vmem:[%s15] sm:$0xf]
    %v3899 = vlaneseq
    %v3900 = vshrl.u32 %v3899, 7
    %v3901 = vsub.s32 0, %v3900
    %v3902 = vrot.slane %v3897, %v3901
    %v3903 = vlaneseq
    %v3904 = vshrl.u32 %v3903, 7
    %v3905 = vsub.s32 1, %v3904
    %v3906 = vrot.slane %v3897, %v3905
    %v3907 = vlaneseq
    %v3908 = vshrl.u32 %v3907, 7
    %v3909 = vsub.s32 2, %v3908
    %v3910 = vrot.slane %v3897, %v3909
    %v3911 = vlaneseq
    %v3912 = vshrl.u32 %v3911, 7
    %v3913 = vsub.s32 3, %v3912
    %v3914 = vrot.slane %v3897, %v3913
    %v3951 = vunpack.c.l.b16 %v3865
    %v3952 = vunpack.c.h.b16 %v3865
    %v3953 = vunpack.c.l.b16 %v3866
    %v3954 = vunpack.c.h.b16 %v3866
    %v3955 = vunpack.c.l.b16 %v3867
    %v3956 = vunpack.c.h.b16 %v3867
    %v3957 = vunpack.c.l.b16 %v3868
    %v3958 = vunpack.c.h.b16 %v3868
    %v3959 = vunpack.c.l.b16 %v3869
    %v3960 = vunpack.c.h.b16 %v3869
    %v3961 = vunpack.c.l.b16 %v3870
    %v3962 = vunpack.c.h.b16 %v3870
    %v3963 = vunpack.c.l.b16 %v3871
    %v3964 = vunpack.c.h.b16 %v3871
    %v3965 = vunpack.c.l.b16 %v3872
    %v3966 = vunpack.c.h.b16 %v3872
    %v3967 = vunpack.c.l.b16 %v3873
    %v3968 = vunpack.c.h.b16 %v3873
    %v3969 = vunpack.c.l.b16 %v3874
    %v3970 = vunpack.c.h.b16 %v3874
    %v3971 = vunpack.c.l.b16 %v3875
    %v3972 = vunpack.c.h.b16 %v3875
    %v3973 = vunpack.c.l.b16 %v3876
    %v3974 = vunpack.c.h.b16 %v3876
    %v3975 = vunpack.c.l.b16 %v3877
    %v3976 = vunpack.c.h.b16 %v3877
    %v3977 = vunpack.c.l.b16 %v3878
    %v3978 = vunpack.c.h.b16 %v3878
    %v3979 = vunpack.c.l.b16 %v3879
    %v3980 = vunpack.c.h.b16 %v3879
    %v3981 = vunpack.c.l.b16 %v3880
    %v3982 = vunpack.c.h.b16 %v3880
    %v3983 = vunpack.c.l.b16 %v3881
    %v3984 = vunpack.c.h.b16 %v3881
    %v3985 = vunpack.c.l.b16 %v3882
    %v3986 = vunpack.c.h.b16 %v3882
    %v3987 = vunpack.c.l.b16 %v3883
    %v3988 = vunpack.c.h.b16 %v3883
    %v3989 = vunpack.c.l.b16 %v3884
    %v3990 = vunpack.c.h.b16 %v3884
    %v3991 = vunpack.c.l.b16 %v3885
    %v3992 = vunpack.c.h.b16 %v3885
    %v3993 = vunpack.c.l.b16 %v3886
    %v3994 = vunpack.c.h.b16 %v3886
    %v3995 = vunpack.c.l.b16 %v3887
    %v3996 = vunpack.c.h.b16 %v3887
    %v3997 = vunpack.c.l.b16 %v3888
    %v3998 = vunpack.c.h.b16 %v3888
    %v3999 = vunpack.c.l.b16 %v3889
    %v4000 = vunpack.c.h.b16 %v3889
    %v4001 = vunpack.c.l.b16 %v3890
    %v4002 = vunpack.c.h.b16 %v3890
    %v4003 = vunpack.c.l.b16 %v3891
    %v4004 = vunpack.c.h.b16 %v3891
    %v4005 = vunpack.c.l.b16 %v3892
    %v4006 = vunpack.c.h.b16 %v3892
    %v4007 = vunpack.c.l.b16 %v3893
    %v4008 = vunpack.c.h.b16 %v3893
    %v4009 = vunpack.c.l.b16 %v3894
    %v4010 = vunpack.c.h.b16 %v3894
    %v4011 = vunpack.c.l.b16 %v3895
    %v4012 = vunpack.c.h.b16 %v3895
    %v4013 = vunpack.c.l.b16 %v3896
    %v4014 = vunpack.c.h.b16 %v3896
    %v4015 = vpack.c.b16 %v3955, %v3951
    %v4016 = vpack.c.b16 %v3956, %v3952
    %v4017 = vpack.c.b16 %v3957, %v3953
    %v4018 = vpack.c.b16 %v3958, %v3954
    %v4019 = vpack.c.b16 %v3963, %v3959
    %v4020 = vpack.c.b16 %v3964, %v3960
    %v4021 = vpack.c.b16 %v3965, %v3961
    %v4022 = vpack.c.b16 %v3966, %v3962
    %v4023 = vpack.c.b16 %v3971, %v3967
    %v4024 = vpack.c.b16 %v3972, %v3968
    %v4025 = vpack.c.b16 %v3973, %v3969
    %v4026 = vpack.c.b16 %v3974, %v3970
    %v4027 = vpack.c.b16 %v3979, %v3975
    %v4028 = vpack.c.b16 %v3980, %v3976
    %v4029 = vpack.c.b16 %v3981, %v3977
    %v4030 = vpack.c.b16 %v3982, %v3978
    %v4031 = vpack.c.b16 %v3987, %v3983
    %v4032 = vpack.c.b16 %v3988, %v3984
    %v4033 = vpack.c.b16 %v3989, %v3985
    %v4034 = vpack.c.b16 %v3990, %v3986
    %v4035 = vpack.c.b16 %v3995, %v3991
    %v4036 = vpack.c.b16 %v3996, %v3992
    %v4037 = vpack.c.b16 %v3997, %v3993
    %v4038 = vpack.c.b16 %v3998, %v3994
    %v4039 = vpack.c.b16 %v4003, %v3999
    %v4040 = vpack.c.b16 %v4004, %v4000
    %v4041 = vpack.c.b16 %v4005, %v4001
    %v4042 = vpack.c.b16 %v4006, %v4002
    %v4043 = vpack.c.b16 %v4011, %v4007
    %v4044 = vpack.c.b16 %v4012, %v4008
    %v4045 = vpack.c.b16 %v4013, %v4009
    %v4046 = vpack.c.b16 %v4014, %v4010
    %4079 = vmatprep.subr.bf16.mxu0 %v4044
    %4080 = vmatpush1.bf16.msra.mxu0 %v4043
    %4081 = vmatprep.subr.bf16.mxu0 %v4040
    %4082 = vmatpush1.bf16.msra.mxu0 %v4039
    %4083 = vmatprep.subr.bf16.mxu0 %v4036
    %4084 = vmatpush1.bf16.msra.mxu0 %v4035
    %4085 = vmatprep.subr.bf16.mxu0 %v4032
    %4086 = vmatpush1.bf16.msra.mxu0 %v4031
    %4087 = vmatprep.subr.bf16.mxu0 %v4028
    %4088 = vmatpush1.bf16.msra.mxu0 %v4027
    %4089 = vmatprep.subr.bf16.mxu0 %v4024
    %4090 = vmatpush1.bf16.msra.mxu0 %v4023
    %4091 = vmatprep.subr.bf16.mxu0 %v4020
    %4092 = vmatpush1.bf16.msra.mxu0 %v4019
    %4093 = vmatprep.subr.bf16.mxu0 %v4016
    %4094 = vmatpush1.bf16.msra.mxu0 %v4015
    %4095 = vmatprep.subr.bf16.mxu0 0
    %4096 = vmatpush2.bf16.msra.mxu0 0
    %4097 = vmatprep.subr.bf16.mxu0 0
    %4098 = vmatpush2.bf16.msra.mxu0 0
    %4099 = vmatprep.subr.bf16.mxu0 0
    %4100 = vmatpush2.bf16.msra.mxu0 0
    %4101 = vmatprep.subr.bf16.mxu0 0
    %4102 = vmatpush2.bf16.msra.mxu0 0
    %4103 = vmatprep.subr.bf16.mxu0 0
    %4104 = vmatpush2.bf16.msra.mxu0 0
    %4105 = vmatprep.subr.bf16.mxu0 0
    %4106 = vmatpush2.bf16.msra.mxu0 0
    %4107 = vmatprep.subr.bf16.mxu0 0
    %4108 = vmatpush2.bf16.msra.mxu0 0
    %4109 = vmatprep.subr.bf16.mxu0 0
    %4110 = vmatpush2.bf16.msra.mxu0 0
    %4111 = vmatprep.mubr.bf16.mxu0 0
    %4112 = vmatmul.mubr.bf16.gmra.mxu0 %v3864
    %v4113 = vpop.f32.mrf.mxu0
    %v4114 = vadd.f32 %v3902, %v4113
    %v4115 = vpop.f32.mrf.mxu0
    %v4116 = vadd.f32 %v3906, %v4115
    %v4117 = vpop.f32.mrf.mxu0
    %v4118 = vadd.f32 %v3902, %v4117
    %v4119 = vpop.f32.mrf.mxu0
    %v4120 = vadd.f32 %v3906, %v4119
    %4121 = vdwg.mxu0
    %4122 = vmatprep.subr.bf16.mxu0 %v4046
    %4123 = vmatpush1.bf16.msra.mxu0 %v4045
    %4124 = vmatprep.subr.bf16.mxu0 %v4042
    %4125 = vmatpush1.bf16.msra.mxu0 %v4041
    %4126 = vmatprep.subr.bf16.mxu0 %v4038
    %4127 = vmatpush1.bf16.msra.mxu0 %v4037
    %4128 = vmatprep.subr.bf16.mxu0 %v4034
    %4129 = vmatpush1.bf16.msra.mxu0 %v4033
    %4130 = vmatprep.subr.bf16.mxu0 %v4030
    %4131 = vmatpush1.bf16.msra.mxu0 %v4029
    %4132 = vmatprep.subr.bf16.mxu0 %v4026
    %4133 = vmatpush1.bf16.msra.mxu0 %v4025
    %4134 = vmatprep.subr.bf16.mxu0 %v4022
    %4135 = vmatpush1.bf16.msra.mxu0 %v4021
    %4136 = vmatprep.subr.bf16.mxu0 %v4018
    %4137 = vmatpush1.bf16.msra.mxu0 %v4017
    %4138 = vmatprep.subr.bf16.mxu0 0
    %4139 = vmatpush2.bf16.msra.mxu0 0
    %4140 = vmatprep.subr.bf16.mxu0 0
    %4141 = vmatpush2.bf16.msra.mxu0 0
    %4142 = vmatprep.subr.bf16.mxu0 0
    %4143 = vmatpush2.bf16.msra.mxu0 0
    %4144 = vmatprep.subr.bf16.mxu0 0
    %4145 = vmatpush2.bf16.msra.mxu0 0
    %4146 = vmatprep.subr.bf16.mxu0 0
    %4147 = vmatpush2.bf16.msra.mxu0 0
    %4148 = vmatprep.subr.bf16.mxu0 0
    %4149 = vmatpush2.bf16.msra.mxu0 0
    %4150 = vmatprep.subr.bf16.mxu0 0
    %4151 = vmatpush2.bf16.msra.mxu0 0
    %4152 = vmatprep.subr.bf16.mxu0 0
    %4153 = vmatpush2.bf16.msra.mxu0 0
    %4154 = vmatprep.mubr.bf16.mxu0 0
    %4155 = vmatmul.mubr.bf16.gmra.mxu0 %v3864
    %v4156 = vpop.f32.mrf.mxu0
    %v4157 = vadd.f32 %v3910, %v4156
    %v4158 = vpop.f32.mrf.mxu0
    %v4159 = vadd.f32 %v3914, %v4158
    %v4160 = vpop.f32.mrf.mxu0
    %v4161 = vadd.f32 %v3910, %v4160
    %v4162 = vpop.f32.mrf.mxu0
    %v4163 = vadd.f32 %v3914, %v4162
    %4164 = vdwg.mxu0
    %4165 = vst [vmem:[#allocation17] sm:$0xff] %v4114
    %4166 = vst [vmem:[#allocation17 + $0x8] sm:$0xff] %v4116
    %4167 = vst [vmem:[#allocation17 + $0x10] sm:$0xff] %v4157
    %4168 = vst [vmem:[#allocation17 + $0x18] sm:$0xff] %v4159
    %4169 = vst [vmem:[#allocation17 + $0x20] sm:$0xff] %v4118
    %4170 = vst [vmem:[#allocation17 + $0x28] sm:$0xff] %v4120
    %4171 = vst [vmem:[#allocation17 + $0x30] sm:$0xff] %v4161
    %4172 = vst [vmem:[#allocation17 + $0x38] sm:$0xff] %v4163
    // Predicated region
    $region102: #{tpu_custom_call.1} parent=1 // pred_check
      _
    $region103: #{tpu_custom_call.1} parent=1 // pred_check_branch
      %4174 = sbr.rel (0) target = $region105
    $region104: #{tpu_custom_call.1} parent=1 // pred_region
      %s4176 = ssub.s32 1024, 1024
      %4177 = vsyncadd [#allocation4], %s4176
      %s4178 = sshll.u32 [#allocation17], 4
      %s4179 = int_to_ptr.vmem [resolvable:$true] %s4178
      %4184 = dma.vmem_to_hbm [thread:$0]  %s4179, 1024, %s16, [#allocation4], 512, 512, 32
    $region105: #{tpu_custom_call.1} parent=1 // pred_fallthru
      _
    // Predicated region
    $region106: #{tpu_custom_call.1} parent=1 // pred_check
      _
    $region107: #{tpu_custom_call.1} parent=1 // pred_check_branch
      %4186 = sbr.rel (0) target = $region109
    $region108: #{tpu_custom_call.1} parent=1 // pred_region
      %4187 = dma.done [#allocation4], 1024
    $region109: #{tpu_custom_call.1} parent=1 // pred_fallthru
      _
    %4188 = vsyncpa [#allocation3], 1
    %4189 = vsyncpa [#allocation6], 1
    %4190 = vsyncpa [#allocation9], 1
    %4191 = vsyncpa [#allocation12], 1
    %4192 = vsyncpa [#allocation15], 1
    %4193 = vsyncpa [#allocation4], 1

</llo_original>
